<compile_context>
chip_gen: v7x
topology: tpu7x:2x2x1
jax: 0.10.0
libtpu: 0.0.40
codegen_flags: <defaults>
</compile_context>

<pallas_src>
import functools

import jax
import jax.numpy as jnp
from jax.experimental import pallas as pl
from jax.experimental.pallas import tpu as pltpu
import numpy as np


def lstm_amax_kernel(g0_ref, wbig_ref, b1_ref, out_ref, *, hidden):
    H = hidden
    S = g0_ref.shape[0]          # sequence length
    B = out_ref.shape[0]         # batch tile

    wbig = wbig_ref[...]                                   # (2H, 8H) bf16
    # Hoist the bias broadcast out of the loop (broadcast_in_dim is not CSE'd).
    b1 = jnp.broadcast_to(b1_ref[...], (B, 4 * H))         # (B, 4H)  f32

    def act(g):
        # gate order [i, f, o, g]: one contiguous tanh-based sigmoid over 3H
        # (sigmoid(x) = 0.5*tanh(0.5*x) + 0.5 -> single EUP pass) + one tanh.
        s = 0.5 * jnp.tanh(0.5 * g[:, :3 * H]) + 0.5
        i = s[:, 0:H]
        f = s[:, H:2 * H]
        o = s[:, 2 * H:3 * H]
        gg = jnp.tanh(g[:, 3 * H:])
        return i, f, o, gg

    def step(t, carry):
        rec0, c0, h1, c1, m = carry

        # ---- layer 0: gates = (hoisted x-term + b0) + h0[t-1] @ whh0 ----
        g0 = g0_ref[t] + rec0
        i0, f0, o0, gg0 = act(g0)
        c0 = f0 * c0 + i0 * gg0
        h0 = o0 * jnp.tanh(c0)

        # ---- single fused MXU call: [h0[t], h1[t-1]] @ W_big  (B,2H)@(2H,8H) ----
        # cols [0,4H)  = h0[t] @ whh0            -> layer-0 recurrent term for t+1
        # cols [4H,8H) = h0[t]@wih1 + h1[t-1]@whh1 -> layer-1 gates for t
        # (concat is at a 128-lane boundary -> vreg placement, no relayout)
        h01 = jnp.concatenate(
            [h0.astype(jnp.bfloat16), h1.astype(jnp.bfloat16)], axis=1)
        big = jnp.dot(h01, wbig, preferred_element_type=jnp.float32)
        rec0 = big[:, :4 * H]
        g1 = big[:, 4 * H:] + b1

        # ---- layer 1 ----
        i1, f1, o1, gg1 = act(g1)
        c1 = f1 * c1 + i1 * gg1
        h1 = o1 * jnp.tanh(c1)

        # Dropout(p=0.5) is identity in eval mode, so amax is over h1 directly.
        # TODO(synk): training-mode dropout (random mask + 1/(1-p) scale) not modeled.
        m = jnp.maximum(m, h1)
        return rec0, c0, h1, c1, m

    zH = jnp.zeros((B, H), jnp.float32)
    carry = (jnp.zeros((B, 4 * H), jnp.float32),   # rec0 = h0_init @ whh0 = 0
             zH, zH, zH,                           # c0, h1, c1
             jnp.full((B, H), -jnp.inf, jnp.float32))

    if S <= 16:
        # Tiny static S: full unroll (traced once).
        for t in range(S):
            carry = step(t, carry)
    else:
        # Larger S: bounded live ranges / code size via fori_loop.
        carry = jax.lax.fori_loop(0, S, step, carry)

    out_ref[...] = carry[4]


def _reorder_gates(w, H, axis=0):
    """PyTorch gate order [i, f, g, o] -> kernel order [i, f, o, g]."""
    i = jax.lax.slice_in_dim(w, 0 * H, 1 * H, axis=axis)
    f = jax.lax.slice_in_dim(w, 1 * H, 2 * H, axis=axis)
    g = jax.lax.slice_in_dim(w, 2 * H, 3 * H, axis=axis)
    o = jax.lax.slice_in_dim(w, 3 * H, 4 * H, axis=axis)
    return jnp.concatenate([i, f, o, g], axis=axis)


def _pick_batch_tile(B):
    """Batch tile for the parallel grid axis.

    Prefer TB in the 32-64 range (vreg-friendly; (256,.) tiles guarantee spills)
    and require >= 2 grid steps when B >= 16 so both v7x TensorCores get work.
    """
    if B < 16 or B % 8 != 0:
        return B
    for tb in (64, 32, 16, 8):
        if B % tb == 0 and B // tb >= 2:
            return tb
    return B


def init_lstm_params(key, hidden):
    """PyTorch nn.LSTM default init: U(-1/sqrt(H), 1/sqrt(H)) for all params."""
    stdv = 1.0 / np.sqrt(hidden)
    shapes = {
        "weight_ih_l0": (4 * hidden, 1),
        "weight_hh_l0": (4 * hidden, hidden),
        "bias_ih_l0": (4 * hidden,),
        "bias_hh_l0": (4 * hidden,),
        "weight_ih_l1": (4 * hidden, hidden),
        "weight_hh_l1": (4 * hidden, hidden),
        "bias_ih_l1": (4 * hidden,),
        "bias_hh_l1": (4 * hidden,),
    }
    params = {}
    for name, shape in shapes.items():
        key, sub = jax.random.split(key)
        params[name] = jax.random.uniform(
            sub, shape, jnp.float32, minval=-stdv, maxval=stdv)
    return params


def lstm_amax_forward(paragraph, params):
    """paragraph: (batch, seq, 1) float32  ->  (batch, hidden) float32."""
    B, S, _ = paragraph.shape
    H = params["weight_hh_l0"].shape[1]

    x2d = paragraph[..., 0].astype(jnp.float32)                          # (B, S)

    # Gate reorder [i,f,g,o] -> [i,f,o,g] (contiguous sigmoid/tanh slabs).
    wih0 = _reorder_gates(params["weight_ih_l0"], H).T                   # (1, 4H)
    b0 = _reorder_gates(params["bias_ih_l0"] + params["bias_hh_l0"],
                        H).reshape(1, 4 * H)
    whh0_t = _reorder_gates(params["weight_hh_l0"], H).T                 # (H, 4H)
    wih1_t = _reorder_gates(params["weight_ih_l1"], H).T                 # (H, 4H)
    whh1_t = _reorder_gates(params["weight_hh_l1"], H).T                 # (H, 4H)
    b1 = _reorder_gates(params["bias_ih_l1"] + params["bias_hh_l1"],
                        H).reshape(1, 4 * H)

    # Layer-0 input precompute hoisted out of the kernel (input_size == 1):
    # g0_all[t, b, :] = x[b, t] * W_ih0 + (b_ih0 + b_hh0), laid out (S, B, 4H)
    # so g0_ref[t] is a clean (TB, 4H) sublane x lane tile.
    g0_all = x2d.T[:, :, None] * wih0[None, :, :] + b0[None, :, :]       # (S,B,4H)

    # Fused block weight: W_big = [[whh0, wih1], [0, whh1]]  (2H, 8H), bf16 MXU operand.
    top = jnp.concatenate([whh0_t, wih1_t], axis=1)                      # (H, 8H)
    bot = jnp.concatenate([jnp.zeros((H, 4 * H), jnp.float32), whh1_t],
                          axis=1)                                        # (H, 8H)
    w_big = jnp.concatenate([top, bot], axis=0).astype(jnp.bfloat16)     # (2H, 8H)

    TB = _pick_batch_tile(B)
    grid = (B // TB,)

    kernel = functools.partial(lstm_amax_kernel, hidden=H)
    return pl.pallas_call(
        kernel,
        out_shape=jax.ShapeDtypeStruct((B, H), jnp.float32),
        grid_spec=pltpu.PrefetchScalarGridSpec(
            num_scalar_prefetch=0,
            grid=grid,
            in_specs=[
                pl.BlockSpec((S, TB, 4 * H), lambda i: (0, i, 0)),   # g0_all
                pl.BlockSpec((2 * H, 8 * H), lambda i: (0, 0)),      # W_big (bf16)
                pl.BlockSpec((1, 4 * H), lambda i: (0, 0)),          # b1
            ],
            out_specs=pl.BlockSpec((TB, H), lambda i: (i, 0)),
        ),
        compiler_params=pltpu.CompilerParams(
            dimension_semantics=("parallel",)),
    )(g0_all, w_big, b1)


def lstm_amax_reference(paragraph, params):
    """Pure-JAX f32 reference matching PyTorch nn.LSTM (2 layers) + amax(dim=1)."""
    B, S, _ = paragraph.shape
    H = params["weight_hh_l0"].shape[1]
    x = paragraph[..., 0].astype(jnp.float32)

    def cell(x_gate, h, c, whh_t, b):
        g = x_gate + h @ whh_t + b
        i = jax.nn.sigmoid(g[:, 0:H])
        f = jax.nn.sigmoid(g[:, H:2 * H])
        gg = jnp.tanh(g[:, 2 * H:3 * H])
        o = jax.nn.sigmoid(g[:, 3 * H:4 * H])
        c = f * c + i * gg
        h = o * jnp.tanh(c)
        return h, c

    wih0_t = params["weight_ih_l0"].T
    whh0_t = params["weight_hh_l0"].T
    b0 = params["bias_ih_l0"] + params["bias_hh_l0"]
    wih1_t = params["weight_ih_l1"].T
    whh1_t = params["weight_hh_l1"].T
    b1 = params["bias_ih_l1"] + params["bias_hh_l1"]

    zeros = jnp.zeros((B, H), jnp.float32)
    h0, c0, h1, c1 = zeros, zeros, zeros, zeros
    m = jnp.full((B, H), -jnp.inf, jnp.float32)
    for t in range(S):
        x_t = x[:, t:t + 1]
        h0, c0 = cell(x_t * wih0_t, h0, c0, whh0_t, b0)
        h1, c1 = cell(h0 @ wih1_t, h1, c1, whh1_t, b1)
        m = jnp.maximum(m, h1)
    return m


if __name__ == "__main__":
    batch, seq, dimension = 2, 8, 128
    key = jax.random.PRNGKey(0)
    key_p, key_x = jax.random.split(key)

    params = init_lstm_params(key_p, dimension)
    paragraph = jax.random.normal(key_x, (batch, seq, 1), dtype=jnp.float32)

    out = lstm_amax_forward(paragraph, params)
    out = jax.block_until_ready(out)

    ref = lstm_amax_reference(paragraph, params)
    # bf16 matmul operands (f32 accumulate) -> loosened tolerance vs f32 ref.
    # NOTE: bf16 rounding compounds through the recurrence with sequence length.
    np.testing.assert_allclose(np.asarray(out), np.asarray(ref),
                               rtol=2e-2, atol=2e-2)
    assert out.shape == (batch, dimension)
    print("KERNEL_OK")
</pallas_src>

<mosaic_0001>
module attributes {stable_mosaic.version = 11 : i64} {
  func.func @lstm_amax_kernel(%arg0: i32, %arg1: memref<8x2x512xf32, #tpu.memory_space<vmem>>, %arg2: memref<256x1024xbf16, #tpu.memory_space<vmem>>, %arg3: memref<1x512xf32, #tpu.memory_space<vmem>>, %arg4: memref<2x128xf32, #tpu.memory_space<vmem>>) attributes {dimension_semantics = [#tpu.dimension_semantics<parallel>], iteration_bounds = array<i64: 1>, scalar_prefetch = 0 : i64, scratch_operands = 0 : i64, tpu.core_type = #tpu.core_type<tc>, window_params = [{transform_indices = @transform_0, window_bounds = array<i64: 8, 2, 512>}, {pipeline_mode = #tpu.pipeline_mode<synchronous>, transform_indices = @transform_1, window_bounds = array<i64: 256, 1024>}, {pipeline_mode = #tpu.pipeline_mode<synchronous>, transform_indices = @transform_2, window_bounds = array<i64: 1, 512>}, {transform_indices = @transform_3, window_bounds = array<i64: 2, 128>}]} {
    %c0 = arith.constant 0 : index
    %c0_0 = arith.constant 0 : index
    %0 = vector.load %arg2[%c0, %c0_0] : memref<256x1024xbf16, #tpu.memory_space<vmem>>, vector<256x1024xbf16>
    %c0_1 = arith.constant 0 : index
    %c0_2 = arith.constant 0 : index
    %1 = vector.load %arg3[%c0_1, %c0_2] : memref<1x512xf32, #tpu.memory_space<vmem>>, vector<1x512xf32>
    %2 = vector.shape_cast %1 : vector<1x512xf32> to vector<1x512xf32>
    %3 = vector.broadcast %2 : vector<1x512xf32> to vector<2x512xf32>
    %cst = arith.constant 0.000000e+00 : f32
    %4 = vector.broadcast %cst : f32 to vector<2x128xf32>
    %cst_3 = arith.constant 0.000000e+00 : f32
    %5 = vector.broadcast %cst_3 : f32 to vector<2x512xf32>
    %cst_4 = arith.constant 0xFF800000 : f32
    %6 = vector.broadcast %cst_4 : f32 to vector<2x128xf32>
    %c0_5 = arith.constant 0 : index
    %c0_6 = arith.constant 0 : index
    %c0_7 = arith.constant 0 : index
    %7 = vector.load %arg1[%c0_5, %c0_6, %c0_7] : memref<8x2x512xf32, #tpu.memory_space<vmem>>, vector<1x2x512xf32>
    %8 = vector.shape_cast %7 : vector<1x2x512xf32> to vector<2x512xf32>
    %9 = arith.addf %8, %5 : vector<2x512xf32>
    %10 = vector.extract_strided_slice %9 {offsets = [0, 0], sizes = [2, 384], strides = [1, 1]} : vector<2x512xf32> to vector<2x384xf32>
    %cst_8 = arith.constant 5.000000e-01 : f32
    %11 = vector.broadcast %cst_8 : f32 to vector<2x384xf32>
    %12 = arith.mulf %11, %10 : vector<2x384xf32>
    %13 = math.tanh %12 : vector<2x384xf32>
    %cst_9 = arith.constant 5.000000e-01 : f32
    %14 = vector.broadcast %cst_9 : f32 to vector<2x384xf32>
    %15 = arith.mulf %14, %13 : vector<2x384xf32>
    %cst_10 = arith.constant 5.000000e-01 : f32
    %16 = vector.broadcast %cst_10 : f32 to vector<2x384xf32>
    %17 = arith.addf %15, %16 : vector<2x384xf32>
    %18 = vector.extract_strided_slice %17 {offsets = [0, 0], sizes = [2, 128], strides = [1, 1]} : vector<2x384xf32> to vector<2x128xf32>
    %19 = vector.extract_strided_slice %17 {offsets = [0, 128], sizes = [2, 128], strides = [1, 1]} : vector<2x384xf32> to vector<2x128xf32>
    %20 = vector.extract_strided_slice %17 {offsets = [0, 256], sizes = [2, 128], strides = [1, 1]} : vector<2x384xf32> to vector<2x128xf32>
    %21 = vector.extract_strided_slice %9 {offsets = [0, 384], sizes = [2, 128], strides = [1, 1]} : vector<2x512xf32> to vector<2x128xf32>
    %22 = math.tanh %21 : vector<2x128xf32>
    %23 = arith.mulf %19, %4 : vector<2x128xf32>
    %24 = arith.mulf %18, %22 : vector<2x128xf32>
    %25 = arith.addf %23, %24 : vector<2x128xf32>
    %26 = math.tanh %25 : vector<2x128xf32>
    %27 = arith.mulf %20, %26 : vector<2x128xf32>
    %28 = arith.truncf %27 : vector<2x128xf32> to vector<2x128xbf16>
    %29 = arith.truncf %4 : vector<2x128xf32> to vector<2x128xbf16>
    %30 = tpu.concatenate %28, %29 in 1 : vector<2x128xbf16>, vector<2x128xbf16> -> vector<2x256xbf16>
    %cst_11 = arith.constant dense<0.000000e+00> : vector<2x1024xf32>
    %31 = tpu.matmul %30, %0, %cst_11 {dimension_numbers = #tpu.dot_dimension_numbers<[1], [0], [0], [1], [0, 0, 1, 1], [], []>} : vector<2x256xbf16>, vector<256x1024xbf16>, vector<2x1024xf32> -> vector<2x1024xf32>
    %32 = vector.extract_strided_slice %31 {offsets = [0, 0], sizes = [2, 512], strides = [1, 1]} : vector<2x1024xf32> to vector<2x512xf32>
    %33 = vector.extract_strided_slice %31 {offsets = [0, 512], sizes = [2, 512], strides = [1, 1]} : vector<2x1024xf32> to vector<2x512xf32>
    %34 = arith.addf %33, %3 : vector<2x512xf32>
    %35 = vector.extract_strided_slice %34 {offsets = [0, 0], sizes = [2, 384], strides = [1, 1]} : vector<2x512xf32> to vector<2x384xf32>
    %cst_12 = arith.constant 5.000000e-01 : f32
    %36 = vector.broadcast %cst_12 : f32 to vector<2x384xf32>
    %37 = arith.mulf %36, %35 : vector<2x384xf32>
    %38 = math.tanh %37 : vector<2x384xf32>
    %cst_13 = arith.constant 5.000000e-01 : f32
    %39 = vector.broadcast %cst_13 : f32 to vector<2x384xf32>
    %40 = arith.mulf %39, %38 : vector<2x384xf32>
    %cst_14 = arith.constant 5.000000e-01 : f32
    %41 = vector.broadcast %cst_14 : f32 to vector<2x384xf32>
    %42 = arith.addf %40, %41 : vector<2x384xf32>
    %43 = vector.extract_strided_slice %42 {offsets = [0, 0], sizes = [2, 128], strides = [1, 1]} : vector<2x384xf32> to vector<2x128xf32>
    %44 = vector.extract_strided_slice %42 {offsets = [0, 128], sizes = [2, 128], strides = [1, 1]} : vector<2x384xf32> to vector<2x128xf32>
    %45 = vector.extract_strided_slice %42 {offsets = [0, 256], sizes = [2, 128], strides = [1, 1]} : vector<2x384xf32> to vector<2x128xf32>
    %46 = vector.extract_strided_slice %34 {offsets = [0, 384], sizes = [2, 128], strides = [1, 1]} : vector<2x512xf32> to vector<2x128xf32>
    %47 = math.tanh %46 : vector<2x128xf32>
    %48 = arith.mulf %44, %4 : vector<2x128xf32>
    %49 = arith.mulf %43, %47 : vector<2x128xf32>
    %50 = arith.addf %48, %49 : vector<2x128xf32>
    %51 = math.tanh %50 : vector<2x128xf32>
    %52 = arith.mulf %45, %51 : vector<2x128xf32>
    %53 = arith.maximumf %6, %52 : vector<2x128xf32>
    %c1 = arith.constant 1 : index
    %c0_15 = arith.constant 0 : index
    %c0_16 = arith.constant 0 : index
    %54 = vector.load %arg1[%c1, %c0_15, %c0_16] : memref<8x2x512xf32, #tpu.memory_space<vmem>>, vector<1x2x512xf32>
    %55 = vector.shape_cast %54 : vector<1x2x512xf32> to vector<2x512xf32>
    %56 = arith.addf %55, %32 : vector<2x512xf32>
    %57 = vector.extract_strided_slice %56 {offsets = [0, 0], sizes = [2, 384], strides = [1, 1]} : vector<2x512xf32> to vector<2x384xf32>
    %cst_17 = arith.constant 5.000000e-01 : f32
    %58 = vector.broadcast %cst_17 : f32 to vector<2x384xf32>
    %59 = arith.mulf %58, %57 : vector<2x384xf32>
    %60 = math.tanh %59 : vector<2x384xf32>
    %cst_18 = arith.constant 5.000000e-01 : f32
    %61 = vector.broadcast %cst_18 : f32 to vector<2x384xf32>
    %62 = arith.mulf %61, %60 : vector<2x384xf32>
    %cst_19 = arith.constant 5.000000e-01 : f32
    %63 = vector.broadcast %cst_19 : f32 to vector<2x384xf32>
    %64 = arith.addf %62, %63 : vector<2x384xf32>
    %65 = vector.extract_strided_slice %64 {offsets = [0, 0], sizes = [2, 128], strides = [1, 1]} : vector<2x384xf32> to vector<2x128xf32>
    %66 = vector.extract_strided_slice %64 {offsets = [0, 128], sizes = [2, 128], strides = [1, 1]} : vector<2x384xf32> to vector<2x128xf32>
    %67 = vector.extract_strided_slice %64 {offsets = [0, 256], sizes = [2, 128], strides = [1, 1]} : vector<2x384xf32> to vector<2x128xf32>
    %68 = vector.extract_strided_slice %56 {offsets = [0, 384], sizes = [2, 128], strides = [1, 1]} : vector<2x512xf32> to vector<2x128xf32>
    %69 = math.tanh %68 : vector<2x128xf32>
    %70 = arith.mulf %66, %25 : vector<2x128xf32>
    %71 = arith.mulf %65, %69 : vector<2x128xf32>
    %72 = arith.addf %70, %71 : vector<2x128xf32>
    %73 = math.tanh %72 : vector<2x128xf32>
    %74 = arith.mulf %67, %73 : vector<2x128xf32>
    %75 = arith.truncf %74 : vector<2x128xf32> to vector<2x128xbf16>
    %76 = arith.truncf %52 : vector<2x128xf32> to vector<2x128xbf16>
    %77 = tpu.concatenate %75, %76 in 1 : vector<2x128xbf16>, vector<2x128xbf16> -> vector<2x256xbf16>
    %cst_20 = arith.constant dense<0.000000e+00> : vector<2x1024xf32>
    %78 = tpu.matmul %77, %0, %cst_20 {dimension_numbers = #tpu.dot_dimension_numbers<[1], [0], [0], [1], [0, 0, 1, 1], [], []>} : vector<2x256xbf16>, vector<256x1024xbf16>, vector<2x1024xf32> -> vector<2x1024xf32>
    %79 = vector.extract_strided_slice %78 {offsets = [0, 0], sizes = [2, 512], strides = [1, 1]} : vector<2x1024xf32> to vector<2x512xf32>
    %80 = vector.extract_strided_slice %78 {offsets = [0, 512], sizes = [2, 512], strides = [1, 1]} : vector<2x1024xf32> to vector<2x512xf32>
    %81 = arith.addf %80, %3 : vector<2x512xf32>
    %82 = vector.extract_strided_slice %81 {offsets = [0, 0], sizes = [2, 384], strides = [1, 1]} : vector<2x512xf32> to vector<2x384xf32>
    %cst_21 = arith.constant 5.000000e-01 : f32
    %83 = vector.broadcast %cst_21 : f32 to vector<2x384xf32>
    %84 = arith.mulf %83, %82 : vector<2x384xf32>
    %85 = math.tanh %84 : vector<2x384xf32>
    %cst_22 = arith.constant 5.000000e-01 : f32
    %86 = vector.broadcast %cst_22 : f32 to vector<2x384xf32>
    %87 = arith.mulf %86, %85 : vector<2x384xf32>
    %cst_23 = arith.constant 5.000000e-01 : f32
    %88 = vector.broadcast %cst_23 : f32 to vector<2x384xf32>
    %89 = arith.addf %87, %88 : vector<2x384xf32>
    %90 = vector.extract_strided_slice %89 {offsets = [0, 0], sizes = [2, 128], strides = [1, 1]} : vector<2x384xf32> to vector<2x128xf32>
    %91 = vector.extract_strided_slice %89 {offsets = [0, 128], sizes = [2, 128], strides = [1, 1]} : vector<2x384xf32> to vector<2x128xf32>
    %92 = vector.extract_strided_slice %89 {offsets = [0, 256], sizes = [2, 128], strides = [1, 1]} : vector<2x384xf32> to vector<2x128xf32>
    %93 = vector.extract_strided_slice %81 {offsets = [0, 384], sizes = [2, 128], strides = [1, 1]} : vector<2x512xf32> to vector<2x128xf32>
    %94 = math.tanh %93 : vector<2x128xf32>
    %95 = arith.mulf %91, %50 : vector<2x128xf32>
    %96 = arith.mulf %90, %94 : vector<2x128xf32>
    %97 = arith.addf %95, %96 : vector<2x128xf32>
    %98 = math.tanh %97 : vector<2x128xf32>
    %99 = arith.mulf %92, %98 : vector<2x128xf32>
    %100 = arith.maximumf %53, %99 : vector<2x128xf32>
    %c2 = arith.constant 2 : index
    %c0_24 = arith.constant 0 : index
    %c0_25 = arith.constant 0 : index
    %101 = vector.load %arg1[%c2, %c0_24, %c0_25] : memref<8x2x512xf32, #tpu.memory_space<vmem>>, vector<1x2x512xf32>
    %102 = vector.shape_cast %101 : vector<1x2x512xf32> to vector<2x512xf32>
    %103 = arith.addf %102, %79 : vector<2x512xf32>
    %104 = vector.extract_strided_slice %103 {offsets = [0, 0], sizes = [2, 384], strides = [1, 1]} : vector<2x512xf32> to vector<2x384xf32>
    %cst_26 = arith.constant 5.000000e-01 : f32
    %105 = vector.broadcast %cst_26 : f32 to vector<2x384xf32>
    %106 = arith.mulf %105, %104 : vector<2x384xf32>
    %107 = math.tanh %106 : vector<2x384xf32>
    %cst_27 = arith.constant 5.000000e-01 : f32
    %108 = vector.broadcast %cst_27 : f32 to vector<2x384xf32>
    %109 = arith.mulf %108, %107 : vector<2x384xf32>
    %cst_28 = arith.constant 5.000000e-01 : f32
    %110 = vector.broadcast %cst_28 : f32 to vector<2x384xf32>
    %111 = arith.addf %109, %110 : vector<2x384xf32>
    %112 = vector.extract_strided_slice %111 {offsets = [0, 0], sizes = [2, 128], strides = [1, 1]} : vector<2x384xf32> to vector<2x128xf32>
    %113 = vector.extract_strided_slice %111 {offsets = [0, 128], sizes = [2, 128], strides = [1, 1]} : vector<2x384xf32> to vector<2x128xf32>
    %114 = vector.extract_strided_slice %111 {offsets = [0, 256], sizes = [2, 128], strides = [1, 1]} : vector<2x384xf32> to vector<2x128xf32>
    %115 = vector.extract_strided_slice %103 {offsets = [0, 384], sizes = [2, 128], strides = [1, 1]} : vector<2x512xf32> to vector<2x128xf32>
    %116 = math.tanh %115 : vector<2x128xf32>
    %117 = arith.mulf %113, %72 : vector<2x128xf32>
    %118 = arith.mulf %112, %116 : vector<2x128xf32>
    %119 = arith.addf %117, %118 : vector<2x128xf32>
    %120 = math.tanh %119 : vector<2x128xf32>
    %121 = arith.mulf %114, %120 : vector<2x128xf32>
    %122 = arith.truncf %121 : vector<2x128xf32> to vector<2x128xbf16>
    %123 = arith.truncf %99 : vector<2x128xf32> to vector<2x128xbf16>
    %124 = tpu.concatenate %122, %123 in 1 : vector<2x128xbf16>, vector<2x128xbf16> -> vector<2x256xbf16>
    %cst_29 = arith.constant dense<0.000000e+00> : vector<2x1024xf32>
    %125 = tpu.matmul %124, %0, %cst_29 {dimension_numbers = #tpu.dot_dimension_numbers<[1], [0], [0], [1], [0, 0, 1, 1], [], []>} : vector<2x256xbf16>, vector<256x1024xbf16>, vector<2x1024xf32> -> vector<2x1024xf32>
    %126 = vector.extract_strided_slice %125 {offsets = [0, 0], sizes = [2, 512], strides = [1, 1]} : vector<2x1024xf32> to vector<2x512xf32>
    %127 = vector.extract_strided_slice %125 {offsets = [0, 512], sizes = [2, 512], strides = [1, 1]} : vector<2x1024xf32> to vector<2x512xf32>
    %128 = arith.addf %127, %3 : vector<2x512xf32>
    %129 = vector.extract_strided_slice %128 {offsets = [0, 0], sizes = [2, 384], strides = [1, 1]} : vector<2x512xf32> to vector<2x384xf32>
    %cst_30 = arith.constant 5.000000e-01 : f32
    %130 = vector.broadcast %cst_30 : f32 to vector<2x384xf32>
    %131 = arith.mulf %130, %129 : vector<2x384xf32>
    %132 = math.tanh %131 : vector<2x384xf32>
    %cst_31 = arith.constant 5.000000e-01 : f32
    %133 = vector.broadcast %cst_31 : f32 to vector<2x384xf32>
    %134 = arith.mulf %133, %132 : vector<2x384xf32>
    %cst_32 = arith.constant 5.000000e-01 : f32
    %135 = vector.broadcast %cst_32 : f32 to vector<2x384xf32>
    %136 = arith.addf %134, %135 : vector<2x384xf32>
    %137 = vector.extract_strided_slice %136 {offsets = [0, 0], sizes = [2, 128], strides = [1, 1]} : vector<2x384xf32> to vector<2x128xf32>
    %138 = vector.extract_strided_slice %136 {offsets = [0, 128], sizes = [2, 128], strides = [1, 1]} : vector<2x384xf32> to vector<2x128xf32>
    %139 = vector.extract_strided_slice %136 {offsets = [0, 256], sizes = [2, 128], strides = [1, 1]} : vector<2x384xf32> to vector<2x128xf32>
    %140 = vector.extract_strided_slice %128 {offsets = [0, 384], sizes = [2, 128], strides = [1, 1]} : vector<2x512xf32> to vector<2x128xf32>
    %141 = math.tanh %140 : vector<2x128xf32>
    %142 = arith.mulf %138, %97 : vector<2x128xf32>
    %143 = arith.mulf %137, %141 : vector<2x128xf32>
    %144 = arith.addf %142, %143 : vector<2x128xf32>
    %145 = math.tanh %144 : vector<2x128xf32>
    %146 = arith.mulf %139, %145 : vector<2x128xf32>
    %147 = arith.maximumf %100, %146 : vector<2x128xf32>
    %c3 = arith.constant 3 : index
    %c0_33 = arith.constant 0 : index
    %c0_34 = arith.constant 0 : index
    %148 = vector.load %arg1[%c3, %c0_33, %c0_34] : memref<8x2x512xf32, #tpu.memory_space<vmem>>, vector<1x2x512xf32>
    %149 = vector.shape_cast %148 : vector<1x2x512xf32> to vector<2x512xf32>
    %150 = arith.addf %149, %126 : vector<2x512xf32>
    %151 = vector.extract_strided_slice %150 {offsets = [0, 0], sizes = [2, 384], strides = [1, 1]} : vector<2x512xf32> to vector<2x384xf32>
    %cst_35 = arith.constant 5.000000e-01 : f32
    %152 = vector.broadcast %cst_35 : f32 to vector<2x384xf32>
    %153 = arith.mulf %152, %151 : vector<2x384xf32>
    %154 = math.tanh %153 : vector<2x384xf32>
    %cst_36 = arith.constant 5.000000e-01 : f32
    %155 = vector.broadcast %cst_36 : f32 to vector<2x384xf32>
    %156 = arith.mulf %155, %154 : vector<2x384xf32>
    %cst_37 = arith.constant 5.000000e-01 : f32
    %157 = vector.broadcast %cst_37 : f32 to vector<2x384xf32>
    %158 = arith.addf %156, %157 : vector<2x384xf32>
    %159 = vector.extract_strided_slice %158 {offsets = [0, 0], sizes = [2, 128], strides = [1, 1]} : vector<2x384xf32> to vector<2x128xf32>
    %160 = vector.extract_strided_slice %158 {offsets = [0, 128], sizes = [2, 128], strides = [1, 1]} : vector<2x384xf32> to vector<2x128xf32>
    %161 = vector.extract_strided_slice %158 {offsets = [0, 256], sizes = [2, 128], strides = [1, 1]} : vector<2x384xf32> to vector<2x128xf32>
    %162 = vector.extract_strided_slice %150 {offsets = [0, 384], sizes = [2, 128], strides = [1, 1]} : vector<2x512xf32> to vector<2x128xf32>
    %163 = math.tanh %162 : vector<2x128xf32>
    %164 = arith.mulf %160, %119 : vector<2x128xf32>
    %165 = arith.mulf %159, %163 : vector<2x128xf32>
    %166 = arith.addf %164, %165 : vector<2x128xf32>
    %167 = math.tanh %166 : vector<2x128xf32>
    %168 = arith.mulf %161, %167 : vector<2x128xf32>
    %169 = arith.truncf %168 : vector<2x128xf32> to vector<2x128xbf16>
    %170 = arith.truncf %146 : vector<2x128xf32> to vector<2x128xbf16>
    %171 = tpu.concatenate %169, %170 in 1 : vector<2x128xbf16>, vector<2x128xbf16> -> vector<2x256xbf16>
    %cst_38 = arith.constant dense<0.000000e+00> : vector<2x1024xf32>
    %172 = tpu.matmul %171, %0, %cst_38 {dimension_numbers = #tpu.dot_dimension_numbers<[1], [0], [0], [1], [0, 0, 1, 1], [], []>} : vector<2x256xbf16>, vector<256x1024xbf16>, vector<2x1024xf32> -> vector<2x1024xf32>
    %173 = vector.extract_strided_slice %172 {offsets = [0, 0], sizes = [2, 512], strides = [1, 1]} : vector<2x1024xf32> to vector<2x512xf32>
    %174 = vector.extract_strided_slice %172 {offsets = [0, 512], sizes = [2, 512], strides = [1, 1]} : vector<2x1024xf32> to vector<2x512xf32>
    %175 = arith.addf %174, %3 : vector<2x512xf32>
    %176 = vector.extract_strided_slice %175 {offsets = [0, 0], sizes = [2, 384], strides = [1, 1]} : vector<2x512xf32> to vector<2x384xf32>
    %cst_39 = arith.constant 5.000000e-01 : f32
    %177 = vector.broadcast %cst_39 : f32 to vector<2x384xf32>
    %178 = arith.mulf %177, %176 : vector<2x384xf32>
    %179 = math.tanh %178 : vector<2x384xf32>
    %cst_40 = arith.constant 5.000000e-01 : f32
    %180 = vector.broadcast %cst_40 : f32 to vector<2x384xf32>
    %181 = arith.mulf %180, %179 : vector<2x384xf32>
    %cst_41 = arith.constant 5.000000e-01 : f32
    %182 = vector.broadcast %cst_41 : f32 to vector<2x384xf32>
    %183 = arith.addf %181, %182 : vector<2x384xf32>
    %184 = vector.extract_strided_slice %183 {offsets = [0, 0], sizes = [2, 128], strides = [1, 1]} : vector<2x384xf32> to vector<2x128xf32>
    %185 = vector.extract_strided_slice %183 {offsets = [0, 128], sizes = [2, 128], strides = [1, 1]} : vector<2x384xf32> to vector<2x128xf32>
    %186 = vector.extract_strided_slice %183 {offsets = [0, 256], sizes = [2, 128], strides = [1, 1]} : vector<2x384xf32> to vector<2x128xf32>
    %187 = vector.extract_strided_slice %175 {offsets = [0, 384], sizes = [2, 128], strides = [1, 1]} : vector<2x512xf32> to vector<2x128xf32>
    %188 = math.tanh %187 : vector<2x128xf32>
    %189 = arith.mulf %185, %144 : vector<2x128xf32>
    %190 = arith.mulf %184, %188 : vector<2x128xf32>
    %191 = arith.addf %189, %190 : vector<2x128xf32>
    %192 = math.tanh %191 : vector<2x128xf32>
    %193 = arith.mulf %186, %192 : vector<2x128xf32>
    %194 = arith.maximumf %147, %193 : vector<2x128xf32>
    %c4 = arith.constant 4 : index
    %c0_42 = arith.constant 0 : index
    %c0_43 = arith.constant 0 : index
    %195 = vector.load %arg1[%c4, %c0_42, %c0_43] : memref<8x2x512xf32, #tpu.memory_space<vmem>>, vector<1x2x512xf32>
    %196 = vector.shape_cast %195 : vector<1x2x512xf32> to vector<2x512xf32>
    %197 = arith.addf %196, %173 : vector<2x512xf32>
    %198 = vector.extract_strided_slice %197 {offsets = [0, 0], sizes = [2, 384], strides = [1, 1]} : vector<2x512xf32> to vector<2x384xf32>
    %cst_44 = arith.constant 5.000000e-01 : f32
    %199 = vector.broadcast %cst_44 : f32 to vector<2x384xf32>
    %200 = arith.mulf %199, %198 : vector<2x384xf32>
    %201 = math.tanh %200 : vector<2x384xf32>
    %cst_45 = arith.constant 5.000000e-01 : f32
    %202 = vector.broadcast %cst_45 : f32 to vector<2x384xf32>
    %203 = arith.mulf %202, %201 : vector<2x384xf32>
    %cst_46 = arith.constant 5.000000e-01 : f32
    %204 = vector.broadcast %cst_46 : f32 to vector<2x384xf32>
    %205 = arith.addf %203, %204 : vector<2x384xf32>
    %206 = vector.extract_strided_slice %205 {offsets = [0, 0], sizes = [2, 128], strides = [1, 1]} : vector<2x384xf32> to vector<2x128xf32>
    %207 = vector.extract_strided_slice %205 {offsets = [0, 128], sizes = [2, 128], strides = [1, 1]} : vector<2x384xf32> to vector<2x128xf32>
    %208 = vector.extract_strided_slice %205 {offsets = [0, 256], sizes = [2, 128], strides = [1, 1]} : vector<2x384xf32> to vector<2x128xf32>
    %209 = vector.extract_strided_slice %197 {offsets = [0, 384], sizes = [2, 128], strides = [1, 1]} : vector<2x512xf32> to vector<2x128xf32>
    %210 = math.tanh %209 : vector<2x128xf32>
    %211 = arith.mulf %207, %166 : vector<2x128xf32>
    %212 = arith.mulf %206, %210 : vector<2x128xf32>
    %213 = arith.addf %211, %212 : vector<2x128xf32>
    %214 = math.tanh %213 : vector<2x128xf32>
    %215 = arith.mulf %208, %214 : vector<2x128xf32>
    %216 = arith.truncf %215 : vector<2x128xf32> to vector<2x128xbf16>
    %217 = arith.truncf %193 : vector<2x128xf32> to vector<2x128xbf16>
    %218 = tpu.concatenate %216, %217 in 1 : vector<2x128xbf16>, vector<2x128xbf16> -> vector<2x256xbf16>
    %cst_47 = arith.constant dense<0.000000e+00> : vector<2x1024xf32>
    %219 = tpu.matmul %218, %0, %cst_47 {dimension_numbers = #tpu.dot_dimension_numbers<[1], [0], [0], [1], [0, 0, 1, 1], [], []>} : vector<2x256xbf16>, vector<256x1024xbf16>, vector<2x1024xf32> -> vector<2x1024xf32>
    %220 = vector.extract_strided_slice %219 {offsets = [0, 0], sizes = [2, 512], strides = [1, 1]} : vector<2x1024xf32> to vector<2x512xf32>
    %221 = vector.extract_strided_slice %219 {offsets = [0, 512], sizes = [2, 512], strides = [1, 1]} : vector<2x1024xf32> to vector<2x512xf32>
    %222 = arith.addf %221, %3 : vector<2x512xf32>
    %223 = vector.extract_strided_slice %222 {offsets = [0, 0], sizes = [2, 384], strides = [1, 1]} : vector<2x512xf32> to vector<2x384xf32>
    %cst_48 = arith.constant 5.000000e-01 : f32
    %224 = vector.broadcast %cst_48 : f32 to vector<2x384xf32>
    %225 = arith.mulf %224, %223 : vector<2x384xf32>
    %226 = math.tanh %225 : vector<2x384xf32>
    %cst_49 = arith.constant 5.000000e-01 : f32
    %227 = vector.broadcast %cst_49 : f32 to vector<2x384xf32>
    %228 = arith.mulf %227, %226 : vector<2x384xf32>
    %cst_50 = arith.constant 5.000000e-01 : f32
    %229 = vector.broadcast %cst_50 : f32 to vector<2x384xf32>
    %230 = arith.addf %228, %229 : vector<2x384xf32>
    %231 = vector.extract_strided_slice %230 {offsets = [0, 0], sizes = [2, 128], strides = [1, 1]} : vector<2x384xf32> to vector<2x128xf32>
    %232 = vector.extract_strided_slice %230 {offsets = [0, 128], sizes = [2, 128], strides = [1, 1]} : vector<2x384xf32> to vector<2x128xf32>
    %233 = vector.extract_strided_slice %230 {offsets = [0, 256], sizes = [2, 128], strides = [1, 1]} : vector<2x384xf32> to vector<2x128xf32>
    %234 = vector.extract_strided_slice %222 {offsets = [0, 384], sizes = [2, 128], strides = [1, 1]} : vector<2x512xf32> to vector<2x128xf32>
    %235 = math.tanh %234 : vector<2x128xf32>
    %236 = arith.mulf %232, %191 : vector<2x128xf32>
    %237 = arith.mulf %231, %235 : vector<2x128xf32>
    %238 = arith.addf %236, %237 : vector<2x128xf32>
    %239 = math.tanh %238 : vector<2x128xf32>
    %240 = arith.mulf %233, %239 : vector<2x128xf32>
    %241 = arith.maximumf %194, %240 : vector<2x128xf32>
    %c5 = arith.constant 5 : index
    %c0_51 = arith.constant 0 : index
    %c0_52 = arith.constant 0 : index
    %242 = vector.load %arg1[%c5, %c0_51, %c0_52] : memref<8x2x512xf32, #tpu.memory_space<vmem>>, vector<1x2x512xf32>
    %243 = vector.shape_cast %242 : vector<1x2x512xf32> to vector<2x512xf32>
    %244 = arith.addf %243, %220 : vector<2x512xf32>
    %245 = vector.extract_strided_slice %244 {offsets = [0, 0], sizes = [2, 384], strides = [1, 1]} : vector<2x512xf32> to vector<2x384xf32>
    %cst_53 = arith.constant 5.000000e-01 : f32
    %246 = vector.broadcast %cst_53 : f32 to vector<2x384xf32>
    %247 = arith.mulf %246, %245 : vector<2x384xf32>
    %248 = math.tanh %247 : vector<2x384xf32>
    %cst_54 = arith.constant 5.000000e-01 : f32
    %249 = vector.broadcast %cst_54 : f32 to vector<2x384xf32>
    %250 = arith.mulf %249, %248 : vector<2x384xf32>
    %cst_55 = arith.constant 5.000000e-01 : f32
    %251 = vector.broadcast %cst_55 : f32 to vector<2x384xf32>
    %252 = arith.addf %250, %251 : vector<2x384xf32>
    %253 = vector.extract_strided_slice %252 {offsets = [0, 0], sizes = [2, 128], strides = [1, 1]} : vector<2x384xf32> to vector<2x128xf32>
    %254 = vector.extract_strided_slice %252 {offsets = [0, 128], sizes = [2, 128], strides = [1, 1]} : vector<2x384xf32> to vector<2x128xf32>
    %255 = vector.extract_strided_slice %252 {offsets = [0, 256], sizes = [2, 128], strides = [1, 1]} : vector<2x384xf32> to vector<2x128xf32>
    %256 = vector.extract_strided_slice %244 {offsets = [0, 384], sizes = [2, 128], strides = [1, 1]} : vector<2x512xf32> to vector<2x128xf32>
    %257 = math.tanh %256 : vector<2x128xf32>
    %258 = arith.mulf %254, %213 : vector<2x128xf32>
    %259 = arith.mulf %253, %257 : vector<2x128xf32>
    %260 = arith.addf %258, %259 : vector<2x128xf32>
    %261 = math.tanh %260 : vector<2x128xf32>
    %262 = arith.mulf %255, %261 : vector<2x128xf32>
    %263 = arith.truncf %262 : vector<2x128xf32> to vector<2x128xbf16>
    %264 = arith.truncf %240 : vector<2x128xf32> to vector<2x128xbf16>
    %265 = tpu.concatenate %263, %264 in 1 : vector<2x128xbf16>, vector<2x128xbf16> -> vector<2x256xbf16>
    %cst_56 = arith.constant dense<0.000000e+00> : vector<2x1024xf32>
    %266 = tpu.matmul %265, %0, %cst_56 {dimension_numbers = #tpu.dot_dimension_numbers<[1], [0], [0], [1], [0, 0, 1, 1], [], []>} : vector<2x256xbf16>, vector<256x1024xbf16>, vector<2x1024xf32> -> vector<2x1024xf32>
    %267 = vector.extract_strided_slice %266 {offsets = [0, 0], sizes = [2, 512], strides = [1, 1]} : vector<2x1024xf32> to vector<2x512xf32>
    %268 = vector.extract_strided_slice %266 {offsets = [0, 512], sizes = [2, 512], strides = [1, 1]} : vector<2x1024xf32> to vector<2x512xf32>
    %269 = arith.addf %268, %3 : vector<2x512xf32>
    %270 = vector.extract_strided_slice %269 {offsets = [0, 0], sizes = [2, 384], strides = [1, 1]} : vector<2x512xf32> to vector<2x384xf32>
    %cst_57 = arith.constant 5.000000e-01 : f32
    %271 = vector.broadcast %cst_57 : f32 to vector<2x384xf32>
    %272 = arith.mulf %271, %270 : vector<2x384xf32>
    %273 = math.tanh %272 : vector<2x384xf32>
    %cst_58 = arith.constant 5.000000e-01 : f32
    %274 = vector.broadcast %cst_58 : f32 to vector<2x384xf32>
    %275 = arith.mulf %274, %273 : vector<2x384xf32>
    %cst_59 = arith.constant 5.000000e-01 : f32
    %276 = vector.broadcast %cst_59 : f32 to vector<2x384xf32>
    %277 = arith.addf %275, %276 : vector<2x384xf32>
    %278 = vector.extract_strided_slice %277 {offsets = [0, 0], sizes = [2, 128], strides = [1, 1]} : vector<2x384xf32> to vector<2x128xf32>
    %279 = vector.extract_strided_slice %277 {offsets = [0, 128], sizes = [2, 128], strides = [1, 1]} : vector<2x384xf32> to vector<2x128xf32>
    %280 = vector.extract_strided_slice %277 {offsets = [0, 256], sizes = [2, 128], strides = [1, 1]} : vector<2x384xf32> to vector<2x128xf32>
    %281 = vector.extract_strided_slice %269 {offsets = [0, 384], sizes = [2, 128], strides = [1, 1]} : vector<2x512xf32> to vector<2x128xf32>
    %282 = math.tanh %281 : vector<2x128xf32>
    %283 = arith.mulf %279, %238 : vector<2x128xf32>
    %284 = arith.mulf %278, %282 : vector<2x128xf32>
    %285 = arith.addf %283, %284 : vector<2x128xf32>
    %286 = math.tanh %285 : vector<2x128xf32>
    %287 = arith.mulf %280, %286 : vector<2x128xf32>
    %288 = arith.maximumf %241, %287 : vector<2x128xf32>
    %c6 = arith.constant 6 : index
    %c0_60 = arith.constant 0 : index
    %c0_61 = arith.constant 0 : index
    %289 = vector.load %arg1[%c6, %c0_60, %c0_61] : memref<8x2x512xf32, #tpu.memory_space<vmem>>, vector<1x2x512xf32>
    %290 = vector.shape_cast %289 : vector<1x2x512xf32> to vector<2x512xf32>
    %291 = arith.addf %290, %267 : vector<2x512xf32>
    %292 = vector.extract_strided_slice %291 {offsets = [0, 0], sizes = [2, 384], strides = [1, 1]} : vector<2x512xf32> to vector<2x384xf32>
    %cst_62 = arith.constant 5.000000e-01 : f32
    %293 = vector.broadcast %cst_62 : f32 to vector<2x384xf32>
    %294 = arith.mulf %293, %292 : vector<2x384xf32>
    %295 = math.tanh %294 : vector<2x384xf32>
    %cst_63 = arith.constant 5.000000e-01 : f32
    %296 = vector.broadcast %cst_63 : f32 to vector<2x384xf32>
    %297 = arith.mulf %296, %295 : vector<2x384xf32>
    %cst_64 = arith.constant 5.000000e-01 : f32
    %298 = vector.broadcast %cst_64 : f32 to vector<2x384xf32>
    %299 = arith.addf %297, %298 : vector<2x384xf32>
    %300 = vector.extract_strided_slice %299 {offsets = [0, 0], sizes = [2, 128], strides = [1, 1]} : vector<2x384xf32> to vector<2x128xf32>
    %301 = vector.extract_strided_slice %299 {offsets = [0, 128], sizes = [2, 128], strides = [1, 1]} : vector<2x384xf32> to vector<2x128xf32>
    %302 = vector.extract_strided_slice %299 {offsets = [0, 256], sizes = [2, 128], strides = [1, 1]} : vector<2x384xf32> to vector<2x128xf32>
    %303 = vector.extract_strided_slice %291 {offsets = [0, 384], sizes = [2, 128], strides = [1, 1]} : vector<2x512xf32> to vector<2x128xf32>
    %304 = math.tanh %303 : vector<2x128xf32>
    %305 = arith.mulf %301, %260 : vector<2x128xf32>
    %306 = arith.mulf %300, %304 : vector<2x128xf32>
    %307 = arith.addf %305, %306 : vector<2x128xf32>
    %308 = math.tanh %307 : vector<2x128xf32>
    %309 = arith.mulf %302, %308 : vector<2x128xf32>
    %310 = arith.truncf %309 : vector<2x128xf32> to vector<2x128xbf16>
    %311 = arith.truncf %287 : vector<2x128xf32> to vector<2x128xbf16>
    %312 = tpu.concatenate %310, %311 in 1 : vector<2x128xbf16>, vector<2x128xbf16> -> vector<2x256xbf16>
    %cst_65 = arith.constant dense<0.000000e+00> : vector<2x1024xf32>
    %313 = tpu.matmul %312, %0, %cst_65 {dimension_numbers = #tpu.dot_dimension_numbers<[1], [0], [0], [1], [0, 0, 1, 1], [], []>} : vector<2x256xbf16>, vector<256x1024xbf16>, vector<2x1024xf32> -> vector<2x1024xf32>
    %314 = vector.extract_strided_slice %313 {offsets = [0, 0], sizes = [2, 512], strides = [1, 1]} : vector<2x1024xf32> to vector<2x512xf32>
    %315 = vector.extract_strided_slice %313 {offsets = [0, 512], sizes = [2, 512], strides = [1, 1]} : vector<2x1024xf32> to vector<2x512xf32>
    %316 = arith.addf %315, %3 : vector<2x512xf32>
    %317 = vector.extract_strided_slice %316 {offsets = [0, 0], sizes = [2, 384], strides = [1, 1]} : vector<2x512xf32> to vector<2x384xf32>
    %cst_66 = arith.constant 5.000000e-01 : f32
    %318 = vector.broadcast %cst_66 : f32 to vector<2x384xf32>
    %319 = arith.mulf %318, %317 : vector<2x384xf32>
    %320 = math.tanh %319 : vector<2x384xf32>
    %cst_67 = arith.constant 5.000000e-01 : f32
    %321 = vector.broadcast %cst_67 : f32 to vector<2x384xf32>
    %322 = arith.mulf %321, %320 : vector<2x384xf32>
    %cst_68 = arith.constant 5.000000e-01 : f32
    %323 = vector.broadcast %cst_68 : f32 to vector<2x384xf32>
    %324 = arith.addf %322, %323 : vector<2x384xf32>
    %325 = vector.extract_strided_slice %324 {offsets = [0, 0], sizes = [2, 128], strides = [1, 1]} : vector<2x384xf32> to vector<2x128xf32>
    %326 = vector.extract_strided_slice %324 {offsets = [0, 128], sizes = [2, 128], strides = [1, 1]} : vector<2x384xf32> to vector<2x128xf32>
    %327 = vector.extract_strided_slice %324 {offsets = [0, 256], sizes = [2, 128], strides = [1, 1]} : vector<2x384xf32> to vector<2x128xf32>
    %328 = vector.extract_strided_slice %316 {offsets = [0, 384], sizes = [2, 128], strides = [1, 1]} : vector<2x512xf32> to vector<2x128xf32>
    %329 = math.tanh %328 : vector<2x128xf32>
    %330 = arith.mulf %326, %285 : vector<2x128xf32>
    %331 = arith.mulf %325, %329 : vector<2x128xf32>
    %332 = arith.addf %330, %331 : vector<2x128xf32>
    %333 = math.tanh %332 : vector<2x128xf32>
    %334 = arith.mulf %327, %333 : vector<2x128xf32>
    %335 = arith.maximumf %288, %334 : vector<2x128xf32>
    %c7 = arith.constant 7 : index
    %c0_69 = arith.constant 0 : index
    %c0_70 = arith.constant 0 : index
    %336 = vector.load %arg1[%c7, %c0_69, %c0_70] : memref<8x2x512xf32, #tpu.memory_space<vmem>>, vector<1x2x512xf32>
    %337 = vector.shape_cast %336 : vector<1x2x512xf32> to vector<2x512xf32>
    %338 = arith.addf %337, %314 : vector<2x512xf32>
    %339 = vector.extract_strided_slice %338 {offsets = [0, 0], sizes = [2, 384], strides = [1, 1]} : vector<2x512xf32> to vector<2x384xf32>
    %cst_71 = arith.constant 5.000000e-01 : f32
    %340 = vector.broadcast %cst_71 : f32 to vector<2x384xf32>
    %341 = arith.mulf %340, %339 : vector<2x384xf32>
    %342 = math.tanh %341 : vector<2x384xf32>
    %cst_72 = arith.constant 5.000000e-01 : f32
    %343 = vector.broadcast %cst_72 : f32 to vector<2x384xf32>
    %344 = arith.mulf %343, %342 : vector<2x384xf32>
    %cst_73 = arith.constant 5.000000e-01 : f32
    %345 = vector.broadcast %cst_73 : f32 to vector<2x384xf32>
    %346 = arith.addf %344, %345 : vector<2x384xf32>
    %347 = vector.extract_strided_slice %346 {offsets = [0, 0], sizes = [2, 128], strides = [1, 1]} : vector<2x384xf32> to vector<2x128xf32>
    %348 = vector.extract_strided_slice %346 {offsets = [0, 128], sizes = [2, 128], strides = [1, 1]} : vector<2x384xf32> to vector<2x128xf32>
    %349 = vector.extract_strided_slice %346 {offsets = [0, 256], sizes = [2, 128], strides = [1, 1]} : vector<2x384xf32> to vector<2x128xf32>
    %350 = vector.extract_strided_slice %338 {offsets = [0, 384], sizes = [2, 128], strides = [1, 1]} : vector<2x512xf32> to vector<2x128xf32>
    %351 = math.tanh %350 : vector<2x128xf32>
    %352 = arith.mulf %348, %307 : vector<2x128xf32>
    %353 = arith.mulf %347, %351 : vector<2x128xf32>
    %354 = arith.addf %352, %353 : vector<2x128xf32>
    %355 = math.tanh %354 : vector<2x128xf32>
    %356 = arith.mulf %349, %355 : vector<2x128xf32>
    %357 = arith.truncf %356 : vector<2x128xf32> to vector<2x128xbf16>
    %358 = arith.truncf %334 : vector<2x128xf32> to vector<2x128xbf16>
    %359 = tpu.concatenate %357, %358 in 1 : vector<2x128xbf16>, vector<2x128xbf16> -> vector<2x256xbf16>
    %cst_74 = arith.constant dense<0.000000e+00> : vector<2x1024xf32>
    %360 = tpu.matmul %359, %0, %cst_74 {dimension_numbers = #tpu.dot_dimension_numbers<[1], [0], [0], [1], [0, 0, 1, 1], [], []>} : vector<2x256xbf16>, vector<256x1024xbf16>, vector<2x1024xf32> -> vector<2x1024xf32>
    %361 = vector.extract_strided_slice %360 {offsets = [0, 512], sizes = [2, 512], strides = [1, 1]} : vector<2x1024xf32> to vector<2x512xf32>
    %362 = arith.addf %361, %3 : vector<2x512xf32>
    %363 = vector.extract_strided_slice %362 {offsets = [0, 0], sizes = [2, 384], strides = [1, 1]} : vector<2x512xf32> to vector<2x384xf32>
    %cst_75 = arith.constant 5.000000e-01 : f32
    %364 = vector.broadcast %cst_75 : f32 to vector<2x384xf32>
    %365 = arith.mulf %364, %363 : vector<2x384xf32>
    %366 = math.tanh %365 : vector<2x384xf32>
    %cst_76 = arith.constant 5.000000e-01 : f32
    %367 = vector.broadcast %cst_76 : f32 to vector<2x384xf32>
    %368 = arith.mulf %367, %366 : vector<2x384xf32>
    %cst_77 = arith.constant 5.000000e-01 : f32
    %369 = vector.broadcast %cst_77 : f32 to vector<2x384xf32>
    %370 = arith.addf %368, %369 : vector<2x384xf32>
    %371 = vector.extract_strided_slice %370 {offsets = [0, 0], sizes = [2, 128], strides = [1, 1]} : vector<2x384xf32> to vector<2x128xf32>
    %372 = vector.extract_strided_slice %370 {offsets = [0, 128], sizes = [2, 128], strides = [1, 1]} : vector<2x384xf32> to vector<2x128xf32>
    %373 = vector.extract_strided_slice %370 {offsets = [0, 256], sizes = [2, 128], strides = [1, 1]} : vector<2x384xf32> to vector<2x128xf32>
    %374 = vector.extract_strided_slice %362 {offsets = [0, 384], sizes = [2, 128], strides = [1, 1]} : vector<2x512xf32> to vector<2x128xf32>
    %375 = math.tanh %374 : vector<2x128xf32>
    %376 = arith.mulf %372, %332 : vector<2x128xf32>
    %377 = arith.mulf %371, %375 : vector<2x128xf32>
    %378 = arith.addf %376, %377 : vector<2x128xf32>
    %379 = math.tanh %378 : vector<2x128xf32>
    %380 = arith.mulf %373, %379 : vector<2x128xf32>
    %381 = arith.maximumf %335, %380 : vector<2x128xf32>
    %c0_78 = arith.constant 0 : index
    %c0_79 = arith.constant 0 : index
    %382 = vector.load %arg4[%c0_78, %c0_79] : memref<2x128xf32, #tpu.memory_space<vmem>>, vector<2x128xf32>
    tpu.vector_store %arg4[%c0_78, %c0_79], %381 {strides = array<i32>} : memref<2x128xf32, #tpu.memory_space<vmem>>, vector<2x128xf32>,
    return
  }
  func.func @transform_0(%arg0: i32) -> (i32, i32, i32) {
    %c0_i32 = arith.constant 0 : i32
    %c0_i32_0 = arith.constant 0 : i32
    %c0_i32_1 = arith.constant 0 : i32
    return %c0_i32, %arg0, %c0_i32_0 : i32, i32, i32
  }
  func.func @transform_1(%arg0: i32) -> (i32, i32) {
    %c0_i32 = arith.constant 0 : i32
    %c0_i32_0 = arith.constant 0 : i32
    %c0_i32_1 = arith.constant 0 : i32
    return %c0_i32, %c0_i32_0 : i32, i32
  }
  func.func @transform_2(%arg0: i32) -> (i32, i32) {
    %c0_i32 = arith.constant 0 : i32
    %c0_i32_0 = arith.constant 0 : i32
    %c0_i32_1 = arith.constant 0 : i32
    return %c0_i32, %c0_i32_0 : i32, i32
  }
  func.func @transform_3(%arg0: i32) -> (i32, i32) {
    %c0_i32 = arith.constant 0 : i32
    %c0_i32_0 = arith.constant 0 : i32
    return %arg0, %c0_i32 : i32, i32
  }
}

</mosaic_0001>

<llo_original>
// kernel: tpu_custom_call.1
$region0: #{tpu_custom_call.1}
  #allocation0 [shape = 'u32[]', space=smem, size = 0x4, offset = 0x4, fixed_abs, tag = 'smem constant byte address 0x4 - core index']
  #allocation1 [shape = 'u32[144,128]{1,0:T(1,128)}', space=vmem, size = 0x12000, scoped, tag = 'internal scratch']
  %s0 = inlined_call_operand.hbm [shape: f32[8,2,512], index: 0, kind: input, shape index: {}]
  %s1 = inlined_call_operand.hbm [shape: bf16[256,1024], index: 1, kind: input, shape index: {}]
  %s2 = inlined_call_operand.vmem [shape: f32[1,512], index: 2, kind: input, shape index: {}]
  %s3 = inlined_call_operand.hbm [shape: f32[2,128], index: 3, kind: output, shape index: {}]
  %s4 = sld [smem:[#allocation0]]
  $region30: #{tpu_custom_call.1} parent=0
    _
  %s6 = ssub.s32 1, %s4
  %s7 = scalar_select 0, %s6, %s4
  $region1: #{tpu_custom_call.1} parent=0
    #allocation2 [shape = 'u8[32768]{0}', space=vmem, size = 0x8000, scoped, tag = 'input window, operand 0, single buffered']
    #allocation3 [shape = 's32[1]{0}', space=sflag, size = 0x4, scoped, tag = 'scoped memory for tpu_custom_call.1']
    #allocation4 [shape = 's32[1]{0}', space=sflag, size = 0x4, scoped, tag = 'scoped memory for tpu_custom_call.1']
    #allocation5 [shape = 'u8[524288]{0}', space=vmem, size = 0x80000, scoped, tag = 'input window, operand 1, single buffered']
    #allocation6 [shape = 's32[1]{0}', space=sflag, size = 0x4, scoped, tag = 'scoped memory for tpu_custom_call.1']
    #allocation7 [shape = 'u8[1024]{0}', space=vmem, size = 0x400, scoped, tag = 'output window, operand 0, single buffered']
    %8 = vsyncpa [#allocation3], 0
    %9 = vsyncpa [#allocation6], 0
    %10 = vsyncpa [#allocation4], 0
    // Predicated region
    $region2: #{tpu_custom_call.1} parent=1 // pred_check
      _
    $region3: #{tpu_custom_call.1} parent=1 // pred_check_branch
      %12 = sbr.rel (0) target = $region5
    $region4: #{tpu_custom_call.1} parent=1 // pred_region
      %s14 = ssub.s32 1024, 1024
      %15 = vsyncadd [#allocation3], %s14
      %s16 = sshll.u32 [#allocation2], 4
      %s17 = int_to_ptr.vmem [resolvable:$true] %s16
      %22 = dma.hbm_to_vmem [thread:$0]  %s0, 1024, %s17, [#allocation3], 128, 128, 8
    $region5: #{tpu_custom_call.1} parent=1 // pred_fallthru
      _
    // Predicated region
    $region6: #{tpu_custom_call.1} parent=1 // pred_check
      _
    $region7: #{tpu_custom_call.1} parent=1 // pred_check_branch
      %24 = sbr.rel (0) target = $region9
    $region8: #{tpu_custom_call.1} parent=1 // pred_region
      %s26 = ssub.s32 16384, 16384
      %27 = vsyncadd [#allocation6], %s26
      %s28 = sshll.u32 [#allocation5], 4
      %s29 = int_to_ptr.vmem [resolvable:$true] %s28
      %34 = dma.hbm_to_vmem [thread:$0]  %s1, 16384, %s29, [#allocation6], 512, 512, 32
    $region9: #{tpu_custom_call.1} parent=1 // pred_fallthru
      _
    // Predicated region
    $region10: #{tpu_custom_call.1} parent=1 // pred_check
      _
    $region11: #{tpu_custom_call.1} parent=1 // pred_check_branch
      %36 = sbr.rel (0) target = $region13
    $region12: #{tpu_custom_call.1} parent=1 // pred_region
      _
    $region13: #{tpu_custom_call.1} parent=1 // pred_fallthru
      _
    // Predicated region
    $region14: #{tpu_custom_call.1} parent=1 // pred_check
      _
    $region15: #{tpu_custom_call.1} parent=1 // pred_check_branch
      %38 = sbr.rel (0) target = $region17
    $region16: #{tpu_custom_call.1} parent=1 // pred_region
      %39 = dma.done [#allocation3], 1024
    $region17: #{tpu_custom_call.1} parent=1 // pred_fallthru
      _
    // Predicated region
    $region18: #{tpu_custom_call.1} parent=1 // pred_check
      _
    $region19: #{tpu_custom_call.1} parent=1 // pred_check_branch
      %41 = sbr.rel (0) target = $region21
    $region20: #{tpu_custom_call.1} parent=1 // pred_region
      %42 = dma.done [#allocation6], 16384
    $region21: #{tpu_custom_call.1} parent=1 // pred_fallthru
      _
    %v44 = vld [vmem:[#allocation5] sm:$0xff]
    %v45 = vld [vmem:[#allocation5 + $0x8] sm:$0xff]
    %v46 = vld [vmem:[#allocation5 + $0x10] sm:$0xff]
    %v47 = vld [vmem:[#allocation5 + $0x18] sm:$0xff]
    %v48 = vld [vmem:[#allocation5 + $0x20] sm:$0xff]
    %v49 = vld [vmem:[#allocation5 + $0x28] sm:$0xff]
    %v50 = vld [vmem:[#allocation5 + $0x30] sm:$0xff]
    %v51 = vld [vmem:[#allocation5 + $0x38] sm:$0xff]
    %v52 = vld [vmem:[#allocation5 + $0x40] sm:$0xff]
    %v53 = vld [vmem:[#allocation5 + $0x48] sm:$0xff]
    %v54 = vld [vmem:[#allocation5 + $0x50] sm:$0xff]
    %v55 = vld [vmem:[#allocation5 + $0x58] sm:$0xff]
    %v56 = vld [vmem:[#allocation5 + $0x60] sm:$0xff]
    %v57 = vld [vmem:[#allocation5 + $0x68] sm:$0xff]
    %v58 = vld [vmem:[#allocation5 + $0x70] sm:$0xff]
    %v59 = vld [vmem:[#allocation5 + $0x78] sm:$0xff]
    %v60 = vld [vmem:[#allocation5 + $0x80] sm:$0xff]
    %v61 = vld [vmem:[#allocation5 + $0x88] sm:$0xff]
    %v62 = vld [vmem:[#allocation5 + $0x90] sm:$0xff]
    %v63 = vld [vmem:[#allocation5 + $0x98] sm:$0xff]
    %v64 = vld [vmem:[#allocation5 + $0xa0] sm:$0xff]
    %v65 = vld [vmem:[#allocation5 + $0xa8] sm:$0xff]
    %v66 = vld [vmem:[#allocation5 + $0xb0] sm:$0xff]
    %v67 = vld [vmem:[#allocation5 + $0xb8] sm:$0xff]
    %v68 = vld [vmem:[#allocation5 + $0xc0] sm:$0xff]
    %v69 = vld [vmem:[#allocation5 + $0xc8] sm:$0xff]
    %v70 = vld [vmem:[#allocation5 + $0xd0] sm:$0xff]
    %v71 = vld [vmem:[#allocation5 + $0xd8] sm:$0xff]
    %v72 = vld [vmem:[#allocation5 + $0xe0] sm:$0xff]
    %v73 = vld [vmem:[#allocation5 + $0xe8] sm:$0xff]
    %v74 = vld [vmem:[#allocation5 + $0xf0] sm:$0xff]
    %v75 = vld [vmem:[#allocation5 + $0xf8] sm:$0xff]
    %v76 = vld [vmem:[#allocation5 + $0x100] sm:$0xff]
    %v77 = vld [vmem:[#allocation5 + $0x108] sm:$0xff]
    %v78 = vld [vmem:[#allocation5 + $0x110] sm:$0xff]
    %v79 = vld [vmem:[#allocation5 + $0x118] sm:$0xff]
    %v80 = vld [vmem:[#allocation5 + $0x120] sm:$0xff]
    %v81 = vld [vmem:[#allocation5 + $0x128] sm:$0xff]
    %v82 = vld [vmem:[#allocation5 + $0x130] sm:$0xff]
    %v83 = vld [vmem:[#allocation5 + $0x138] sm:$0xff]
    %v84 = vld [vmem:[#allocation5 + $0x140] sm:$0xff]
    %v85 = vld [vmem:[#allocation5 + $0x148] sm:$0xff]
    %v86 = vld [vmem:[#allocation5 + $0x150] sm:$0xff]
    %v87 = vld [vmem:[#allocation5 + $0x158] sm:$0xff]
    %v88 = vld [vmem:[#allocation5 + $0x160] sm:$0xff]
    %v89 = vld [vmem:[#allocation5 + $0x168] sm:$0xff]
    %v90 = vld [vmem:[#allocation5 + $0x170] sm:$0xff]
    %v91 = vld [vmem:[#allocation5 + $0x178] sm:$0xff]
    %v92 = vld [vmem:[#allocation5 + $0x180] sm:$0xff]
    %v93 = vld [vmem:[#allocation5 + $0x188] sm:$0xff]
    %v94 = vld [vmem:[#allocation5 + $0x190] sm:$0xff]
    %v95 = vld [vmem:[#allocation5 + $0x198] sm:$0xff]
    %v96 = vld [vmem:[#allocation5 + $0x1a0] sm:$0xff]
    %v97 = vld [vmem:[#allocation5 + $0x1a8] sm:$0xff]
    %v98 = vld [vmem:[#allocation5 + $0x1b0] sm:$0xff]
    %v99 = vld [vmem:[#allocation5 + $0x1b8] sm:$0xff]
    %v100 = vld [vmem:[#allocation5 + $0x1c0] sm:$0xff]
    %v101 = vld [vmem:[#allocation5 + $0x1c8] sm:$0xff]
    %v102 = vld [vmem:[#allocation5 + $0x1d0] sm:$0xff]
    %v103 = vld [vmem:[#allocation5 + $0x1d8] sm:$0xff]
    %v104 = vld [vmem:[#allocation5 + $0x1e0] sm:$0xff]
    %v105 = vld [vmem:[#allocation5 + $0x1e8] sm:$0xff]
    %v106 = vld [vmem:[#allocation5 + $0x1f0] sm:$0xff]
    %v107 = vld [vmem:[#allocation5 + $0x1f8] sm:$0xff]
    %v108 = vld [vmem:[#allocation5 + $0x200] sm:$0xff]
    %v109 = vld [vmem:[#allocation5 + $0x208] sm:$0xff]
    %v110 = vld [vmem:[#allocation5 + $0x210] sm:$0xff]
    %v111 = vld [vmem:[#allocation5 + $0x218] sm:$0xff]
    %v112 = vld [vmem:[#allocation5 + $0x220] sm:$0xff]
    %v113 = vld [vmem:[#allocation5 + $0x228] sm:$0xff]
    %v114 = vld [vmem:[#allocation5 + $0x230] sm:$0xff]
    %v115 = vld [vmem:[#allocation5 + $0x238] sm:$0xff]
    %v116 = vld [vmem:[#allocation5 + $0x240] sm:$0xff]
    %v117 = vld [vmem:[#allocation5 + $0x248] sm:$0xff]
    %v118 = vld [vmem:[#allocation5 + $0x250] sm:$0xff]
    %v119 = vld [vmem:[#allocation5 + $0x258] sm:$0xff]
    %v120 = vld [vmem:[#allocation5 + $0x260] sm:$0xff]
    %v121 = vld [vmem:[#allocation5 + $0x268] sm:$0xff]
    %v122 = vld [vmem:[#allocation5 + $0x270] sm:$0xff]
    %v123 = vld [vmem:[#allocation5 + $0x278] sm:$0xff]
    %v124 = vld [vmem:[#allocation5 + $0x280] sm:$0xff]
    %v125 = vld [vmem:[#allocation5 + $0x288] sm:$0xff]
    %v126 = vld [vmem:[#allocation5 + $0x290] sm:$0xff]
    %v127 = vld [vmem:[#allocation5 + $0x298] sm:$0xff]
    %v128 = vld [vmem:[#allocation5 + $0x2a0] sm:$0xff]
    %v129 = vld [vmem:[#allocation5 + $0x2a8] sm:$0xff]
    %v130 = vld [vmem:[#allocation5 + $0x2b0] sm:$0xff]
    %v131 = vld [vmem:[#allocation5 + $0x2b8] sm:$0xff]
    %v132 = vld [vmem:[#allocation5 + $0x2c0] sm:$0xff]
    %v133 = vld [vmem:[#allocation5 + $0x2c8] sm:$0xff]
    %v134 = vld [vmem:[#allocation5 + $0x2d0] sm:$0xff]
    %v135 = vld [vmem:[#allocation5 + $0x2d8] sm:$0xff]
    %v136 = vld [vmem:[#allocation5 + $0x2e0] sm:$0xff]
    %v137 = vld [vmem:[#allocation5 + $0x2e8] sm:$0xff]
    %v138 = vld [vmem:[#allocation5 + $0x2f0] sm:$0xff]
    %v139 = vld [vmem:[#allocation5 + $0x2f8] sm:$0xff]
    %v140 = vld [vmem:[#allocation5 + $0x300] sm:$0xff]
    %v141 = vld [vmem:[#allocation5 + $0x308] sm:$0xff]
    %v142 = vld [vmem:[#allocation5 + $0x310] sm:$0xff]
    %v143 = vld [vmem:[#allocation5 + $0x318] sm:$0xff]
    %v144 = vld [vmem:[#allocation5 + $0x320] sm:$0xff]
    %v145 = vld [vmem:[#allocation5 + $0x328] sm:$0xff]
    %v146 = vld [vmem:[#allocation5 + $0x330] sm:$0xff]
    %v147 = vld [vmem:[#allocation5 + $0x338] sm:$0xff]
    %v148 = vld [vmem:[#allocation5 + $0x340] sm:$0xff]
    %v149 = vld [vmem:[#allocation5 + $0x348] sm:$0xff]
    %v150 = vld [vmem:[#allocation5 + $0x350] sm:$0xff]
    %v151 = vld [vmem:[#allocation5 + $0x358] sm:$0xff]
    %v152 = vld [vmem:[#allocation5 + $0x360] sm:$0xff]
    %v153 = vld [vmem:[#allocation5 + $0x368] sm:$0xff]
    %v154 = vld [vmem:[#allocation5 + $0x370] sm:$0xff]
    %v155 = vld [vmem:[#allocation5 + $0x378] sm:$0xff]
    %v156 = vld [vmem:[#allocation5 + $0x380] sm:$0xff]
    %v157 = vld [vmem:[#allocation5 + $0x388] sm:$0xff]
    %v158 = vld [vmem:[#allocation5 + $0x390] sm:$0xff]
    %v159 = vld [vmem:[#allocation5 + $0x398] sm:$0xff]
    %v160 = vld [vmem:[#allocation5 + $0x3a0] sm:$0xff]
    %v161 = vld [vmem:[#allocation5 + $0x3a8] sm:$0xff]
    %v162 = vld [vmem:[#allocation5 + $0x3b0] sm:$0xff]
    %v163 = vld [vmem:[#allocation5 + $0x3b8] sm:$0xff]
    %v164 = vld [vmem:[#allocation5 + $0x3c0] sm:$0xff]
    %v165 = vld [vmem:[#allocation5 + $0x3c8] sm:$0xff]
    %v166 = vld [vmem:[#allocation5 + $0x3d0] sm:$0xff]
    %v167 = vld [vmem:[#allocation5 + $0x3d8] sm:$0xff]
    %v168 = vld [vmem:[#allocation5 + $0x3e0] sm:$0xff]
    %v169 = vld [vmem:[#allocation5 + $0x3e8] sm:$0xff]
    %v170 = vld [vmem:[#allocation5 + $0x3f0] sm:$0xff]
    %v171 = vld [vmem:[#allocation5 + $0x3f8] sm:$0xff]
    %v172 = vld [vmem:[%s2] sm:$0xf]
    %v174 = vlaneseq
    %v175 = vshrl.u32 %v174, 7
    %v176 = vsub.s32 0, %v175
    %v177 = vrot.slane %v172, %v176
    %v178 = vlaneseq
    %v179 = vshrl.u32 %v178, 7
    %v180 = vsub.s32 1, %v179
    %v181 = vrot.slane %v172, %v180
    %v182 = vlaneseq
    %v183 = vshrl.u32 %v182, 7
    %v184 = vsub.s32 2, %v183
    %v185 = vrot.slane %v172, %v184
    %v186 = vlaneseq
    %v187 = vshrl.u32 %v186, 7
    %v188 = vsub.s32 3, %v187
    %v189 = vrot.slane %v172, %v188
    %v194 = vld [vmem:[#allocation2] sm:$0xff]
    %v195 = vadd.f32 %v194, 0.0
    %v196 = vmul.f32 %v195, 0.5
    %v197 = vtanh.pop %v196
    %v198 = vmul.f32 %v197, 0.5
    %v199 = vadd.f32 %v198, 0.5
    %v201 = vrot.slane %v195, 6
    %v203 = vtanh.pop %v201
    %v205 = vrot.slane %v199, 2
    %v207 = vmul.f32 %v205, 0.0
    %v208 = vmul.f32 %v199, %v203
    %v209 = vadd.f32 %v207, %v208
    %v210 = vtanh.pop %v209
    %v211 = vrot.slane %v199, 4
    %v213 = vmul.f32 %v211, %v210
    %v214 = vpack.c.bf16 %v213, %v213
    %v343 = vunpack.c.l.b16 %v44
    %v344 = vunpack.c.h.b16 %v44
    %v345 = vunpack.c.l.b16 %v45
    %v346 = vunpack.c.h.b16 %v45
    %v347 = vunpack.c.l.b16 %v46
    %v348 = vunpack.c.h.b16 %v46
    %v349 = vunpack.c.l.b16 %v47
    %v350 = vunpack.c.h.b16 %v47
    %v351 = vunpack.c.l.b16 %v48
    %v352 = vunpack.c.h.b16 %v48
    %v353 = vunpack.c.l.b16 %v49
    %v354 = vunpack.c.h.b16 %v49
    %v355 = vunpack.c.l.b16 %v50
    %v356 = vunpack.c.h.b16 %v50
    %v357 = vunpack.c.l.b16 %v51
    %v358 = vunpack.c.h.b16 %v51
    %v359 = vunpack.c.l.b16 %v52
    %v360 = vunpack.c.h.b16 %v52
    %v361 = vunpack.c.l.b16 %v53
    %v362 = vunpack.c.h.b16 %v53
    %v363 = vunpack.c.l.b16 %v54
    %v364 = vunpack.c.h.b16 %v54
    %v365 = vunpack.c.l.b16 %v55
    %v366 = vunpack.c.h.b16 %v55
    %v367 = vunpack.c.l.b16 %v56
    %v368 = vunpack.c.h.b16 %v56
    %v369 = vunpack.c.l.b16 %v57
    %v370 = vunpack.c.h.b16 %v57
    %v371 = vunpack.c.l.b16 %v58
    %v372 = vunpack.c.h.b16 %v58
    %v373 = vunpack.c.l.b16 %v59
    %v374 = vunpack.c.h.b16 %v59
    %v375 = vunpack.c.l.b16 %v60
    %v376 = vunpack.c.h.b16 %v60
    %v377 = vunpack.c.l.b16 %v61
    %v378 = vunpack.c.h.b16 %v61
    %v379 = vunpack.c.l.b16 %v62
    %v380 = vunpack.c.h.b16 %v62
    %v381 = vunpack.c.l.b16 %v63
    %v382 = vunpack.c.h.b16 %v63
    %v383 = vunpack.c.l.b16 %v64
    %v384 = vunpack.c.h.b16 %v64
    %v385 = vunpack.c.l.b16 %v65
    %v386 = vunpack.c.h.b16 %v65
    %v387 = vunpack.c.l.b16 %v66
    %v388 = vunpack.c.h.b16 %v66
    %v389 = vunpack.c.l.b16 %v67
    %v390 = vunpack.c.h.b16 %v67
    %v391 = vunpack.c.l.b16 %v68
    %v392 = vunpack.c.h.b16 %v68
    %v393 = vunpack.c.l.b16 %v69
    %v394 = vunpack.c.h.b16 %v69
    %v395 = vunpack.c.l.b16 %v70
    %v396 = vunpack.c.h.b16 %v70
    %v397 = vunpack.c.l.b16 %v71
    %v398 = vunpack.c.h.b16 %v71
    %v399 = vunpack.c.l.b16 %v72
    %v400 = vunpack.c.h.b16 %v72
    %v401 = vunpack.c.l.b16 %v73
    %v402 = vunpack.c.h.b16 %v73
    %v403 = vunpack.c.l.b16 %v74
    %v404 = vunpack.c.h.b16 %v74
    %v405 = vunpack.c.l.b16 %v75
    %v406 = vunpack.c.h.b16 %v75
    %v407 = vunpack.c.l.b16 %v76
    %v408 = vunpack.c.h.b16 %v76
    %v409 = vunpack.c.l.b16 %v77
    %v410 = vunpack.c.h.b16 %v77
    %v411 = vunpack.c.l.b16 %v78
    %v412 = vunpack.c.h.b16 %v78
    %v413 = vunpack.c.l.b16 %v79
    %v414 = vunpack.c.h.b16 %v79
    %v415 = vunpack.c.l.b16 %v80
    %v416 = vunpack.c.h.b16 %v80
    %v417 = vunpack.c.l.b16 %v81
    %v418 = vunpack.c.h.b16 %v81
    %v419 = vunpack.c.l.b16 %v82
    %v420 = vunpack.c.h.b16 %v82
    %v421 = vunpack.c.l.b16 %v83
    %v422 = vunpack.c.h.b16 %v83
    %v423 = vunpack.c.l.b16 %v84
    %v424 = vunpack.c.h.b16 %v84
    %v425 = vunpack.c.l.b16 %v85
    %v426 = vunpack.c.h.b16 %v85
    %v427 = vunpack.c.l.b16 %v86
    %v428 = vunpack.c.h.b16 %v86
    %v429 = vunpack.c.l.b16 %v87
    %v430 = vunpack.c.h.b16 %v87
    %v431 = vunpack.c.l.b16 %v88
    %v432 = vunpack.c.h.b16 %v88
    %v433 = vunpack.c.l.b16 %v89
    %v434 = vunpack.c.h.b16 %v89
    %v435 = vunpack.c.l.b16 %v90
    %v436 = vunpack.c.h.b16 %v90
    %v437 = vunpack.c.l.b16 %v91
    %v438 = vunpack.c.h.b16 %v91
    %v439 = vunpack.c.l.b16 %v92
    %v440 = vunpack.c.h.b16 %v92
    %v441 = vunpack.c.l.b16 %v93
    %v442 = vunpack.c.h.b16 %v93
    %v443 = vunpack.c.l.b16 %v94
    %v444 = vunpack.c.h.b16 %v94
    %v445 = vunpack.c.l.b16 %v95
    %v446 = vunpack.c.h.b16 %v95
    %v447 = vunpack.c.l.b16 %v96
    %v448 = vunpack.c.h.b16 %v96
    %v449 = vunpack.c.l.b16 %v97
    %v450 = vunpack.c.h.b16 %v97
    %v451 = vunpack.c.l.b16 %v98
    %v452 = vunpack.c.h.b16 %v98
    %v453 = vunpack.c.l.b16 %v99
    %v454 = vunpack.c.h.b16 %v99
    %v455 = vunpack.c.l.b16 %v100
    %v456 = vunpack.c.h.b16 %v100
    %v457 = vunpack.c.l.b16 %v101
    %v458 = vunpack.c.h.b16 %v101
    %v459 = vunpack.c.l.b16 %v102
    %v460 = vunpack.c.h.b16 %v102
    %v461 = vunpack.c.l.b16 %v103
    %v462 = vunpack.c.h.b16 %v103
    %v463 = vunpack.c.l.b16 %v104
    %v464 = vunpack.c.h.b16 %v104
    %v465 = vunpack.c.l.b16 %v105
    %v466 = vunpack.c.h.b16 %v105
    %v467 = vunpack.c.l.b16 %v106
    %v468 = vunpack.c.h.b16 %v106
    %v469 = vunpack.c.l.b16 %v107
    %v470 = vunpack.c.h.b16 %v107
    %v471 = vunpack.c.l.b16 %v108
    %v472 = vunpack.c.h.b16 %v108
    %v473 = vunpack.c.l.b16 %v109
    %v474 = vunpack.c.h.b16 %v109
    %v475 = vunpack.c.l.b16 %v110
    %v476 = vunpack.c.h.b16 %v110
    %v477 = vunpack.c.l.b16 %v111
    %v478 = vunpack.c.h.b16 %v111
    %v479 = vunpack.c.l.b16 %v112
    %v480 = vunpack.c.h.b16 %v112
    %v481 = vunpack.c.l.b16 %v113
    %v482 = vunpack.c.h.b16 %v113
    %v483 = vunpack.c.l.b16 %v114
    %v484 = vunpack.c.h.b16 %v114
    %v485 = vunpack.c.l.b16 %v115
    %v486 = vunpack.c.h.b16 %v115
    %v487 = vunpack.c.l.b16 %v116
    %v488 = vunpack.c.h.b16 %v116
    %v489 = vunpack.c.l.b16 %v117
    %v490 = vunpack.c.h.b16 %v117
    %v491 = vunpack.c.l.b16 %v118
    %v492 = vunpack.c.h.b16 %v118
    %v493 = vunpack.c.l.b16 %v119
    %v494 = vunpack.c.h.b16 %v119
    %v495 = vunpack.c.l.b16 %v120
    %v496 = vunpack.c.h.b16 %v120
    %v497 = vunpack.c.l.b16 %v121
    %v498 = vunpack.c.h.b16 %v121
    %v499 = vunpack.c.l.b16 %v122
    %v500 = vunpack.c.h.b16 %v122
    %v501 = vunpack.c.l.b16 %v123
    %v502 = vunpack.c.h.b16 %v123
    %v503 = vunpack.c.l.b16 %v124
    %v504 = vunpack.c.h.b16 %v124
    %v505 = vunpack.c.l.b16 %v125
    %v506 = vunpack.c.h.b16 %v125
    %v507 = vunpack.c.l.b16 %v126
    %v508 = vunpack.c.h.b16 %v126
    %v509 = vunpack.c.l.b16 %v127
    %v510 = vunpack.c.h.b16 %v127
    %v511 = vunpack.c.l.b16 %v128
    %v512 = vunpack.c.h.b16 %v128
    %v513 = vunpack.c.l.b16 %v129
    %v514 = vunpack.c.h.b16 %v129
    %v515 = vunpack.c.l.b16 %v130
    %v516 = vunpack.c.h.b16 %v130
    %v517 = vunpack.c.l.b16 %v131
    %v518 = vunpack.c.h.b16 %v131
    %v519 = vunpack.c.l.b16 %v132
    %v520 = vunpack.c.h.b16 %v132
    %v521 = vunpack.c.l.b16 %v133
    %v522 = vunpack.c.h.b16 %v133
    %v523 = vunpack.c.l.b16 %v134
    %v524 = vunpack.c.h.b16 %v134
    %v525 = vunpack.c.l.b16 %v135
    %v526 = vunpack.c.h.b16 %v135
    %v527 = vunpack.c.l.b16 %v136
    %v528 = vunpack.c.h.b16 %v136
    %v529 = vunpack.c.l.b16 %v137
    %v530 = vunpack.c.h.b16 %v137
    %v531 = vunpack.c.l.b16 %v138
    %v532 = vunpack.c.h.b16 %v138
    %v533 = vunpack.c.l.b16 %v139
    %v534 = vunpack.c.h.b16 %v139
    %v535 = vunpack.c.l.b16 %v140
    %v536 = vunpack.c.h.b16 %v140
    %v537 = vunpack.c.l.b16 %v141
    %v538 = vunpack.c.h.b16 %v141
    %v539 = vunpack.c.l.b16 %v142
    %v540 = vunpack.c.h.b16 %v142
    %v541 = vunpack.c.l.b16 %v143
    %v542 = vunpack.c.h.b16 %v143
    %v543 = vunpack.c.l.b16 %v144
    %v544 = vunpack.c.h.b16 %v144
    %v545 = vunpack.c.l.b16 %v145
    %v546 = vunpack.c.h.b16 %v145
    %v547 = vunpack.c.l.b16 %v146
    %v548 = vunpack.c.h.b16 %v146
    %v549 = vunpack.c.l.b16 %v147
    %v550 = vunpack.c.h.b16 %v147
    %v551 = vunpack.c.l.b16 %v148
    %v552 = vunpack.c.h.b16 %v148
    %v553 = vunpack.c.l.b16 %v149
    %v554 = vunpack.c.h.b16 %v149
    %v555 = vunpack.c.l.b16 %v150
    %v556 = vunpack.c.h.b16 %v150
    %v557 = vunpack.c.l.b16 %v151
    %v558 = vunpack.c.h.b16 %v151
    %v559 = vunpack.c.l.b16 %v152
    %v560 = vunpack.c.h.b16 %v152
    %v561 = vunpack.c.l.b16 %v153
    %v562 = vunpack.c.h.b16 %v153
    %v563 = vunpack.c.l.b16 %v154
    %v564 = vunpack.c.h.b16 %v154
    %v565 = vunpack.c.l.b16 %v155
    %v566 = vunpack.c.h.b16 %v155
    %v567 = vunpack.c.l.b16 %v156
    %v568 = vunpack.c.h.b16 %v156
    %v569 = vunpack.c.l.b16 %v157
    %v570 = vunpack.c.h.b16 %v157
    %v571 = vunpack.c.l.b16 %v158
    %v572 = vunpack.c.h.b16 %v158
    %v573 = vunpack.c.l.b16 %v159
    %v574 = vunpack.c.h.b16 %v159
    %v575 = vunpack.c.l.b16 %v160
    %v576 = vunpack.c.h.b16 %v160
    %v577 = vunpack.c.l.b16 %v161
    %v578 = vunpack.c.h.b16 %v161
    %v579 = vunpack.c.l.b16 %v162
    %v580 = vunpack.c.h.b16 %v162
    %v581 = vunpack.c.l.b16 %v163
    %v582 = vunpack.c.h.b16 %v163
    %v583 = vunpack.c.l.b16 %v164
    %v584 = vunpack.c.h.b16 %v164
    %v585 = vunpack.c.l.b16 %v165
    %v586 = vunpack.c.h.b16 %v165
    %v587 = vunpack.c.l.b16 %v166
    %v588 = vunpack.c.h.b16 %v166
    %v589 = vunpack.c.l.b16 %v167
    %v590 = vunpack.c.h.b16 %v167
    %v591 = vunpack.c.l.b16 %v168
    %v592 = vunpack.c.h.b16 %v168
    %v593 = vunpack.c.l.b16 %v169
    %v594 = vunpack.c.h.b16 %v169
    %v595 = vunpack.c.l.b16 %v170
    %v596 = vunpack.c.h.b16 %v170
    %v597 = vunpack.c.l.b16 %v171
    %v598 = vunpack.c.h.b16 %v171
    %v599 = vpack.c.b16 %v351, %v343
    %v600 = vpack.c.b16 %v352, %v344
    %v601 = vpack.c.b16 %v353, %v345
    %v602 = vpack.c.b16 %v354, %v346
    %v603 = vpack.c.b16 %v355, %v347
    %v604 = vpack.c.b16 %v356, %v348
    %v605 = vpack.c.b16 %v357, %v349
    %v606 = vpack.c.b16 %v358, %v350
    %v607 = vpack.c.b16 %v367, %v359
    %v608 = vpack.c.b16 %v368, %v360
    %v609 = vpack.c.b16 %v369, %v361
    %v610 = vpack.c.b16 %v370, %v362
    %v611 = vpack.c.b16 %v371, %v363
    %v612 = vpack.c.b16 %v372, %v364
    %v613 = vpack.c.b16 %v373, %v365
    %v614 = vpack.c.b16 %v374, %v366
    %v615 = vpack.c.b16 %v383, %v375
    %v616 = vpack.c.b16 %v384, %v376
    %v617 = vpack.c.b16 %v385, %v377
    %v618 = vpack.c.b16 %v386, %v378
    %v619 = vpack.c.b16 %v387, %v379
    %v620 = vpack.c.b16 %v388, %v380
    %v621 = vpack.c.b16 %v389, %v381
    %v622 = vpack.c.b16 %v390, %v382
    %v623 = vpack.c.b16 %v399, %v391
    %v624 = vpack.c.b16 %v400, %v392
    %v625 = vpack.c.b16 %v401, %v393
    %v626 = vpack.c.b16 %v402, %v394
    %v627 = vpack.c.b16 %v403, %v395
    %v628 = vpack.c.b16 %v404, %v396
    %v629 = vpack.c.b16 %v405, %v397
    %v630 = vpack.c.b16 %v406, %v398
    %v631 = vpack.c.b16 %v415, %v407
    %v632 = vpack.c.b16 %v416, %v408
    %v633 = vpack.c.b16 %v417, %v409
    %v634 = vpack.c.b16 %v418, %v410
    %v635 = vpack.c.b16 %v419, %v411
    %v636 = vpack.c.b16 %v420, %v412
    %v637 = vpack.c.b16 %v421, %v413
    %v638 = vpack.c.b16 %v422, %v414
    %v639 = vpack.c.b16 %v431, %v423
    %v640 = vpack.c.b16 %v432, %v424
    %v641 = vpack.c.b16 %v433, %v425
    %v642 = vpack.c.b16 %v434, %v426
    %v643 = vpack.c.b16 %v435, %v427
    %v644 = vpack.c.b16 %v436, %v428
    %v645 = vpack.c.b16 %v437, %v429
    %v646 = vpack.c.b16 %v438, %v430
    %v647 = vpack.c.b16 %v447, %v439
    %v648 = vpack.c.b16 %v448, %v440
    %v649 = vpack.c.b16 %v449, %v441
    %v650 = vpack.c.b16 %v450, %v442
    %v651 = vpack.c.b16 %v451, %v443
    %v652 = vpack.c.b16 %v452, %v444
    %v653 = vpack.c.b16 %v453, %v445
    %v654 = vpack.c.b16 %v454, %v446
    %v655 = vpack.c.b16 %v463, %v455
    %v656 = vpack.c.b16 %v464, %v456
    %v657 = vpack.c.b16 %v465, %v457
    %v658 = vpack.c.b16 %v466, %v458
    %v659 = vpack.c.b16 %v467, %v459
    %v660 = vpack.c.b16 %v468, %v460
    %v661 = vpack.c.b16 %v469, %v461
    %v662 = vpack.c.b16 %v470, %v462
    %v663 = vpack.c.b16 %v479, %v471
    %v664 = vpack.c.b16 %v480, %v472
    %v665 = vpack.c.b16 %v481, %v473
    %v666 = vpack.c.b16 %v482, %v474
    %v667 = vpack.c.b16 %v483, %v475
    %v668 = vpack.c.b16 %v484, %v476
    %v669 = vpack.c.b16 %v485, %v477
    %v670 = vpack.c.b16 %v486, %v478
    %v671 = vpack.c.b16 %v495, %v487
    %v672 = vpack.c.b16 %v496, %v488
    %v673 = vpack.c.b16 %v497, %v489
    %v674 = vpack.c.b16 %v498, %v490
    %v675 = vpack.c.b16 %v499, %v491
    %v676 = vpack.c.b16 %v500, %v492
    %v677 = vpack.c.b16 %v501, %v493
    %v678 = vpack.c.b16 %v502, %v494
    %v679 = vpack.c.b16 %v511, %v503
    %v680 = vpack.c.b16 %v512, %v504
    %v681 = vpack.c.b16 %v513, %v505
    %v682 = vpack.c.b16 %v514, %v506
    %v683 = vpack.c.b16 %v515, %v507
    %v684 = vpack.c.b16 %v516, %v508
    %v685 = vpack.c.b16 %v517, %v509
    %v686 = vpack.c.b16 %v518, %v510
    %v687 = vpack.c.b16 %v527, %v519
    %v688 = vpack.c.b16 %v528, %v520
    %v689 = vpack.c.b16 %v529, %v521
    %v690 = vpack.c.b16 %v530, %v522
    %v691 = vpack.c.b16 %v531, %v523
    %v692 = vpack.c.b16 %v532, %v524
    %v693 = vpack.c.b16 %v533, %v525
    %v694 = vpack.c.b16 %v534, %v526
    %v695 = vpack.c.b16 %v543, %v535
    %v696 = vpack.c.b16 %v544, %v536
    %v697 = vpack.c.b16 %v545, %v537
    %v698 = vpack.c.b16 %v546, %v538
    %v699 = vpack.c.b16 %v547, %v539
    %v700 = vpack.c.b16 %v548, %v540
    %v701 = vpack.c.b16 %v549, %v541
    %v702 = vpack.c.b16 %v550, %v542
    %v703 = vpack.c.b16 %v559, %v551
    %v704 = vpack.c.b16 %v560, %v552
    %v705 = vpack.c.b16 %v561, %v553
    %v706 = vpack.c.b16 %v562, %v554
    %v707 = vpack.c.b16 %v563, %v555
    %v708 = vpack.c.b16 %v564, %v556
    %v709 = vpack.c.b16 %v565, %v557
    %v710 = vpack.c.b16 %v566, %v558
    %v711 = vpack.c.b16 %v575, %v567
    %v712 = vpack.c.b16 %v576, %v568
    %v713 = vpack.c.b16 %v577, %v569
    %v714 = vpack.c.b16 %v578, %v570
    %v715 = vpack.c.b16 %v579, %v571
    %v716 = vpack.c.b16 %v580, %v572
    %v717 = vpack.c.b16 %v581, %v573
    %v718 = vpack.c.b16 %v582, %v574
    %v719 = vpack.c.b16 %v591, %v583
    %v720 = vpack.c.b16 %v592, %v584
    %v721 = vpack.c.b16 %v593, %v585
    %v722 = vpack.c.b16 %v594, %v586
    %v723 = vpack.c.b16 %v595, %v587
    %v724 = vpack.c.b16 %v596, %v588
    %v725 = vpack.c.b16 %v597, %v589
    %v726 = vpack.c.b16 %v598, %v590
    %855 = vmatprep.subr.bf16.mxu0 %v600
    %856 = vmatpush1.bf16.msra.mxu0 %v599
    %857 = vmatprep.subr.bf16.mxu0 %v608
    %858 = vmatpush1.bf16.msra.mxu0 %v607
    %859 = vmatprep.subr.bf16.mxu0 %v616
    %860 = vmatpush1.bf16.msra.mxu0 %v615
    %861 = vmatprep.subr.bf16.mxu0 %v624
    %862 = vmatpush1.bf16.msra.mxu0 %v623
    %863 = vmatprep.subr.bf16.mxu0 %v632
    %864 = vmatpush1.bf16.msra.mxu0 %v631
    %865 = vmatprep.subr.bf16.mxu0 %v640
    %866 = vmatpush1.bf16.msra.mxu0 %v639
    %867 = vmatprep.subr.bf16.mxu0 %v648
    %868 = vmatpush1.bf16.msra.mxu0 %v647
    %869 = vmatprep.subr.bf16.mxu0 %v656
    %870 = vmatpush1.bf16.msra.mxu0 %v655
    %871 = vmatprep.subr.bf16.mxu0 %v664
    %872 = vmatpush1.bf16.msra.mxu0 %v663
    %873 = vmatprep.subr.bf16.mxu0 %v672
    %874 = vmatpush1.bf16.msra.mxu0 %v671
    %875 = vmatprep.subr.bf16.mxu0 %v680
    %876 = vmatpush1.bf16.msra.mxu0 %v679
    %877 = vmatprep.subr.bf16.mxu0 %v688
    %878 = vmatpush1.bf16.msra.mxu0 %v687
    %879 = vmatprep.subr.bf16.mxu0 %v696
    %880 = vmatpush1.bf16.msra.mxu0 %v695
    %881 = vmatprep.subr.bf16.mxu0 %v704
    %882 = vmatpush1.bf16.msra.mxu0 %v703
    %883 = vmatprep.subr.bf16.mxu0 %v712
    %884 = vmatpush1.bf16.msra.mxu0 %v711
    %885 = vmatprep.subr.bf16.mxu0 %v720
    %886 = vmatpush1.bf16.msra.mxu0 %v719
    %887 = vmatprep.mubr.bf16.mxu0 0
    %888 = vmatmul.mubr.bf16.gmra.mrb[0].mxu0 %v214
    %v889 = vpop.f32.mrb[0].mxu0
    %v890 = vadd.f32 0.0, %v889
    %v891 = vpop.f32.mrb[0].mxu0
    %v892 = vadd.f32 0.0, %v891
    %v893 = vpop.f32.mrb[0].mxu0
    %v894 = vpop.f32.mrb[0].mxu0
    %895 = vdwg.mxu0
    %896 = vmatprep.subr.bf16.mxu0 %v602
    %897 = vmatpush1.bf16.msra.mxu0 %v601
    %898 = vmatprep.subr.bf16.mxu0 %v610
    %899 = vmatpush1.bf16.msra.mxu0 %v609
    %900 = vmatprep.subr.bf16.mxu0 %v618
    %901 = vmatpush1.bf16.msra.mxu0 %v617
    %902 = vmatprep.subr.bf16.mxu0 %v626
    %903 = vmatpush1.bf16.msra.mxu0 %v625
    %904 = vmatprep.subr.bf16.mxu0 %v634
    %905 = vmatpush1.bf16.msra.mxu0 %v633
    %906 = vmatprep.subr.bf16.mxu0 %v642
    %907 = vmatpush1.bf16.msra.mxu0 %v641
    %908 = vmatprep.subr.bf16.mxu0 %v650
    %909 = vmatpush1.bf16.msra.mxu0 %v649
    %910 = vmatprep.subr.bf16.mxu0 %v658
    %911 = vmatpush1.bf16.msra.mxu0 %v657
    %912 = vmatprep.subr.bf16.mxu0 %v666
    %913 = vmatpush1.bf16.msra.mxu0 %v665
    %914 = vmatprep.subr.bf16.mxu0 %v674
    %915 = vmatpush1.bf16.msra.mxu0 %v673
    %916 = vmatprep.subr.bf16.mxu0 %v682
    %917 = vmatpush1.bf16.msra.mxu0 %v681
    %918 = vmatprep.subr.bf16.mxu0 %v690
    %919 = vmatpush1.bf16.msra.mxu0 %v689
    %920 = vmatprep.subr.bf16.mxu0 %v698
    %921 = vmatpush1.bf16.msra.mxu0 %v697
    %922 = vmatprep.subr.bf16.mxu0 %v706
    %923 = vmatpush1.bf16.msra.mxu0 %v705
    %924 = vmatprep.subr.bf16.mxu0 %v714
    %925 = vmatpush1.bf16.msra.mxu0 %v713
    %926 = vmatprep.subr.bf16.mxu0 %v722
    %927 = vmatpush1.bf16.msra.mxu0 %v721
    %928 = vmatprep.mubr.bf16.mxu0 0
    %929 = vmatmul.mubr.bf16.gmra.mrb[0].mxu0 %v214
    %v930 = vpop.f32.mrb[0].mxu0
    %v931 = vadd.f32 0.0, %v930
    %v932 = vpop.f32.mrb[0].mxu0
    %v933 = vadd.f32 0.0, %v932
    %v934 = vpop.f32.mrb[0].mxu0
    %v935 = vpop.f32.mrb[0].mxu0
    %936 = vdwg.mxu0
    %937 = vmatprep.subr.bf16.mxu0 %v604
    %938 = vmatpush1.bf16.msra.mxu0 %v603
    %939 = vmatprep.subr.bf16.mxu0 %v612
    %940 = vmatpush1.bf16.msra.mxu0 %v611
    %941 = vmatprep.subr.bf16.mxu0 %v620
    %942 = vmatpush1.bf16.msra.mxu0 %v619
    %943 = vmatprep.subr.bf16.mxu0 %v628
    %944 = vmatpush1.bf16.msra.mxu0 %v627
    %945 = vmatprep.subr.bf16.mxu0 %v636
    %946 = vmatpush1.bf16.msra.mxu0 %v635
    %947 = vmatprep.subr.bf16.mxu0 %v644
    %948 = vmatpush1.bf16.msra.mxu0 %v643
    %949 = vmatprep.subr.bf16.mxu0 %v652
    %950 = vmatpush1.bf16.msra.mxu0 %v651
    %951 = vmatprep.subr.bf16.mxu0 %v660
    %952 = vmatpush1.bf16.msra.mxu0 %v659
    %953 = vmatprep.subr.bf16.mxu0 %v668
    %954 = vmatpush1.bf16.msra.mxu0 %v667
    %955 = vmatprep.subr.bf16.mxu0 %v676
    %956 = vmatpush1.bf16.msra.mxu0 %v675
    %957 = vmatprep.subr.bf16.mxu0 %v684
    %958 = vmatpush1.bf16.msra.mxu0 %v683
    %959 = vmatprep.subr.bf16.mxu0 %v692
    %960 = vmatpush1.bf16.msra.mxu0 %v691
    %961 = vmatprep.subr.bf16.mxu0 %v700
    %962 = vmatpush1.bf16.msra.mxu0 %v699
    %963 = vmatprep.subr.bf16.mxu0 %v708
    %964 = vmatpush1.bf16.msra.mxu0 %v707
    %965 = vmatprep.subr.bf16.mxu0 %v716
    %966 = vmatpush1.bf16.msra.mxu0 %v715
    %967 = vmatprep.subr.bf16.mxu0 %v724
    %968 = vmatpush1.bf16.msra.mxu0 %v723
    %969 = vmatprep.mubr.bf16.mxu0 0
    %970 = vmatmul.mubr.bf16.gmra.mrb[0].mxu0 %v214
    %v971 = vpop.f32.mrb[0].mxu0
    %v972 = vadd.f32 0.0, %v971
    %v973 = vpop.f32.mrb[0].mxu0
    %v974 = vadd.f32 0.0, %v973
    %v975 = vpop.f32.mrb[0].mxu0
    %v976 = vpop.f32.mrb[0].mxu0
    %977 = vdwg.mxu0
    %978 = vmatprep.subr.bf16.mxu0 %v606
    %979 = vmatpush1.bf16.msra.mxu0 %v605
    %980 = vmatprep.subr.bf16.mxu0 %v614
    %981 = vmatpush1.bf16.msra.mxu0 %v613
    %982 = vmatprep.subr.bf16.mxu0 %v622
    %983 = vmatpush1.bf16.msra.mxu0 %v621
    %984 = vmatprep.subr.bf16.mxu0 %v630
    %985 = vmatpush1.bf16.msra.mxu0 %v629
    %986 = vmatprep.subr.bf16.mxu0 %v638
    %987 = vmatpush1.bf16.msra.mxu0 %v637
    %988 = vmatprep.subr.bf16.mxu0 %v646
    %989 = vmatpush1.bf16.msra.mxu0 %v645
    %990 = vmatprep.subr.bf16.mxu0 %v654
    %991 = vmatpush1.bf16.msra.mxu0 %v653
    %992 = vmatprep.subr.bf16.mxu0 %v662
    %993 = vmatpush1.bf16.msra.mxu0 %v661
    %994 = vmatprep.subr.bf16.mxu0 %v670
    %995 = vmatpush1.bf16.msra.mxu0 %v669
    %996 = vmatprep.subr.bf16.mxu0 %v678
    %997 = vmatpush1.bf16.msra.mxu0 %v677
    %998 = vmatprep.subr.bf16.mxu0 %v686
    %999 = vmatpush1.bf16.msra.mxu0 %v685
    %1000 = vmatprep.subr.bf16.mxu0 %v694
    %1001 = vmatpush1.bf16.msra.mxu0 %v693
    %1002 = vmatprep.subr.bf16.mxu0 %v702
    %1003 = vmatpush1.bf16.msra.mxu0 %v701
    %1004 = vmatprep.subr.bf16.mxu0 %v710
    %1005 = vmatpush1.bf16.msra.mxu0 %v709
    %1006 = vmatprep.subr.bf16.mxu0 %v718
    %1007 = vmatpush1.bf16.msra.mxu0 %v717
    %1008 = vmatprep.subr.bf16.mxu0 %v726
    %1009 = vmatpush1.bf16.msra.mxu0 %v725
    %1010 = vmatprep.mubr.bf16.mxu0 0
    %1011 = vmatmul.mubr.bf16.gmra.mrb[0].mxu0 %v214
    %v1012 = vpop.f32.mrb[0].mxu0
    %v1013 = vadd.f32 0.0, %v1012
    %v1014 = vpop.f32.mrb[0].mxu0
    %v1015 = vadd.f32 0.0, %v1014
    %v1016 = vpop.f32.mrb[0].mxu0
    %v1017 = vpop.f32.mrb[0].mxu0
    %1018 = vdwg.mxu0
    %v1019 = vadd.f32 %v972, %v177
    %v1020 = vadd.f32 %v974, %v181
    %v1021 = vadd.f32 %v1013, %v185
    %v1022 = vadd.f32 %v1015, %v189
    %v1023 = vmul.f32 %v1019, 0.5
    %v1024 = vmul.f32 %v1020, 0.5
    %v1025 = vmul.f32 %v1021, 0.5
    %v1026 = vtanh.pop %v1023
    %v1027 = vtanh.pop %v1024
    %v1028 = vtanh.pop %v1025
    %v1029 = vmul.f32 %v1026, 0.5
    %v1030 = vmul.f32 %v1027, 0.5
    %v1031 = vmul.f32 %v1028, 0.5
    %v1032 = vadd.f32 %v1029, 0.5
    %v1033 = vadd.f32 %v1030, 0.5
    %v1034 = vadd.f32 %v1031, 0.5
    %v1035 = vtanh.pop %v1022
    %v1036 = vmul.f32 %v1033, 0.0
    %v1037 = vmul.f32 %v1032, %v1035
    %v1038 = vadd.f32 %v1036, %v1037
    %v1039 = vtanh.pop %v1038
    %v1040 = vmul.f32 %v1034, %v1039
    %s1041 = scalar_lea.vmem [#allocation2], 8
    %v1042 = vld [vmem:[%s1041] sm:$0xff]
    %v1047 = vcombine.low %v890, %v892
    %v1048 = vcombine.low %v931, %v933
    %v1050 = vunpack.c.l.s4 1983009808
    %v1051 = vunpack.c.0.s8 %v1050
    %v1052 = vlaneseq
    %v1053 = vshrl.u32 %v1052, 7
    %v1054 = vsub.s32 %v1051, %v1053
    %v1055 = vrot.slane %v1047, %v1054
    %v1057 = vunpack.c.l.s4 1983009808
    %v1058 = vunpack.c.0.s8 %v1057
    %v1059 = vlaneseq
    %v1060 = vshrl.u32 %v1059, 7
    %v1061 = vsub.s32 %v1058, %v1060
    %v1062 = vrot.slane %v1048, %v1061
    %v1063 = vcombine.low %v1055, %v1062
    %v1065 = vadd.f32 %v1042, %v1063
    %v1066 = vmul.f32 %v1065, 0.5
    %v1067 = vtanh.pop %v1066
    %v1068 = vmul.f32 %v1067, 0.5
    %v1069 = vadd.f32 %v1068, 0.5
    %v1071 = vrot.slane %v1065, 6
    %v1073 = vtanh.pop %v1071
    %v1075 = vrot.slane %v1069, 2
    %v1077 = vmul.f32 %v1075, %v209
    %v1078 = vmul.f32 %v1069, %v1073
    %v1079 = vadd.f32 %v1077, %v1078
    %v1080 = vtanh.pop %v1079
    %v1081 = vrot.slane %v1069, 4
    %v1083 = vmul.f32 %v1081, %v1080
    %v1084 = vpack.c.bf16 %v1083, %v1083
    %v1085 = vpack.c.bf16 %v1040, %v1040
    %1086 = vmatprep.subr.bf16.mxu0 %v600
    %1087 = vmatpush1.bf16.msra.mxu0 %v599
    %1088 = vmatprep.subr.bf16.mxu0 %v608
    %1089 = vmatpush1.bf16.msra.mxu0 %v607
    %1090 = vmatprep.subr.bf16.mxu0 %v616
    %1091 = vmatpush1.bf16.msra.mxu0 %v615
    %1092 = vmatprep.subr.bf16.mxu0 %v624
    %1093 = vmatpush1.bf16.msra.mxu0 %v623
    %1094 = vmatprep.subr.bf16.mxu0 %v632
    %1095 = vmatpush1.bf16.msra.mxu0 %v631
    %1096 = vmatprep.subr.bf16.mxu0 %v640
    %1097 = vmatpush1.bf16.msra.mxu0 %v639
    %1098 = vmatprep.subr.bf16.mxu0 %v648
    %1099 = vmatpush1.bf16.msra.mxu0 %v647
    %1100 = vmatprep.subr.bf16.mxu0 %v656
    %1101 = vmatpush1.bf16.msra.mxu0 %v655
    %1102 = vmatprep.subr.bf16.mxu0 %v664
    %1103 = vmatpush1.bf16.msra.mxu0 %v663
    %1104 = vmatprep.subr.bf16.mxu0 %v672
    %1105 = vmatpush1.bf16.msra.mxu0 %v671
    %1106 = vmatprep.subr.bf16.mxu0 %v680
    %1107 = vmatpush1.bf16.msra.mxu0 %v679
    %1108 = vmatprep.subr.bf16.mxu0 %v688
    %1109 = vmatpush1.bf16.msra.mxu0 %v687
    %1110 = vmatprep.subr.bf16.mxu0 %v696
    %1111 = vmatpush1.bf16.msra.mxu0 %v695
    %1112 = vmatprep.subr.bf16.mxu0 %v704
    %1113 = vmatpush1.bf16.msra.mxu0 %v703
    %1114 = vmatprep.subr.bf16.mxu0 %v712
    %1115 = vmatpush1.bf16.msra.mxu0 %v711
    %1116 = vmatprep.subr.bf16.mxu0 %v720
    %1117 = vmatpush1.bf16.msra.mxu0 %v719
    %1118 = vmatprep.mubr.bf16.mxu0 %v1085
    %1119 = vmatmul.mubr.bf16.gmra.mrb[0].mxu0 %v1084
    %v1120 = vpop.f32.mrb[0].mxu0
    %v1121 = vadd.f32 0.0, %v1120
    %v1122 = vpop.f32.mrb[0].mxu0
    %v1123 = vadd.f32 0.0, %v1122
    %v1124 = vpop.f32.mrb[0].mxu0
    %v1125 = vpop.f32.mrb[0].mxu0
    %1126 = vdwg.mxu0
    %1127 = vmatprep.subr.bf16.mxu0 %v602
    %1128 = vmatpush1.bf16.msra.mxu0 %v601
    %1129 = vmatprep.subr.bf16.mxu0 %v610
    %1130 = vmatpush1.bf16.msra.mxu0 %v609
    %1131 = vmatprep.subr.bf16.mxu0 %v618
    %1132 = vmatpush1.bf16.msra.mxu0 %v617
    %1133 = vmatprep.subr.bf16.mxu0 %v626
    %1134 = vmatpush1.bf16.msra.mxu0 %v625
    %1135 = vmatprep.subr.bf16.mxu0 %v634
    %1136 = vmatpush1.bf16.msra.mxu0 %v633
    %1137 = vmatprep.subr.bf16.mxu0 %v642
    %1138 = vmatpush1.bf16.msra.mxu0 %v641
    %1139 = vmatprep.subr.bf16.mxu0 %v650
    %1140 = vmatpush1.bf16.msra.mxu0 %v649
    %1141 = vmatprep.subr.bf16.mxu0 %v658
    %1142 = vmatpush1.bf16.msra.mxu0 %v657
    %1143 = vmatprep.subr.bf16.mxu0 %v666
    %1144 = vmatpush1.bf16.msra.mxu0 %v665
    %1145 = vmatprep.subr.bf16.mxu0 %v674
    %1146 = vmatpush1.bf16.msra.mxu0 %v673
    %1147 = vmatprep.subr.bf16.mxu0 %v682
    %1148 = vmatpush1.bf16.msra.mxu0 %v681
    %1149 = vmatprep.subr.bf16.mxu0 %v690
    %1150 = vmatpush1.bf16.msra.mxu0 %v689
    %1151 = vmatprep.subr.bf16.mxu0 %v698
    %1152 = vmatpush1.bf16.msra.mxu0 %v697
    %1153 = vmatprep.subr.bf16.mxu0 %v706
    %1154 = vmatpush1.bf16.msra.mxu0 %v705
    %1155 = vmatprep.subr.bf16.mxu0 %v714
    %1156 = vmatpush1.bf16.msra.mxu0 %v713
    %1157 = vmatprep.subr.bf16.mxu0 %v722
    %1158 = vmatpush1.bf16.msra.mxu0 %v721
    %1159 = vmatprep.mubr.bf16.mxu0 %v1085
    %1160 = vmatmul.mubr.bf16.gmra.mrb[0].mxu0 %v1084
    %v1161 = vpop.f32.mrb[0].mxu0
    %v1162 = vadd.f32 0.0, %v1161
    %v1163 = vpop.f32.mrb[0].mxu0
    %v1164 = vadd.f32 0.0, %v1163
    %v1165 = vpop.f32.mrb[0].mxu0
    %v1166 = vpop.f32.mrb[0].mxu0
    %1167 = vdwg.mxu0
    %1168 = vmatprep.subr.bf16.mxu0 %v604
    %1169 = vmatpush1.bf16.msra.mxu0 %v603
    %1170 = vmatprep.subr.bf16.mxu0 %v612
    %1171 = vmatpush1.bf16.msra.mxu0 %v611
    %1172 = vmatprep.subr.bf16.mxu0 %v620
    %1173 = vmatpush1.bf16.msra.mxu0 %v619
    %1174 = vmatprep.subr.bf16.mxu0 %v628
    %1175 = vmatpush1.bf16.msra.mxu0 %v627
    %1176 = vmatprep.subr.bf16.mxu0 %v636
    %1177 = vmatpush1.bf16.msra.mxu0 %v635
    %1178 = vmatprep.subr.bf16.mxu0 %v644
    %1179 = vmatpush1.bf16.msra.mxu0 %v643
    %1180 = vmatprep.subr.bf16.mxu0 %v652
    %1181 = vmatpush1.bf16.msra.mxu0 %v651
    %1182 = vmatprep.subr.bf16.mxu0 %v660
    %1183 = vmatpush1.bf16.msra.mxu0 %v659
    %1184 = vmatprep.subr.bf16.mxu0 %v668
    %1185 = vmatpush1.bf16.msra.mxu0 %v667
    %1186 = vmatprep.subr.bf16.mxu0 %v676
    %1187 = vmatpush1.bf16.msra.mxu0 %v675
    %1188 = vmatprep.subr.bf16.mxu0 %v684
    %1189 = vmatpush1.bf16.msra.mxu0 %v683
    %1190 = vmatprep.subr.bf16.mxu0 %v692
    %1191 = vmatpush1.bf16.msra.mxu0 %v691
    %1192 = vmatprep.subr.bf16.mxu0 %v700
    %1193 = vmatpush1.bf16.msra.mxu0 %v699
    %1194 = vmatprep.subr.bf16.mxu0 %v708
    %1195 = vmatpush1.bf16.msra.mxu0 %v707
    %1196 = vmatprep.subr.bf16.mxu0 %v716
    %1197 = vmatpush1.bf16.msra.mxu0 %v715
    %1198 = vmatprep.subr.bf16.mxu0 %v724
    %1199 = vmatpush1.bf16.msra.mxu0 %v723
    %1200 = vmatprep.mubr.bf16.mxu0 %v1085
    %1201 = vmatmul.mubr.bf16.gmra.mrb[0].mxu0 %v1084
    %v1202 = vpop.f32.mrb[0].mxu0
    %v1203 = vadd.f32 0.0, %v1202
    %v1204 = vpop.f32.mrb[0].mxu0
    %v1205 = vadd.f32 0.0, %v1204
    %v1206 = vpop.f32.mrb[0].mxu0
    %v1207 = vpop.f32.mrb[0].mxu0
    %1208 = vdwg.mxu0
    %1209 = vmatprep.subr.bf16.mxu0 %v606
    %1210 = vmatpush1.bf16.msra.mxu0 %v605
    %1211 = vmatprep.subr.bf16.mxu0 %v614
    %1212 = vmatpush1.bf16.msra.mxu0 %v613
    %1213 = vmatprep.subr.bf16.mxu0 %v622
    %1214 = vmatpush1.bf16.msra.mxu0 %v621
    %1215 = vmatprep.subr.bf16.mxu0 %v630
    %1216 = vmatpush1.bf16.msra.mxu0 %v629
    %1217 = vmatprep.subr.bf16.mxu0 %v638
    %1218 = vmatpush1.bf16.msra.mxu0 %v637
    %1219 = vmatprep.subr.bf16.mxu0 %v646
    %1220 = vmatpush1.bf16.msra.mxu0 %v645
    %1221 = vmatprep.subr.bf16.mxu0 %v654
    %1222 = vmatpush1.bf16.msra.mxu0 %v653
    %1223 = vmatprep.subr.bf16.mxu0 %v662
    %1224 = vmatpush1.bf16.msra.mxu0 %v661
    %1225 = vmatprep.subr.bf16.mxu0 %v670
    %1226 = vmatpush1.bf16.msra.mxu0 %v669
    %1227 = vmatprep.subr.bf16.mxu0 %v678
    %1228 = vmatpush1.bf16.msra.mxu0 %v677
    %1229 = vmatprep.subr.bf16.mxu0 %v686
    %1230 = vmatpush1.bf16.msra.mxu0 %v685
    %1231 = vmatprep.subr.bf16.mxu0 %v694
    %1232 = vmatpush1.bf16.msra.mxu0 %v693
    %1233 = vmatprep.subr.bf16.mxu0 %v702
    %1234 = vmatpush1.bf16.msra.mxu0 %v701
    %1235 = vmatprep.subr.bf16.mxu0 %v710
    %1236 = vmatpush1.bf16.msra.mxu0 %v709
    %1237 = vmatprep.subr.bf16.mxu0 %v718
    %1238 = vmatpush1.bf16.msra.mxu0 %v717
    %1239 = vmatprep.subr.bf16.mxu0 %v726
    %1240 = vmatpush1.bf16.msra.mxu0 %v725
    %1241 = vmatprep.mubr.bf16.mxu0 %v1085
    %1242 = vmatmul.mubr.bf16.gmra.mrb[0].mxu0 %v1084
    %v1243 = vpop.f32.mrb[0].mxu0
    %v1244 = vadd.f32 0.0, %v1243
    %v1245 = vpop.f32.mrb[0].mxu0
    %v1246 = vadd.f32 0.0, %v1245
    %v1247 = vpop.f32.mrb[0].mxu0
    %v1248 = vpop.f32.mrb[0].mxu0
    %1249 = vdwg.mxu0
    %v1250 = vadd.f32 %v1203, %v177
    %v1251 = vadd.f32 %v1205, %v181
    %v1252 = vadd.f32 %v1244, %v185
    %v1253 = vadd.f32 %v1246, %v189
    %v1254 = vmul.f32 %v1250, 0.5
    %v1255 = vmul.f32 %v1251, 0.5
    %v1256 = vmul.f32 %v1252, 0.5
    %v1257 = vtanh.pop %v1254
    %v1258 = vtanh.pop %v1255
    %v1259 = vtanh.pop %v1256
    %v1260 = vmul.f32 %v1257, 0.5
    %v1261 = vmul.f32 %v1258, 0.5
    %v1262 = vmul.f32 %v1259, 0.5
    %v1263 = vadd.f32 %v1260, 0.5
    %v1264 = vadd.f32 %v1261, 0.5
    %v1265 = vadd.f32 %v1262, 0.5
    %v1266 = vtanh.pop %v1253
    %v1267 = vmul.f32 %v1264, %v1038
    %v1268 = vmul.f32 %v1263, %v1266
    %v1269 = vadd.f32 %v1267, %v1268
    %v1270 = vtanh.pop %v1269
    %v1271 = vmul.f32 %v1265, %v1270
    %v1272 = vmax.f32 %v1040, %v1271
    %s1273 = scalar_lea.vmem [#allocation2], 16
    %v1274 = vld [vmem:[%s1273] sm:$0xff]
    %v1279 = vcombine.low %v1121, %v1123
    %v1280 = vcombine.low %v1162, %v1164
    %v1282 = vunpack.c.l.s4 1983009808
    %v1283 = vunpack.c.0.s8 %v1282
    %v1284 = vlaneseq
    %v1285 = vshrl.u32 %v1284, 7
    %v1286 = vsub.s32 %v1283, %v1285
    %v1287 = vrot.slane %v1279, %v1286
    %v1289 = vunpack.c.l.s4 1983009808
    %v1290 = vunpack.c.0.s8 %v1289
    %v1291 = vlaneseq
    %v1292 = vshrl.u32 %v1291, 7
    %v1293 = vsub.s32 %v1290, %v1292
    %v1294 = vrot.slane %v1280, %v1293
    %v1295 = vcombine.low %v1287, %v1294
    %v1297 = vadd.f32 %v1274, %v1295
    %v1298 = vmul.f32 %v1297, 0.5
    %v1299 = vtanh.pop %v1298
    %v1300 = vmul.f32 %v1299, 0.5
    %v1301 = vadd.f32 %v1300, 0.5
    %v1303 = vrot.slane %v1297, 6
    %v1305 = vtanh.pop %v1303
    %v1307 = vrot.slane %v1301, 2
    %v1309 = vmul.f32 %v1307, %v1079
    %v1310 = vmul.f32 %v1301, %v1305
    %v1311 = vadd.f32 %v1309, %v1310
    %v1312 = vtanh.pop %v1311
    %v1313 = vrot.slane %v1301, 4
    %v1315 = vmul.f32 %v1313, %v1312
    %v1316 = vpack.c.bf16 %v1315, %v1315
    %v1317 = vpack.c.bf16 %v1271, %v1271
    %1318 = vmatprep.subr.bf16.mxu0 %v600
    %1319 = vmatpush1.bf16.msra.mxu0 %v599
    %1320 = vmatprep.subr.bf16.mxu0 %v608
    %1321 = vmatpush1.bf16.msra.mxu0 %v607
    %1322 = vmatprep.subr.bf16.mxu0 %v616
    %1323 = vmatpush1.bf16.msra.mxu0 %v615
    %1324 = vmatprep.subr.bf16.mxu0 %v624
    %1325 = vmatpush1.bf16.msra.mxu0 %v623
    %1326 = vmatprep.subr.bf16.mxu0 %v632
    %1327 = vmatpush1.bf16.msra.mxu0 %v631
    %1328 = vmatprep.subr.bf16.mxu0 %v640
    %1329 = vmatpush1.bf16.msra.mxu0 %v639
    %1330 = vmatprep.subr.bf16.mxu0 %v648
    %1331 = vmatpush1.bf16.msra.mxu0 %v647
    %1332 = vmatprep.subr.bf16.mxu0 %v656
    %1333 = vmatpush1.bf16.msra.mxu0 %v655
    %1334 = vmatprep.subr.bf16.mxu0 %v664
    %1335 = vmatpush1.bf16.msra.mxu0 %v663
    %1336 = vmatprep.subr.bf16.mxu0 %v672
    %1337 = vmatpush1.bf16.msra.mxu0 %v671
    %1338 = vmatprep.subr.bf16.mxu0 %v680
    %1339 = vmatpush1.bf16.msra.mxu0 %v679
    %1340 = vmatprep.subr.bf16.mxu0 %v688
    %1341 = vmatpush1.bf16.msra.mxu0 %v687
    %1342 = vmatprep.subr.bf16.mxu0 %v696
    %1343 = vmatpush1.bf16.msra.mxu0 %v695
    %1344 = vmatprep.subr.bf16.mxu0 %v704
    %1345 = vmatpush1.bf16.msra.mxu0 %v703
    %1346 = vmatprep.subr.bf16.mxu0 %v712
    %1347 = vmatpush1.bf16.msra.mxu0 %v711
    %1348 = vmatprep.subr.bf16.mxu0 %v720
    %1349 = vmatpush1.bf16.msra.mxu0 %v719
    %1350 = vmatprep.mubr.bf16.mxu0 %v1317
    %1351 = vmatmul.mubr.bf16.gmra.mrb[0].mxu0 %v1316
    %v1352 = vpop.f32.mrb[0].mxu0
    %v1353 = vadd.f32 0.0, %v1352
    %v1354 = vpop.f32.mrb[0].mxu0
    %v1355 = vadd.f32 0.0, %v1354
    %v1356 = vpop.f32.mrb[0].mxu0
    %v1357 = vpop.f32.mrb[0].mxu0
    %1358 = vdwg.mxu0
    %1359 = vmatprep.subr.bf16.mxu0 %v602
    %1360 = vmatpush1.bf16.msra.mxu0 %v601
    %1361 = vmatprep.subr.bf16.mxu0 %v610
    %1362 = vmatpush1.bf16.msra.mxu0 %v609
    %1363 = vmatprep.subr.bf16.mxu0 %v618
    %1364 = vmatpush1.bf16.msra.mxu0 %v617
    %1365 = vmatprep.subr.bf16.mxu0 %v626
    %1366 = vmatpush1.bf16.msra.mxu0 %v625
    %1367 = vmatprep.subr.bf16.mxu0 %v634
    %1368 = vmatpush1.bf16.msra.mxu0 %v633
    %1369 = vmatprep.subr.bf16.mxu0 %v642
    %1370 = vmatpush1.bf16.msra.mxu0 %v641
    %1371 = vmatprep.subr.bf16.mxu0 %v650
    %1372 = vmatpush1.bf16.msra.mxu0 %v649
    %1373 = vmatprep.subr.bf16.mxu0 %v658
    %1374 = vmatpush1.bf16.msra.mxu0 %v657
    %1375 = vmatprep.subr.bf16.mxu0 %v666
    %1376 = vmatpush1.bf16.msra.mxu0 %v665
    %1377 = vmatprep.subr.bf16.mxu0 %v674
    %1378 = vmatpush1.bf16.msra.mxu0 %v673
    %1379 = vmatprep.subr.bf16.mxu0 %v682
    %1380 = vmatpush1.bf16.msra.mxu0 %v681
    %1381 = vmatprep.subr.bf16.mxu0 %v690
    %1382 = vmatpush1.bf16.msra.mxu0 %v689
    %1383 = vmatprep.subr.bf16.mxu0 %v698
    %1384 = vmatpush1.bf16.msra.mxu0 %v697
    %1385 = vmatprep.subr.bf16.mxu0 %v706
    %1386 = vmatpush1.bf16.msra.mxu0 %v705
    %1387 = vmatprep.subr.bf16.mxu0 %v714
    %1388 = vmatpush1.bf16.msra.mxu0 %v713
    %1389 = vmatprep.subr.bf16.mxu0 %v722
    %1390 = vmatpush1.bf16.msra.mxu0 %v721
    %1391 = vmatprep.mubr.bf16.mxu0 %v1317
    %1392 = vmatmul.mubr.bf16.gmra.mrb[0].mxu0 %v1316
    %v1393 = vpop.f32.mrb[0].mxu0
    %v1394 = vadd.f32 0.0, %v1393
    %v1395 = vpop.f32.mrb[0].mxu0
    %v1396 = vadd.f32 0.0, %v1395
    %v1397 = vpop.f32.mrb[0].mxu0
    %v1398 = vpop.f32.mrb[0].mxu0
    %1399 = vdwg.mxu0
    %1400 = vmatprep.subr.bf16.mxu0 %v604
    %1401 = vmatpush1.bf16.msra.mxu0 %v603
    %1402 = vmatprep.subr.bf16.mxu0 %v612
    %1403 = vmatpush1.bf16.msra.mxu0 %v611
    %1404 = vmatprep.subr.bf16.mxu0 %v620
    %1405 = vmatpush1.bf16.msra.mxu0 %v619
    %1406 = vmatprep.subr.bf16.mxu0 %v628
    %1407 = vmatpush1.bf16.msra.mxu0 %v627
    %1408 = vmatprep.subr.bf16.mxu0 %v636
    %1409 = vmatpush1.bf16.msra.mxu0 %v635
    %1410 = vmatprep.subr.bf16.mxu0 %v644
    %1411 = vmatpush1.bf16.msra.mxu0 %v643
    %1412 = vmatprep.subr.bf16.mxu0 %v652
    %1413 = vmatpush1.bf16.msra.mxu0 %v651
    %1414 = vmatprep.subr.bf16.mxu0 %v660
    %1415 = vmatpush1.bf16.msra.mxu0 %v659
    %1416 = vmatprep.subr.bf16.mxu0 %v668
    %1417 = vmatpush1.bf16.msra.mxu0 %v667
    %1418 = vmatprep.subr.bf16.mxu0 %v676
    %1419 = vmatpush1.bf16.msra.mxu0 %v675
    %1420 = vmatprep.subr.bf16.mxu0 %v684
    %1421 = vmatpush1.bf16.msra.mxu0 %v683
    %1422 = vmatprep.subr.bf16.mxu0 %v692
    %1423 = vmatpush1.bf16.msra.mxu0 %v691
    %1424 = vmatprep.subr.bf16.mxu0 %v700
    %1425 = vmatpush1.bf16.msra.mxu0 %v699
    %1426 = vmatprep.subr.bf16.mxu0 %v708
    %1427 = vmatpush1.bf16.msra.mxu0 %v707
    %1428 = vmatprep.subr.bf16.mxu0 %v716
    %1429 = vmatpush1.bf16.msra.mxu0 %v715
    %1430 = vmatprep.subr.bf16.mxu0 %v724
    %1431 = vmatpush1.bf16.msra.mxu0 %v723
    %1432 = vmatprep.mubr.bf16.mxu0 %v1317
    %1433 = vmatmul.mubr.bf16.gmra.mrb[0].mxu0 %v1316
    %v1434 = vpop.f32.mrb[0].mxu0
    %v1435 = vadd.f32 0.0, %v1434
    %v1436 = vpop.f32.mrb[0].mxu0
    %v1437 = vadd.f32 0.0, %v1436
    %v1438 = vpop.f32.mrb[0].mxu0
    %v1439 = vpop.f32.mrb[0].mxu0
    %1440 = vdwg.mxu0
    %1441 = vmatprep.subr.bf16.mxu0 %v606
    %1442 = vmatpush1.bf16.msra.mxu0 %v605
    %1443 = vmatprep.subr.bf16.mxu0 %v614
    %1444 = vmatpush1.bf16.msra.mxu0 %v613
    %1445 = vmatprep.subr.bf16.mxu0 %v622
    %1446 = vmatpush1.bf16.msra.mxu0 %v621
    %1447 = vmatprep.subr.bf16.mxu0 %v630
    %1448 = vmatpush1.bf16.msra.mxu0 %v629
    %1449 = vmatprep.subr.bf16.mxu0 %v638
    %1450 = vmatpush1.bf16.msra.mxu0 %v637
    %1451 = vmatprep.subr.bf16.mxu0 %v646
    %1452 = vmatpush1.bf16.msra.mxu0 %v645
    %1453 = vmatprep.subr.bf16.mxu0 %v654
    %1454 = vmatpush1.bf16.msra.mxu0 %v653
    %1455 = vmatprep.subr.bf16.mxu0 %v662
    %1456 = vmatpush1.bf16.msra.mxu0 %v661
    %1457 = vmatprep.subr.bf16.mxu0 %v670
    %1458 = vmatpush1.bf16.msra.mxu0 %v669
    %1459 = vmatprep.subr.bf16.mxu0 %v678
    %1460 = vmatpush1.bf16.msra.mxu0 %v677
    %1461 = vmatprep.subr.bf16.mxu0 %v686
    %1462 = vmatpush1.bf16.msra.mxu0 %v685
    %1463 = vmatprep.subr.bf16.mxu0 %v694
    %1464 = vmatpush1.bf16.msra.mxu0 %v693
    %1465 = vmatprep.subr.bf16.mxu0 %v702
    %1466 = vmatpush1.bf16.msra.mxu0 %v701
    %1467 = vmatprep.subr.bf16.mxu0 %v710
    %1468 = vmatpush1.bf16.msra.mxu0 %v709
    %1469 = vmatprep.subr.bf16.mxu0 %v718
    %1470 = vmatpush1.bf16.msra.mxu0 %v717
    %1471 = vmatprep.subr.bf16.mxu0 %v726
    %1472 = vmatpush1.bf16.msra.mxu0 %v725
    %1473 = vmatprep.mubr.bf16.mxu0 %v1317
    %1474 = vmatmul.mubr.bf16.gmra.mrb[0].mxu0 %v1316
    %v1475 = vpop.f32.mrb[0].mxu0
    %v1476 = vadd.f32 0.0, %v1475
    %v1477 = vpop.f32.mrb[0].mxu0
    %v1478 = vadd.f32 0.0, %v1477
    %v1479 = vpop.f32.mrb[0].mxu0
    %v1480 = vpop.f32.mrb[0].mxu0
    %1481 = vdwg.mxu0
    %v1482 = vadd.f32 %v1435, %v177
    %v1483 = vadd.f32 %v1437, %v181
    %v1484 = vadd.f32 %v1476, %v185
    %v1485 = vadd.f32 %v1478, %v189
    %v1486 = vmul.f32 %v1482, 0.5
    %v1487 = vmul.f32 %v1483, 0.5
    %v1488 = vmul.f32 %v1484, 0.5
    %v1489 = vtanh.pop %v1486
    %v1490 = vtanh.pop %v1487
    %v1491 = vtanh.pop %v1488
    %v1492 = vmul.f32 %v1489, 0.5
    %v1493 = vmul.f32 %v1490, 0.5
    %v1494 = vmul.f32 %v1491, 0.5
    %v1495 = vadd.f32 %v1492, 0.5
    %v1496 = vadd.f32 %v1493, 0.5
    %v1497 = vadd.f32 %v1494, 0.5
    %v1498 = vtanh.pop %v1485
    %v1499 = vmul.f32 %v1496, %v1269
    %v1500 = vmul.f32 %v1495, %v1498
    %v1501 = vadd.f32 %v1499, %v1500
    %v1502 = vtanh.pop %v1501
    %v1503 = vmul.f32 %v1497, %v1502
    %v1504 = vmax.f32 %v1272, %v1503
    %s1505 = scalar_lea.vmem [#allocation2], 24
    %v1506 = vld [vmem:[%s1505] sm:$0xff]
    %v1511 = vcombine.low %v1353, %v1355
    %v1512 = vcombine.low %v1394, %v1396
    %v1514 = vunpack.c.l.s4 1983009808
    %v1515 = vunpack.c.0.s8 %v1514
    %v1516 = vlaneseq
    %v1517 = vshrl.u32 %v1516, 7
    %v1518 = vsub.s32 %v1515, %v1517
    %v1519 = vrot.slane %v1511, %v1518
    %v1521 = vunpack.c.l.s4 1983009808
    %v1522 = vunpack.c.0.s8 %v1521
    %v1523 = vlaneseq
    %v1524 = vshrl.u32 %v1523, 7
    %v1525 = vsub.s32 %v1522, %v1524
    %v1526 = vrot.slane %v1512, %v1525
    %v1527 = vcombine.low %v1519, %v1526
    %v1529 = vadd.f32 %v1506, %v1527
    %v1530 = vmul.f32 %v1529, 0.5
    %v1531 = vtanh.pop %v1530
    %v1532 = vmul.f32 %v1531, 0.5
    %v1533 = vadd.f32 %v1532, 0.5
    %v1535 = vrot.slane %v1529, 6
    %v1537 = vtanh.pop %v1535
    %v1539 = vrot.slane %v1533, 2
    %v1541 = vmul.f32 %v1539, %v1311
    %v1542 = vmul.f32 %v1533, %v1537
    %v1543 = vadd.f32 %v1541, %v1542
    %v1544 = vtanh.pop %v1543
    %v1545 = vrot.slane %v1533, 4
    %v1547 = vmul.f32 %v1545, %v1544
    %v1548 = vpack.c.bf16 %v1547, %v1547
    %v1549 = vpack.c.bf16 %v1503, %v1503
    %1550 = vmatprep.subr.bf16.mxu0 %v600
    %1551 = vmatpush1.bf16.msra.mxu0 %v599
    %1552 = vmatprep.subr.bf16.mxu0 %v608
    %1553 = vmatpush1.bf16.msra.mxu0 %v607
    %1554 = vmatprep.subr.bf16.mxu0 %v616
    %1555 = vmatpush1.bf16.msra.mxu0 %v615
    %1556 = vmatprep.subr.bf16.mxu0 %v624
    %1557 = vmatpush1.bf16.msra.mxu0 %v623
    %1558 = vmatprep.subr.bf16.mxu0 %v632
    %1559 = vmatpush1.bf16.msra.mxu0 %v631
    %1560 = vmatprep.subr.bf16.mxu0 %v640
    %1561 = vmatpush1.bf16.msra.mxu0 %v639
    %1562 = vmatprep.subr.bf16.mxu0 %v648
    %1563 = vmatpush1.bf16.msra.mxu0 %v647
    %1564 = vmatprep.subr.bf16.mxu0 %v656
    %1565 = vmatpush1.bf16.msra.mxu0 %v655
    %1566 = vmatprep.subr.bf16.mxu0 %v664
    %1567 = vmatpush1.bf16.msra.mxu0 %v663
    %1568 = vmatprep.subr.bf16.mxu0 %v672
    %1569 = vmatpush1.bf16.msra.mxu0 %v671
    %1570 = vmatprep.subr.bf16.mxu0 %v680
    %1571 = vmatpush1.bf16.msra.mxu0 %v679
    %1572 = vmatprep.subr.bf16.mxu0 %v688
    %1573 = vmatpush1.bf16.msra.mxu0 %v687
    %1574 = vmatprep.subr.bf16.mxu0 %v696
    %1575 = vmatpush1.bf16.msra.mxu0 %v695
    %1576 = vmatprep.subr.bf16.mxu0 %v704
    %1577 = vmatpush1.bf16.msra.mxu0 %v703
    %1578 = vmatprep.subr.bf16.mxu0 %v712
    %1579 = vmatpush1.bf16.msra.mxu0 %v711
    %1580 = vmatprep.subr.bf16.mxu0 %v720
    %1581 = vmatpush1.bf16.msra.mxu0 %v719
    %1582 = vmatprep.mubr.bf16.mxu0 %v1549
    %1583 = vmatmul.mubr.bf16.gmra.mrb[0].mxu0 %v1548
    %v1584 = vpop.f32.mrb[0].mxu0
    %v1585 = vadd.f32 0.0, %v1584
    %v1586 = vpop.f32.mrb[0].mxu0
    %v1587 = vadd.f32 0.0, %v1586
    %v1588 = vpop.f32.mrb[0].mxu0
    %v1589 = vpop.f32.mrb[0].mxu0
    %1590 = vdwg.mxu0
    %1591 = vmatprep.subr.bf16.mxu0 %v602
    %1592 = vmatpush1.bf16.msra.mxu0 %v601
    %1593 = vmatprep.subr.bf16.mxu0 %v610
    %1594 = vmatpush1.bf16.msra.mxu0 %v609
    %1595 = vmatprep.subr.bf16.mxu0 %v618
    %1596 = vmatpush1.bf16.msra.mxu0 %v617
    %1597 = vmatprep.subr.bf16.mxu0 %v626
    %1598 = vmatpush1.bf16.msra.mxu0 %v625
    %1599 = vmatprep.subr.bf16.mxu0 %v634
    %1600 = vmatpush1.bf16.msra.mxu0 %v633
    %1601 = vmatprep.subr.bf16.mxu0 %v642
    %1602 = vmatpush1.bf16.msra.mxu0 %v641
    %1603 = vmatprep.subr.bf16.mxu0 %v650
    %1604 = vmatpush1.bf16.msra.mxu0 %v649
    %1605 = vmatprep.subr.bf16.mxu0 %v658
    %1606 = vmatpush1.bf16.msra.mxu0 %v657
    %1607 = vmatprep.subr.bf16.mxu0 %v666
    %1608 = vmatpush1.bf16.msra.mxu0 %v665
    %1609 = vmatprep.subr.bf16.mxu0 %v674
    %1610 = vmatpush1.bf16.msra.mxu0 %v673
    %1611 = vmatprep.subr.bf16.mxu0 %v682
    %1612 = vmatpush1.bf16.msra.mxu0 %v681
    %1613 = vmatprep.subr.bf16.mxu0 %v690
    %1614 = vmatpush1.bf16.msra.mxu0 %v689
    %1615 = vmatprep.subr.bf16.mxu0 %v698
    %1616 = vmatpush1.bf16.msra.mxu0 %v697
    %1617 = vmatprep.subr.bf16.mxu0 %v706
    %1618 = vmatpush1.bf16.msra.mxu0 %v705
    %1619 = vmatprep.subr.bf16.mxu0 %v714
    %1620 = vmatpush1.bf16.msra.mxu0 %v713
    %1621 = vmatprep.subr.bf16.mxu0 %v722
    %1622 = vmatpush1.bf16.msra.mxu0 %v721
    %1623 = vmatprep.mubr.bf16.mxu0 %v1549
    %1624 = vmatmul.mubr.bf16.gmra.mrb[0].mxu0 %v1548
    %v1625 = vpop.f32.mrb[0].mxu0
    %v1626 = vadd.f32 0.0, %v1625
    %v1627 = vpop.f32.mrb[0].mxu0
    %v1628 = vadd.f32 0.0, %v1627
    %v1629 = vpop.f32.mrb[0].mxu0
    %v1630 = vpop.f32.mrb[0].mxu0
    %1631 = vdwg.mxu0
    %1632 = vmatprep.subr.bf16.mxu0 %v604
    %1633 = vmatpush1.bf16.msra.mxu0 %v603
    %1634 = vmatprep.subr.bf16.mxu0 %v612
    %1635 = vmatpush1.bf16.msra.mxu0 %v611
    %1636 = vmatprep.subr.bf16.mxu0 %v620
    %1637 = vmatpush1.bf16.msra.mxu0 %v619
    %1638 = vmatprep.subr.bf16.mxu0 %v628
    %1639 = vmatpush1.bf16.msra.mxu0 %v627
    %1640 = vmatprep.subr.bf16.mxu0 %v636
    %1641 = vmatpush1.bf16.msra.mxu0 %v635
    %1642 = vmatprep.subr.bf16.mxu0 %v644
    %1643 = vmatpush1.bf16.msra.mxu0 %v643
    %1644 = vmatprep.subr.bf16.mxu0 %v652
    %1645 = vmatpush1.bf16.msra.mxu0 %v651
    %1646 = vmatprep.subr.bf16.mxu0 %v660
    %1647 = vmatpush1.bf16.msra.mxu0 %v659
    %1648 = vmatprep.subr.bf16.mxu0 %v668
    %1649 = vmatpush1.bf16.msra.mxu0 %v667
    %1650 = vmatprep.subr.bf16.mxu0 %v676
    %1651 = vmatpush1.bf16.msra.mxu0 %v675
    %1652 = vmatprep.subr.bf16.mxu0 %v684
    %1653 = vmatpush1.bf16.msra.mxu0 %v683
    %1654 = vmatprep.subr.bf16.mxu0 %v692
    %1655 = vmatpush1.bf16.msra.mxu0 %v691
    %1656 = vmatprep.subr.bf16.mxu0 %v700
    %1657 = vmatpush1.bf16.msra.mxu0 %v699
    %1658 = vmatprep.subr.bf16.mxu0 %v708
    %1659 = vmatpush1.bf16.msra.mxu0 %v707
    %1660 = vmatprep.subr.bf16.mxu0 %v716
    %1661 = vmatpush1.bf16.msra.mxu0 %v715
    %1662 = vmatprep.subr.bf16.mxu0 %v724
    %1663 = vmatpush1.bf16.msra.mxu0 %v723
    %1664 = vmatprep.mubr.bf16.mxu0 %v1549
    %1665 = vmatmul.mubr.bf16.gmra.mrb[0].mxu0 %v1548
    %v1666 = vpop.f32.mrb[0].mxu0
    %v1667 = vadd.f32 0.0, %v1666
    %v1668 = vpop.f32.mrb[0].mxu0
    %v1669 = vadd.f32 0.0, %v1668
    %v1670 = vpop.f32.mrb[0].mxu0
    %v1671 = vpop.f32.mrb[0].mxu0
    %1672 = vdwg.mxu0
    %1673 = vmatprep.subr.bf16.mxu0 %v606
    %1674 = vmatpush1.bf16.msra.mxu0 %v605
    %1675 = vmatprep.subr.bf16.mxu0 %v614
    %1676 = vmatpush1.bf16.msra.mxu0 %v613
    %1677 = vmatprep.subr.bf16.mxu0 %v622
    %1678 = vmatpush1.bf16.msra.mxu0 %v621
    %1679 = vmatprep.subr.bf16.mxu0 %v630
    %1680 = vmatpush1.bf16.msra.mxu0 %v629
    %1681 = vmatprep.subr.bf16.mxu0 %v638
    %1682 = vmatpush1.bf16.msra.mxu0 %v637
    %1683 = vmatprep.subr.bf16.mxu0 %v646
    %1684 = vmatpush1.bf16.msra.mxu0 %v645
    %1685 = vmatprep.subr.bf16.mxu0 %v654
    %1686 = vmatpush1.bf16.msra.mxu0 %v653
    %1687 = vmatprep.subr.bf16.mxu0 %v662
    %1688 = vmatpush1.bf16.msra.mxu0 %v661
    %1689 = vmatprep.subr.bf16.mxu0 %v670
    %1690 = vmatpush1.bf16.msra.mxu0 %v669
    %1691 = vmatprep.subr.bf16.mxu0 %v678
    %1692 = vmatpush1.bf16.msra.mxu0 %v677
    %1693 = vmatprep.subr.bf16.mxu0 %v686
    %1694 = vmatpush1.bf16.msra.mxu0 %v685
    %1695 = vmatprep.subr.bf16.mxu0 %v694
    %1696 = vmatpush1.bf16.msra.mxu0 %v693
    %1697 = vmatprep.subr.bf16.mxu0 %v702
    %1698 = vmatpush1.bf16.msra.mxu0 %v701
    %1699 = vmatprep.subr.bf16.mxu0 %v710
    %1700 = vmatpush1.bf16.msra.mxu0 %v709
    %1701 = vmatprep.subr.bf16.mxu0 %v718
    %1702 = vmatpush1.bf16.msra.mxu0 %v717
    %1703 = vmatprep.subr.bf16.mxu0 %v726
    %1704 = vmatpush1.bf16.msra.mxu0 %v725
    %1705 = vmatprep.mubr.bf16.mxu0 %v1549
    %1706 = vmatmul.mubr.bf16.gmra.mrb[0].mxu0 %v1548
    %v1707 = vpop.f32.mrb[0].mxu0
    %v1708 = vadd.f32 0.0, %v1707
    %v1709 = vpop.f32.mrb[0].mxu0
    %v1710 = vadd.f32 0.0, %v1709
    %v1711 = vpop.f32.mrb[0].mxu0
    %v1712 = vpop.f32.mrb[0].mxu0
    %1713 = vdwg.mxu0
    %v1714 = vadd.f32 %v1667, %v177
    %v1715 = vadd.f32 %v1669, %v181
    %v1716 = vadd.f32 %v1708, %v185
    %v1717 = vadd.f32 %v1710, %v189
    %v1718 = vmul.f32 %v1714, 0.5
    %v1719 = vmul.f32 %v1715, 0.5
    %v1720 = vmul.f32 %v1716, 0.5
    %v1721 = vtanh.pop %v1718
    %v1722 = vtanh.pop %v1719
    %v1723 = vtanh.pop %v1720
    %v1724 = vmul.f32 %v1721, 0.5
    %v1725 = vmul.f32 %v1722, 0.5
    %v1726 = vmul.f32 %v1723, 0.5
    %v1727 = vadd.f32 %v1724, 0.5
    %v1728 = vadd.f32 %v1725, 0.5
    %v1729 = vadd.f32 %v1726, 0.5
    %v1730 = vtanh.pop %v1717
    %v1731 = vmul.f32 %v1728, %v1501
    %v1732 = vmul.f32 %v1727, %v1730
    %v1733 = vadd.f32 %v1731, %v1732
    %v1734 = vtanh.pop %v1733
    %v1735 = vmul.f32 %v1729, %v1734
    %v1736 = vmax.f32 %v1504, %v1735
    %s1737 = scalar_lea.vmem [#allocation2], 32
    %v1738 = vld [vmem:[%s1737] sm:$0xff]
    %v1743 = vcombine.low %v1585, %v1587
    %v1744 = vcombine.low %v1626, %v1628
    %v1746 = vunpack.c.l.s4 1983009808
    %v1747 = vunpack.c.0.s8 %v1746
    %v1748 = vlaneseq
    %v1749 = vshrl.u32 %v1748, 7
    %v1750 = vsub.s32 %v1747, %v1749
    %v1751 = vrot.slane %v1743, %v1750
    %v1753 = vunpack.c.l.s4 1983009808
    %v1754 = vunpack.c.0.s8 %v1753
    %v1755 = vlaneseq
    %v1756 = vshrl.u32 %v1755, 7
    %v1757 = vsub.s32 %v1754, %v1756
    %v1758 = vrot.slane %v1744, %v1757
    %v1759 = vcombine.low %v1751, %v1758
    %v1761 = vadd.f32 %v1738, %v1759
    %v1762 = vmul.f32 %v1761, 0.5
    %v1763 = vtanh.pop %v1762
    %v1764 = vmul.f32 %v1763, 0.5
    %v1765 = vadd.f32 %v1764, 0.5
    %v1767 = vrot.slane %v1761, 6
    %v1769 = vtanh.pop %v1767
    %v1771 = vrot.slane %v1765, 2
    %v1773 = vmul.f32 %v1771, %v1543
    %v1774 = vmul.f32 %v1765, %v1769
    %v1775 = vadd.f32 %v1773, %v1774
    %v1776 = vtanh.pop %v1775
    %v1777 = vrot.slane %v1765, 4
    %v1779 = vmul.f32 %v1777, %v1776
    %v1780 = vpack.c.bf16 %v1779, %v1779
    %v1781 = vpack.c.bf16 %v1735, %v1735
    %1782 = vmatprep.subr.bf16.mxu0 %v600
    %1783 = vmatpush1.bf16.msra.mxu0 %v599
    %1784 = vmatprep.subr.bf16.mxu0 %v608
    %1785 = vmatpush1.bf16.msra.mxu0 %v607
    %1786 = vmatprep.subr.bf16.mxu0 %v616
    %1787 = vmatpush1.bf16.msra.mxu0 %v615
    %1788 = vmatprep.subr.bf16.mxu0 %v624
    %1789 = vmatpush1.bf16.msra.mxu0 %v623
    %1790 = vmatprep.subr.bf16.mxu0 %v632
    %1791 = vmatpush1.bf16.msra.mxu0 %v631
    %1792 = vmatprep.subr.bf16.mxu0 %v640
    %1793 = vmatpush1.bf16.msra.mxu0 %v639
    %1794 = vmatprep.subr.bf16.mxu0 %v648
    %1795 = vmatpush1.bf16.msra.mxu0 %v647
    %1796 = vmatprep.subr.bf16.mxu0 %v656
    %1797 = vmatpush1.bf16.msra.mxu0 %v655
    %1798 = vmatprep.subr.bf16.mxu0 %v664
    %1799 = vmatpush1.bf16.msra.mxu0 %v663
    %1800 = vmatprep.subr.bf16.mxu0 %v672
    %1801 = vmatpush1.bf16.msra.mxu0 %v671
    %1802 = vmatprep.subr.bf16.mxu0 %v680
    %1803 = vmatpush1.bf16.msra.mxu0 %v679
    %1804 = vmatprep.subr.bf16.mxu0 %v688
    %1805 = vmatpush1.bf16.msra.mxu0 %v687
    %1806 = vmatprep.subr.bf16.mxu0 %v696
    %1807 = vmatpush1.bf16.msra.mxu0 %v695
    %1808 = vmatprep.subr.bf16.mxu0 %v704
    %1809 = vmatpush1.bf16.msra.mxu0 %v703
    %1810 = vmatprep.subr.bf16.mxu0 %v712
    %1811 = vmatpush1.bf16.msra.mxu0 %v711
    %1812 = vmatprep.subr.bf16.mxu0 %v720
    %1813 = vmatpush1.bf16.msra.mxu0 %v719
    %1814 = vmatprep.mubr.bf16.mxu0 %v1781
    %1815 = vmatmul.mubr.bf16.gmra.mrb[0].mxu0 %v1780
    %v1816 = vpop.f32.mrb[0].mxu0
    %v1817 = vadd.f32 0.0, %v1816
    %v1818 = vpop.f32.mrb[0].mxu0
    %v1819 = vadd.f32 0.0, %v1818
    %v1820 = vpop.f32.mrb[0].mxu0
    %v1821 = vpop.f32.mrb[0].mxu0
    %1822 = vdwg.mxu0
    %1823 = vmatprep.subr.bf16.mxu0 %v602
    %1824 = vmatpush1.bf16.msra.mxu0 %v601
    %1825 = vmatprep.subr.bf16.mxu0 %v610
    %1826 = vmatpush1.bf16.msra.mxu0 %v609
    %1827 = vmatprep.subr.bf16.mxu0 %v618
    %1828 = vmatpush1.bf16.msra.mxu0 %v617
    %1829 = vmatprep.subr.bf16.mxu0 %v626
    %1830 = vmatpush1.bf16.msra.mxu0 %v625
    %1831 = vmatprep.subr.bf16.mxu0 %v634
    %1832 = vmatpush1.bf16.msra.mxu0 %v633
    %1833 = vmatprep.subr.bf16.mxu0 %v642
    %1834 = vmatpush1.bf16.msra.mxu0 %v641
    %1835 = vmatprep.subr.bf16.mxu0 %v650
    %1836 = vmatpush1.bf16.msra.mxu0 %v649
    %1837 = vmatprep.subr.bf16.mxu0 %v658
    %1838 = vmatpush1.bf16.msra.mxu0 %v657
    %1839 = vmatprep.subr.bf16.mxu0 %v666
    %1840 = vmatpush1.bf16.msra.mxu0 %v665
    %1841 = vmatprep.subr.bf16.mxu0 %v674
    %1842 = vmatpush1.bf16.msra.mxu0 %v673
    %1843 = vmatprep.subr.bf16.mxu0 %v682
    %1844 = vmatpush1.bf16.msra.mxu0 %v681
    %1845 = vmatprep.subr.bf16.mxu0 %v690
    %1846 = vmatpush1.bf16.msra.mxu0 %v689
    %1847 = vmatprep.subr.bf16.mxu0 %v698
    %1848 = vmatpush1.bf16.msra.mxu0 %v697
    %1849 = vmatprep.subr.bf16.mxu0 %v706
    %1850 = vmatpush1.bf16.msra.mxu0 %v705
    %1851 = vmatprep.subr.bf16.mxu0 %v714
    %1852 = vmatpush1.bf16.msra.mxu0 %v713
    %1853 = vmatprep.subr.bf16.mxu0 %v722
    %1854 = vmatpush1.bf16.msra.mxu0 %v721
    %1855 = vmatprep.mubr.bf16.mxu0 %v1781
    %1856 = vmatmul.mubr.bf16.gmra.mrb[0].mxu0 %v1780
    %v1857 = vpop.f32.mrb[0].mxu0
    %v1858 = vadd.f32 0.0, %v1857
    %v1859 = vpop.f32.mrb[0].mxu0
    %v1860 = vadd.f32 0.0, %v1859
    %v1861 = vpop.f32.mrb[0].mxu0
    %v1862 = vpop.f32.mrb[0].mxu0
    %1863 = vdwg.mxu0
    %1864 = vmatprep.subr.bf16.mxu0 %v604
    %1865 = vmatpush1.bf16.msra.mxu0 %v603
    %1866 = vmatprep.subr.bf16.mxu0 %v612
    %1867 = vmatpush1.bf16.msra.mxu0 %v611
    %1868 = vmatprep.subr.bf16.mxu0 %v620
    %1869 = vmatpush1.bf16.msra.mxu0 %v619
    %1870 = vmatprep.subr.bf16.mxu0 %v628
    %1871 = vmatpush1.bf16.msra.mxu0 %v627
    %1872 = vmatprep.subr.bf16.mxu0 %v636
    %1873 = vmatpush1.bf16.msra.mxu0 %v635
    %1874 = vmatprep.subr.bf16.mxu0 %v644
    %1875 = vmatpush1.bf16.msra.mxu0 %v643
    %1876 = vmatprep.subr.bf16.mxu0 %v652
    %1877 = vmatpush1.bf16.msra.mxu0 %v651
    %1878 = vmatprep.subr.bf16.mxu0 %v660
    %1879 = vmatpush1.bf16.msra.mxu0 %v659
    %1880 = vmatprep.subr.bf16.mxu0 %v668
    %1881 = vmatpush1.bf16.msra.mxu0 %v667
    %1882 = vmatprep.subr.bf16.mxu0 %v676
    %1883 = vmatpush1.bf16.msra.mxu0 %v675
    %1884 = vmatprep.subr.bf16.mxu0 %v684
    %1885 = vmatpush1.bf16.msra.mxu0 %v683
    %1886 = vmatprep.subr.bf16.mxu0 %v692
    %1887 = vmatpush1.bf16.msra.mxu0 %v691
    %1888 = vmatprep.subr.bf16.mxu0 %v700
    %1889 = vmatpush1.bf16.msra.mxu0 %v699
    %1890 = vmatprep.subr.bf16.mxu0 %v708
    %1891 = vmatpush1.bf16.msra.mxu0 %v707
    %1892 = vmatprep.subr.bf16.mxu0 %v716
    %1893 = vmatpush1.bf16.msra.mxu0 %v715
    %1894 = vmatprep.subr.bf16.mxu0 %v724
    %1895 = vmatpush1.bf16.msra.mxu0 %v723
    %1896 = vmatprep.mubr.bf16.mxu0 %v1781
    %1897 = vmatmul.mubr.bf16.gmra.mrb[0].mxu0 %v1780
    %v1898 = vpop.f32.mrb[0].mxu0
    %v1899 = vadd.f32 0.0, %v1898
    %v1900 = vpop.f32.mrb[0].mxu0
    %v1901 = vadd.f32 0.0, %v1900
    %v1902 = vpop.f32.mrb[0].mxu0
    %v1903 = vpop.f32.mrb[0].mxu0
    %1904 = vdwg.mxu0
    %1905 = vmatprep.subr.bf16.mxu0 %v606
    %1906 = vmatpush1.bf16.msra.mxu0 %v605
    %1907 = vmatprep.subr.bf16.mxu0 %v614
    %1908 = vmatpush1.bf16.msra.mxu0 %v613
    %1909 = vmatprep.subr.bf16.mxu0 %v622
    %1910 = vmatpush1.bf16.msra.mxu0 %v621
    %1911 = vmatprep.subr.bf16.mxu0 %v630
    %1912 = vmatpush1.bf16.msra.mxu0 %v629
    %1913 = vmatprep.subr.bf16.mxu0 %v638
    %1914 = vmatpush1.bf16.msra.mxu0 %v637
    %1915 = vmatprep.subr.bf16.mxu0 %v646
    %1916 = vmatpush1.bf16.msra.mxu0 %v645
    %1917 = vmatprep.subr.bf16.mxu0 %v654
    %1918 = vmatpush1.bf16.msra.mxu0 %v653
    %1919 = vmatprep.subr.bf16.mxu0 %v662
    %1920 = vmatpush1.bf16.msra.mxu0 %v661
    %1921 = vmatprep.subr.bf16.mxu0 %v670
    %1922 = vmatpush1.bf16.msra.mxu0 %v669
    %1923 = vmatprep.subr.bf16.mxu0 %v678
    %1924 = vmatpush1.bf16.msra.mxu0 %v677
    %1925 = vmatprep.subr.bf16.mxu0 %v686
    %1926 = vmatpush1.bf16.msra.mxu0 %v685
    %1927 = vmatprep.subr.bf16.mxu0 %v694
    %1928 = vmatpush1.bf16.msra.mxu0 %v693
    %1929 = vmatprep.subr.bf16.mxu0 %v702
    %1930 = vmatpush1.bf16.msra.mxu0 %v701
    %1931 = vmatprep.subr.bf16.mxu0 %v710
    %1932 = vmatpush1.bf16.msra.mxu0 %v709
    %1933 = vmatprep.subr.bf16.mxu0 %v718
    %1934 = vmatpush1.bf16.msra.mxu0 %v717
    %1935 = vmatprep.subr.bf16.mxu0 %v726
    %1936 = vmatpush1.bf16.msra.mxu0 %v725
    %1937 = vmatprep.mubr.bf16.mxu0 %v1781
    %1938 = vmatmul.mubr.bf16.gmra.mrb[0].mxu0 %v1780
    %v1939 = vpop.f32.mrb[0].mxu0
    %v1940 = vadd.f32 0.0, %v1939
    %v1941 = vpop.f32.mrb[0].mxu0
    %v1942 = vadd.f32 0.0, %v1941
    %v1943 = vpop.f32.mrb[0].mxu0
    %v1944 = vpop.f32.mrb[0].mxu0
    %1945 = vdwg.mxu0
    %v1946 = vadd.f32 %v1899, %v177
    %v1947 = vadd.f32 %v1901, %v181
    %v1948 = vadd.f32 %v1940, %v185
    %v1949 = vadd.f32 %v1942, %v189
    %v1950 = vmul.f32 %v1946, 0.5
    %v1951 = vmul.f32 %v1947, 0.5
    %v1952 = vmul.f32 %v1948, 0.5
    %v1953 = vtanh.pop %v1950
    %v1954 = vtanh.pop %v1951
    %v1955 = vtanh.pop %v1952
    %v1956 = vmul.f32 %v1953, 0.5
    %v1957 = vmul.f32 %v1954, 0.5
    %v1958 = vmul.f32 %v1955, 0.5
    %v1959 = vadd.f32 %v1956, 0.5
    %v1960 = vadd.f32 %v1957, 0.5
    %v1961 = vadd.f32 %v1958, 0.5
    %v1962 = vtanh.pop %v1949
    %v1963 = vmul.f32 %v1960, %v1733
    %v1964 = vmul.f32 %v1959, %v1962
    %v1965 = vadd.f32 %v1963, %v1964
    %v1966 = vtanh.pop %v1965
    %v1967 = vmul.f32 %v1961, %v1966
    %v1968 = vmax.f32 %v1736, %v1967
    %s1969 = scalar_lea.vmem [#allocation2], 40
    %v1970 = vld [vmem:[%s1969] sm:$0xff]
    %v1975 = vcombine.low %v1817, %v1819
    %v1976 = vcombine.low %v1858, %v1860
    %v1978 = vunpack.c.l.s4 1983009808
    %v1979 = vunpack.c.0.s8 %v1978
    %v1980 = vlaneseq
    %v1981 = vshrl.u32 %v1980, 7
    %v1982 = vsub.s32 %v1979, %v1981
    %v1983 = vrot.slane %v1975, %v1982
    %v1985 = vunpack.c.l.s4 1983009808
    %v1986 = vunpack.c.0.s8 %v1985
    %v1987 = vlaneseq
    %v1988 = vshrl.u32 %v1987, 7
    %v1989 = vsub.s32 %v1986, %v1988
    %v1990 = vrot.slane %v1976, %v1989
    %v1991 = vcombine.low %v1983, %v1990
    %v1993 = vadd.f32 %v1970, %v1991
    %v1994 = vmul.f32 %v1993, 0.5
    %v1995 = vtanh.pop %v1994
    %v1996 = vmul.f32 %v1995, 0.5
    %v1997 = vadd.f32 %v1996, 0.5
    %v1999 = vrot.slane %v1993, 6
    %v2001 = vtanh.pop %v1999
    %v2003 = vrot.slane %v1997, 2
    %v2005 = vmul.f32 %v2003, %v1775
    %v2006 = vmul.f32 %v1997, %v2001
    %v2007 = vadd.f32 %v2005, %v2006
    %v2008 = vtanh.pop %v2007
    %v2009 = vrot.slane %v1997, 4
    %v2011 = vmul.f32 %v2009, %v2008
    %v2012 = vpack.c.bf16 %v2011, %v2011
    %v2013 = vpack.c.bf16 %v1967, %v1967
    %2014 = vmatprep.subr.bf16.mxu0 %v600
    %2015 = vmatpush1.bf16.msra.mxu0 %v599
    %2016 = vmatprep.subr.bf16.mxu0 %v608
    %2017 = vmatpush1.bf16.msra.mxu0 %v607
    %2018 = vmatprep.subr.bf16.mxu0 %v616
    %2019 = vmatpush1.bf16.msra.mxu0 %v615
    %2020 = vmatprep.subr.bf16.mxu0 %v624
    %2021 = vmatpush1.bf16.msra.mxu0 %v623
    %2022 = vmatprep.subr.bf16.mxu0 %v632
    %2023 = vmatpush1.bf16.msra.mxu0 %v631
    %2024 = vmatprep.subr.bf16.mxu0 %v640
    %2025 = vmatpush1.bf16.msra.mxu0 %v639
    %2026 = vmatprep.subr.bf16.mxu0 %v648
    %2027 = vmatpush1.bf16.msra.mxu0 %v647
    %2028 = vmatprep.subr.bf16.mxu0 %v656
    %2029 = vmatpush1.bf16.msra.mxu0 %v655
    %2030 = vmatprep.subr.bf16.mxu0 %v664
    %2031 = vmatpush1.bf16.msra.mxu0 %v663
    %2032 = vmatprep.subr.bf16.mxu0 %v672
    %2033 = vmatpush1.bf16.msra.mxu0 %v671
    %2034 = vmatprep.subr.bf16.mxu0 %v680
    %2035 = vmatpush1.bf16.msra.mxu0 %v679
    %2036 = vmatprep.subr.bf16.mxu0 %v688
    %2037 = vmatpush1.bf16.msra.mxu0 %v687
    %2038 = vmatprep.subr.bf16.mxu0 %v696
    %2039 = vmatpush1.bf16.msra.mxu0 %v695
    %2040 = vmatprep.subr.bf16.mxu0 %v704
    %2041 = vmatpush1.bf16.msra.mxu0 %v703
    %2042 = vmatprep.subr.bf16.mxu0 %v712
    %2043 = vmatpush1.bf16.msra.mxu0 %v711
    %2044 = vmatprep.subr.bf16.mxu0 %v720
    %2045 = vmatpush1.bf16.msra.mxu0 %v719
    %2046 = vmatprep.mubr.bf16.mxu0 %v2013
    %2047 = vmatmul.mubr.bf16.gmra.mrb[0].mxu0 %v2012
    %v2048 = vpop.f32.mrb[0].mxu0
    %v2049 = vadd.f32 0.0, %v2048
    %v2050 = vpop.f32.mrb[0].mxu0
    %v2051 = vadd.f32 0.0, %v2050
    %v2052 = vpop.f32.mrb[0].mxu0
    %v2053 = vpop.f32.mrb[0].mxu0
    %2054 = vdwg.mxu0
    %2055 = vmatprep.subr.bf16.mxu0 %v602
    %2056 = vmatpush1.bf16.msra.mxu0 %v601
    %2057 = vmatprep.subr.bf16.mxu0 %v610
    %2058 = vmatpush1.bf16.msra.mxu0 %v609
    %2059 = vmatprep.subr.bf16.mxu0 %v618
    %2060 = vmatpush1.bf16.msra.mxu0 %v617
    %2061 = vmatprep.subr.bf16.mxu0 %v626
    %2062 = vmatpush1.bf16.msra.mxu0 %v625
    %2063 = vmatprep.subr.bf16.mxu0 %v634
    %2064 = vmatpush1.bf16.msra.mxu0 %v633
    %2065 = vmatprep.subr.bf16.mxu0 %v642
    %2066 = vmatpush1.bf16.msra.mxu0 %v641
    %2067 = vmatprep.subr.bf16.mxu0 %v650
    %2068 = vmatpush1.bf16.msra.mxu0 %v649
    %2069 = vmatprep.subr.bf16.mxu0 %v658
    %2070 = vmatpush1.bf16.msra.mxu0 %v657
    %2071 = vmatprep.subr.bf16.mxu0 %v666
    %2072 = vmatpush1.bf16.msra.mxu0 %v665
    %2073 = vmatprep.subr.bf16.mxu0 %v674
    %2074 = vmatpush1.bf16.msra.mxu0 %v673
    %2075 = vmatprep.subr.bf16.mxu0 %v682
    %2076 = vmatpush1.bf16.msra.mxu0 %v681
    %2077 = vmatprep.subr.bf16.mxu0 %v690
    %2078 = vmatpush1.bf16.msra.mxu0 %v689
    %2079 = vmatprep.subr.bf16.mxu0 %v698
    %2080 = vmatpush1.bf16.msra.mxu0 %v697
    %2081 = vmatprep.subr.bf16.mxu0 %v706
    %2082 = vmatpush1.bf16.msra.mxu0 %v705
    %2083 = vmatprep.subr.bf16.mxu0 %v714
    %2084 = vmatpush1.bf16.msra.mxu0 %v713
    %2085 = vmatprep.subr.bf16.mxu0 %v722
    %2086 = vmatpush1.bf16.msra.mxu0 %v721
    %2087 = vmatprep.mubr.bf16.mxu0 %v2013
    %2088 = vmatmul.mubr.bf16.gmra.mrb[0].mxu0 %v2012
    %v2089 = vpop.f32.mrb[0].mxu0
    %v2090 = vadd.f32 0.0, %v2089
    %v2091 = vpop.f32.mrb[0].mxu0
    %v2092 = vadd.f32 0.0, %v2091
    %v2093 = vpop.f32.mrb[0].mxu0
    %v2094 = vpop.f32.mrb[0].mxu0
    %2095 = vdwg.mxu0
    %2096 = vmatprep.subr.bf16.mxu0 %v604
    %2097 = vmatpush1.bf16.msra.mxu0 %v603
    %2098 = vmatprep.subr.bf16.mxu0 %v612
    %2099 = vmatpush1.bf16.msra.mxu0 %v611
    %2100 = vmatprep.subr.bf16.mxu0 %v620
    %2101 = vmatpush1.bf16.msra.mxu0 %v619
    %2102 = vmatprep.subr.bf16.mxu0 %v628
    %2103 = vmatpush1.bf16.msra.mxu0 %v627
    %2104 = vmatprep.subr.bf16.mxu0 %v636
    %2105 = vmatpush1.bf16.msra.mxu0 %v635
    %2106 = vmatprep.subr.bf16.mxu0 %v644
    %2107 = vmatpush1.bf16.msra.mxu0 %v643
    %2108 = vmatprep.subr.bf16.mxu0 %v652
    %2109 = vmatpush1.bf16.msra.mxu0 %v651
    %2110 = vmatprep.subr.bf16.mxu0 %v660
    %2111 = vmatpush1.bf16.msra.mxu0 %v659
    %2112 = vmatprep.subr.bf16.mxu0 %v668
    %2113 = vmatpush1.bf16.msra.mxu0 %v667
    %2114 = vmatprep.subr.bf16.mxu0 %v676
    %2115 = vmatpush1.bf16.msra.mxu0 %v675
    %2116 = vmatprep.subr.bf16.mxu0 %v684
    %2117 = vmatpush1.bf16.msra.mxu0 %v683
    %2118 = vmatprep.subr.bf16.mxu0 %v692
    %2119 = vmatpush1.bf16.msra.mxu0 %v691
    %2120 = vmatprep.subr.bf16.mxu0 %v700
    %2121 = vmatpush1.bf16.msra.mxu0 %v699
    %2122 = vmatprep.subr.bf16.mxu0 %v708
    %2123 = vmatpush1.bf16.msra.mxu0 %v707
    %2124 = vmatprep.subr.bf16.mxu0 %v716
    %2125 = vmatpush1.bf16.msra.mxu0 %v715
    %2126 = vmatprep.subr.bf16.mxu0 %v724
    %2127 = vmatpush1.bf16.msra.mxu0 %v723
    %2128 = vmatprep.mubr.bf16.mxu0 %v2013
    %2129 = vmatmul.mubr.bf16.gmra.mrb[0].mxu0 %v2012
    %v2130 = vpop.f32.mrb[0].mxu0
    %v2131 = vadd.f32 0.0, %v2130
    %v2132 = vpop.f32.mrb[0].mxu0
    %v2133 = vadd.f32 0.0, %v2132
    %v2134 = vpop.f32.mrb[0].mxu0
    %v2135 = vpop.f32.mrb[0].mxu0
    %2136 = vdwg.mxu0
    %2137 = vmatprep.subr.bf16.mxu0 %v606
    %2138 = vmatpush1.bf16.msra.mxu0 %v605
    %2139 = vmatprep.subr.bf16.mxu0 %v614
    %2140 = vmatpush1.bf16.msra.mxu0 %v613
    %2141 = vmatprep.subr.bf16.mxu0 %v622
    %2142 = vmatpush1.bf16.msra.mxu0 %v621
    %2143 = vmatprep.subr.bf16.mxu0 %v630
    %2144 = vmatpush1.bf16.msra.mxu0 %v629
    %2145 = vmatprep.subr.bf16.mxu0 %v638
    %2146 = vmatpush1.bf16.msra.mxu0 %v637
    %2147 = vmatprep.subr.bf16.mxu0 %v646
    %2148 = vmatpush1.bf16.msra.mxu0 %v645
    %2149 = vmatprep.subr.bf16.mxu0 %v654
    %2150 = vmatpush1.bf16.msra.mxu0 %v653
    %2151 = vmatprep.subr.bf16.mxu0 %v662
    %2152 = vmatpush1.bf16.msra.mxu0 %v661
    %2153 = vmatprep.subr.bf16.mxu0 %v670
    %2154 = vmatpush1.bf16.msra.mxu0 %v669
    %2155 = vmatprep.subr.bf16.mxu0 %v678
    %2156 = vmatpush1.bf16.msra.mxu0 %v677
    %2157 = vmatprep.subr.bf16.mxu0 %v686
    %2158 = vmatpush1.bf16.msra.mxu0 %v685
    %2159 = vmatprep.subr.bf16.mxu0 %v694
    %2160 = vmatpush1.bf16.msra.mxu0 %v693
    %2161 = vmatprep.subr.bf16.mxu0 %v702
    %2162 = vmatpush1.bf16.msra.mxu0 %v701
    %2163 = vmatprep.subr.bf16.mxu0 %v710
    %2164 = vmatpush1.bf16.msra.mxu0 %v709
    %2165 = vmatprep.subr.bf16.mxu0 %v718
    %2166 = vmatpush1.bf16.msra.mxu0 %v717
    %2167 = vmatprep.subr.bf16.mxu0 %v726
    %2168 = vmatpush1.bf16.msra.mxu0 %v725
    %2169 = vmatprep.mubr.bf16.mxu0 %v2013
    %2170 = vmatmul.mubr.bf16.gmra.mrb[0].mxu0 %v2012
    %v2171 = vpop.f32.mrb[0].mxu0
    %v2172 = vadd.f32 0.0, %v2171
    %v2173 = vpop.f32.mrb[0].mxu0
    %v2174 = vadd.f32 0.0, %v2173
    %v2175 = vpop.f32.mrb[0].mxu0
    %v2176 = vpop.f32.mrb[0].mxu0
    %2177 = vdwg.mxu0
    %v2178 = vadd.f32 %v2131, %v177
    %v2179 = vadd.f32 %v2133, %v181
    %v2180 = vadd.f32 %v2172, %v185
    %v2181 = vadd.f32 %v2174, %v189
    %v2182 = vmul.f32 %v2178, 0.5
    %v2183 = vmul.f32 %v2179, 0.5
    %v2184 = vmul.f32 %v2180, 0.5
    %v2185 = vtanh.pop %v2182
    %v2186 = vtanh.pop %v2183
    %v2187 = vtanh.pop %v2184
    %v2188 = vmul.f32 %v2185, 0.5
    %v2189 = vmul.f32 %v2186, 0.5
    %v2190 = vmul.f32 %v2187, 0.5
    %v2191 = vadd.f32 %v2188, 0.5
    %v2192 = vadd.f32 %v2189, 0.5
    %v2193 = vadd.f32 %v2190, 0.5
    %v2194 = vtanh.pop %v2181
    %v2195 = vmul.f32 %v2192, %v1965
    %v2196 = vmul.f32 %v2191, %v2194
    %v2197 = vadd.f32 %v2195, %v2196
    %v2198 = vtanh.pop %v2197
    %v2199 = vmul.f32 %v2193, %v2198
    %v2200 = vmax.f32 %v1968, %v2199
    %s2201 = scalar_lea.vmem [#allocation2], 48
    %v2202 = vld [vmem:[%s2201] sm:$0xff]
    %v2207 = vcombine.low %v2049, %v2051
    %v2208 = vcombine.low %v2090, %v2092
    %v2210 = vunpack.c.l.s4 1983009808
    %v2211 = vunpack.c.0.s8 %v2210
    %v2212 = vlaneseq
    %v2213 = vshrl.u32 %v2212, 7
    %v2214 = vsub.s32 %v2211, %v2213
    %v2215 = vrot.slane %v2207, %v2214
    %v2217 = vunpack.c.l.s4 1983009808
    %v2218 = vunpack.c.0.s8 %v2217
    %v2219 = vlaneseq
    %v2220 = vshrl.u32 %v2219, 7
    %v2221 = vsub.s32 %v2218, %v2220
    %v2222 = vrot.slane %v2208, %v2221
    %v2223 = vcombine.low %v2215, %v2222
    %v2225 = vadd.f32 %v2202, %v2223
    %v2226 = vmul.f32 %v2225, 0.5
    %v2227 = vtanh.pop %v2226
    %v2228 = vmul.f32 %v2227, 0.5
    %v2229 = vadd.f32 %v2228, 0.5
    %v2231 = vrot.slane %v2225, 6
    %v2233 = vtanh.pop %v2231
    %v2235 = vrot.slane %v2229, 2
    %v2237 = vmul.f32 %v2235, %v2007
    %v2238 = vmul.f32 %v2229, %v2233
    %v2239 = vadd.f32 %v2237, %v2238
    %v2240 = vtanh.pop %v2239
    %v2241 = vrot.slane %v2229, 4
    %v2243 = vmul.f32 %v2241, %v2240
    %v2244 = vpack.c.bf16 %v2243, %v2243
    %v2245 = vpack.c.bf16 %v2199, %v2199
    %2246 = vmatprep.subr.bf16.mxu0 %v600
    %2247 = vmatpush1.bf16.msra.mxu0 %v599
    %2248 = vmatprep.subr.bf16.mxu0 %v608
    %2249 = vmatpush1.bf16.msra.mxu0 %v607
    %2250 = vmatprep.subr.bf16.mxu0 %v616
    %2251 = vmatpush1.bf16.msra.mxu0 %v615
    %2252 = vmatprep.subr.bf16.mxu0 %v624
    %2253 = vmatpush1.bf16.msra.mxu0 %v623
    %2254 = vmatprep.subr.bf16.mxu0 %v632
    %2255 = vmatpush1.bf16.msra.mxu0 %v631
    %2256 = vmatprep.subr.bf16.mxu0 %v640
    %2257 = vmatpush1.bf16.msra.mxu0 %v639
    %2258 = vmatprep.subr.bf16.mxu0 %v648
    %2259 = vmatpush1.bf16.msra.mxu0 %v647
    %2260 = vmatprep.subr.bf16.mxu0 %v656
    %2261 = vmatpush1.bf16.msra.mxu0 %v655
    %2262 = vmatprep.subr.bf16.mxu0 %v664
    %2263 = vmatpush1.bf16.msra.mxu0 %v663
    %2264 = vmatprep.subr.bf16.mxu0 %v672
    %2265 = vmatpush1.bf16.msra.mxu0 %v671
    %2266 = vmatprep.subr.bf16.mxu0 %v680
    %2267 = vmatpush1.bf16.msra.mxu0 %v679
    %2268 = vmatprep.subr.bf16.mxu0 %v688
    %2269 = vmatpush1.bf16.msra.mxu0 %v687
    %2270 = vmatprep.subr.bf16.mxu0 %v696
    %2271 = vmatpush1.bf16.msra.mxu0 %v695
    %2272 = vmatprep.subr.bf16.mxu0 %v704
    %2273 = vmatpush1.bf16.msra.mxu0 %v703
    %2274 = vmatprep.subr.bf16.mxu0 %v712
    %2275 = vmatpush1.bf16.msra.mxu0 %v711
    %2276 = vmatprep.subr.bf16.mxu0 %v720
    %2277 = vmatpush1.bf16.msra.mxu0 %v719
    %2278 = vmatprep.mubr.bf16.mxu0 %v2245
    %2279 = vmatmul.mubr.bf16.gmra.mrb[0].mxu0 %v2244
    %v2280 = vpop.f32.mrb[0].mxu0
    %v2281 = vadd.f32 0.0, %v2280
    %v2282 = vpop.f32.mrb[0].mxu0
    %v2283 = vadd.f32 0.0, %v2282
    %v2284 = vpop.f32.mrb[0].mxu0
    %v2285 = vpop.f32.mrb[0].mxu0
    %2286 = vdwg.mxu0
    %2287 = vmatprep.subr.bf16.mxu0 %v602
    %2288 = vmatpush1.bf16.msra.mxu0 %v601
    %2289 = vmatprep.subr.bf16.mxu0 %v610
    %2290 = vmatpush1.bf16.msra.mxu0 %v609
    %2291 = vmatprep.subr.bf16.mxu0 %v618
    %2292 = vmatpush1.bf16.msra.mxu0 %v617
    %2293 = vmatprep.subr.bf16.mxu0 %v626
    %2294 = vmatpush1.bf16.msra.mxu0 %v625
    %2295 = vmatprep.subr.bf16.mxu0 %v634
    %2296 = vmatpush1.bf16.msra.mxu0 %v633
    %2297 = vmatprep.subr.bf16.mxu0 %v642
    %2298 = vmatpush1.bf16.msra.mxu0 %v641
    %2299 = vmatprep.subr.bf16.mxu0 %v650
    %2300 = vmatpush1.bf16.msra.mxu0 %v649
    %2301 = vmatprep.subr.bf16.mxu0 %v658
    %2302 = vmatpush1.bf16.msra.mxu0 %v657
    %2303 = vmatprep.subr.bf16.mxu0 %v666
    %2304 = vmatpush1.bf16.msra.mxu0 %v665
    %2305 = vmatprep.subr.bf16.mxu0 %v674
    %2306 = vmatpush1.bf16.msra.mxu0 %v673
    %2307 = vmatprep.subr.bf16.mxu0 %v682
    %2308 = vmatpush1.bf16.msra.mxu0 %v681
    %2309 = vmatprep.subr.bf16.mxu0 %v690
    %2310 = vmatpush1.bf16.msra.mxu0 %v689
    %2311 = vmatprep.subr.bf16.mxu0 %v698
    %2312 = vmatpush1.bf16.msra.mxu0 %v697
    %2313 = vmatprep.subr.bf16.mxu0 %v706
    %2314 = vmatpush1.bf16.msra.mxu0 %v705
    %2315 = vmatprep.subr.bf16.mxu0 %v714
    %2316 = vmatpush1.bf16.msra.mxu0 %v713
    %2317 = vmatprep.subr.bf16.mxu0 %v722
    %2318 = vmatpush1.bf16.msra.mxu0 %v721
    %2319 = vmatprep.mubr.bf16.mxu0 %v2245
    %2320 = vmatmul.mubr.bf16.gmra.mrb[0].mxu0 %v2244
    %v2321 = vpop.f32.mrb[0].mxu0
    %v2322 = vadd.f32 0.0, %v2321
    %v2323 = vpop.f32.mrb[0].mxu0
    %v2324 = vadd.f32 0.0, %v2323
    %v2325 = vpop.f32.mrb[0].mxu0
    %v2326 = vpop.f32.mrb[0].mxu0
    %2327 = vdwg.mxu0
    %2328 = vmatprep.subr.bf16.mxu0 %v604
    %2329 = vmatpush1.bf16.msra.mxu0 %v603
    %2330 = vmatprep.subr.bf16.mxu0 %v612
    %2331 = vmatpush1.bf16.msra.mxu0 %v611
    %2332 = vmatprep.subr.bf16.mxu0 %v620
    %2333 = vmatpush1.bf16.msra.mxu0 %v619
    %2334 = vmatprep.subr.bf16.mxu0 %v628
    %2335 = vmatpush1.bf16.msra.mxu0 %v627
    %2336 = vmatprep.subr.bf16.mxu0 %v636
    %2337 = vmatpush1.bf16.msra.mxu0 %v635
    %2338 = vmatprep.subr.bf16.mxu0 %v644
    %2339 = vmatpush1.bf16.msra.mxu0 %v643
    %2340 = vmatprep.subr.bf16.mxu0 %v652
    %2341 = vmatpush1.bf16.msra.mxu0 %v651
    %2342 = vmatprep.subr.bf16.mxu0 %v660
    %2343 = vmatpush1.bf16.msra.mxu0 %v659
    %2344 = vmatprep.subr.bf16.mxu0 %v668
    %2345 = vmatpush1.bf16.msra.mxu0 %v667
    %2346 = vmatprep.subr.bf16.mxu0 %v676
    %2347 = vmatpush1.bf16.msra.mxu0 %v675
    %2348 = vmatprep.subr.bf16.mxu0 %v684
    %2349 = vmatpush1.bf16.msra.mxu0 %v683
    %2350 = vmatprep.subr.bf16.mxu0 %v692
    %2351 = vmatpush1.bf16.msra.mxu0 %v691
    %2352 = vmatprep.subr.bf16.mxu0 %v700
    %2353 = vmatpush1.bf16.msra.mxu0 %v699
    %2354 = vmatprep.subr.bf16.mxu0 %v708
    %2355 = vmatpush1.bf16.msra.mxu0 %v707
    %2356 = vmatprep.subr.bf16.mxu0 %v716
    %2357 = vmatpush1.bf16.msra.mxu0 %v715
    %2358 = vmatprep.subr.bf16.mxu0 %v724
    %2359 = vmatpush1.bf16.msra.mxu0 %v723
    %2360 = vmatprep.mubr.bf16.mxu0 %v2245
    %2361 = vmatmul.mubr.bf16.gmra.mrb[0].mxu0 %v2244
    %v2362 = vpop.f32.mrb[0].mxu0
    %v2363 = vadd.f32 0.0, %v2362
    %v2364 = vpop.f32.mrb[0].mxu0
    %v2365 = vadd.f32 0.0, %v2364
    %v2366 = vpop.f32.mrb[0].mxu0
    %v2367 = vpop.f32.mrb[0].mxu0
    %2368 = vdwg.mxu0
    %2369 = vmatprep.subr.bf16.mxu0 %v606
    %2370 = vmatpush1.bf16.msra.mxu0 %v605
    %2371 = vmatprep.subr.bf16.mxu0 %v614
    %2372 = vmatpush1.bf16.msra.mxu0 %v613
    %2373 = vmatprep.subr.bf16.mxu0 %v622
    %2374 = vmatpush1.bf16.msra.mxu0 %v621
    %2375 = vmatprep.subr.bf16.mxu0 %v630
    %2376 = vmatpush1.bf16.msra.mxu0 %v629
    %2377 = vmatprep.subr.bf16.mxu0 %v638
    %2378 = vmatpush1.bf16.msra.mxu0 %v637
    %2379 = vmatprep.subr.bf16.mxu0 %v646
    %2380 = vmatpush1.bf16.msra.mxu0 %v645
    %2381 = vmatprep.subr.bf16.mxu0 %v654
    %2382 = vmatpush1.bf16.msra.mxu0 %v653
    %2383 = vmatprep.subr.bf16.mxu0 %v662
    %2384 = vmatpush1.bf16.msra.mxu0 %v661
    %2385 = vmatprep.subr.bf16.mxu0 %v670
    %2386 = vmatpush1.bf16.msra.mxu0 %v669
    %2387 = vmatprep.subr.bf16.mxu0 %v678
    %2388 = vmatpush1.bf16.msra.mxu0 %v677
    %2389 = vmatprep.subr.bf16.mxu0 %v686
    %2390 = vmatpush1.bf16.msra.mxu0 %v685
    %2391 = vmatprep.subr.bf16.mxu0 %v694
    %2392 = vmatpush1.bf16.msra.mxu0 %v693
    %2393 = vmatprep.subr.bf16.mxu0 %v702
    %2394 = vmatpush1.bf16.msra.mxu0 %v701
    %2395 = vmatprep.subr.bf16.mxu0 %v710
    %2396 = vmatpush1.bf16.msra.mxu0 %v709
    %2397 = vmatprep.subr.bf16.mxu0 %v718
    %2398 = vmatpush1.bf16.msra.mxu0 %v717
    %2399 = vmatprep.subr.bf16.mxu0 %v726
    %2400 = vmatpush1.bf16.msra.mxu0 %v725
    %2401 = vmatprep.mubr.bf16.mxu0 %v2245
    %2402 = vmatmul.mubr.bf16.gmra.mrb[0].mxu0 %v2244
    %v2403 = vpop.f32.mrb[0].mxu0
    %v2404 = vadd.f32 0.0, %v2403
    %v2405 = vpop.f32.mrb[0].mxu0
    %v2406 = vadd.f32 0.0, %v2405
    %v2407 = vpop.f32.mrb[0].mxu0
    %v2408 = vpop.f32.mrb[0].mxu0
    %2409 = vdwg.mxu0
    %v2410 = vadd.f32 %v2363, %v177
    %v2411 = vadd.f32 %v2365, %v181
    %v2412 = vadd.f32 %v2404, %v185
    %v2413 = vadd.f32 %v2406, %v189
    %v2414 = vmul.f32 %v2410, 0.5
    %v2415 = vmul.f32 %v2411, 0.5
    %v2416 = vmul.f32 %v2412, 0.5
    %v2417 = vtanh.pop %v2414
    %v2418 = vtanh.pop %v2415
    %v2419 = vtanh.pop %v2416
    %v2420 = vmul.f32 %v2417, 0.5
    %v2421 = vmul.f32 %v2418, 0.5
    %v2422 = vmul.f32 %v2419, 0.5
    %v2423 = vadd.f32 %v2420, 0.5
    %v2424 = vadd.f32 %v2421, 0.5
    %v2425 = vadd.f32 %v2422, 0.5
    %v2426 = vtanh.pop %v2413
    %v2427 = vmul.f32 %v2424, %v2197
    %v2428 = vmul.f32 %v2423, %v2426
    %v2429 = vadd.f32 %v2427, %v2428
    %v2430 = vtanh.pop %v2429
    %v2431 = vmul.f32 %v2425, %v2430
    %v2432 = vmax.f32 %v2200, %v2431
    %s2433 = scalar_lea.vmem [#allocation2], 56
    %v2434 = vld [vmem:[%s2433] sm:$0xff]
    %v2439 = vcombine.low %v2281, %v2283
    %v2440 = vcombine.low %v2322, %v2324
    %v2442 = vunpack.c.l.s4 1983009808
    %v2443 = vunpack.c.0.s8 %v2442
    %v2444 = vlaneseq
    %v2445 = vshrl.u32 %v2444, 7
    %v2446 = vsub.s32 %v2443, %v2445
    %v2447 = vrot.slane %v2439, %v2446
    %v2449 = vunpack.c.l.s4 1983009808
    %v2450 = vunpack.c.0.s8 %v2449
    %v2451 = vlaneseq
    %v2452 = vshrl.u32 %v2451, 7
    %v2453 = vsub.s32 %v2450, %v2452
    %v2454 = vrot.slane %v2440, %v2453
    %v2455 = vcombine.low %v2447, %v2454
    %v2457 = vadd.f32 %v2434, %v2455
    %v2458 = vmul.f32 %v2457, 0.5
    %v2459 = vtanh.pop %v2458
    %v2460 = vmul.f32 %v2459, 0.5
    %v2461 = vadd.f32 %v2460, 0.5
    %v2463 = vrot.slane %v2457, 6
    %v2465 = vtanh.pop %v2463
    %v2467 = vrot.slane %v2461, 2
    %v2469 = vmul.f32 %v2467, %v2239
    %v2470 = vmul.f32 %v2461, %v2465
    %v2471 = vadd.f32 %v2469, %v2470
    %v2472 = vtanh.pop %v2471
    %v2473 = vrot.slane %v2461, 4
    %v2475 = vmul.f32 %v2473, %v2472
    %v2476 = vpack.c.bf16 %v2475, %v2475
    %v2477 = vpack.c.bf16 %v2431, %v2431
    %2478 = vmatprep.subr.bf16.mxu0 %v604
    %2479 = vmatpush1.bf16.msra.mxu0 %v603
    %2480 = vmatprep.subr.bf16.mxu0 %v612
    %2481 = vmatpush1.bf16.msra.mxu0 %v611
    %2482 = vmatprep.subr.bf16.mxu0 %v620
    %2483 = vmatpush1.bf16.msra.mxu0 %v619
    %2484 = vmatprep.subr.bf16.mxu0 %v628
    %2485 = vmatpush1.bf16.msra.mxu0 %v627
    %2486 = vmatprep.subr.bf16.mxu0 %v636
    %2487 = vmatpush1.bf16.msra.mxu0 %v635
    %2488 = vmatprep.subr.bf16.mxu0 %v644
    %2489 = vmatpush1.bf16.msra.mxu0 %v643
    %2490 = vmatprep.subr.bf16.mxu0 %v652
    %2491 = vmatpush1.bf16.msra.mxu0 %v651
    %2492 = vmatprep.subr.bf16.mxu0 %v660
    %2493 = vmatpush1.bf16.msra.mxu0 %v659
    %2494 = vmatprep.subr.bf16.mxu0 %v668
    %2495 = vmatpush1.bf16.msra.mxu0 %v667
    %2496 = vmatprep.subr.bf16.mxu0 %v676
    %2497 = vmatpush1.bf16.msra.mxu0 %v675
    %2498 = vmatprep.subr.bf16.mxu0 %v684
    %2499 = vmatpush1.bf16.msra.mxu0 %v683
    %2500 = vmatprep.subr.bf16.mxu0 %v692
    %2501 = vmatpush1.bf16.msra.mxu0 %v691
    %2502 = vmatprep.subr.bf16.mxu0 %v700
    %2503 = vmatpush1.bf16.msra.mxu0 %v699
    %2504 = vmatprep.subr.bf16.mxu0 %v708
    %2505 = vmatpush1.bf16.msra.mxu0 %v707
    %2506 = vmatprep.subr.bf16.mxu0 %v716
    %2507 = vmatpush1.bf16.msra.mxu0 %v715
    %2508 = vmatprep.subr.bf16.mxu0 %v724
    %2509 = vmatpush1.bf16.msra.mxu0 %v723
    %2510 = vmatprep.mubr.bf16.mxu0 %v2477
    %2511 = vmatmul.mubr.bf16.gmra.mrb[0].mxu0 %v2476
    %v2512 = vpop.f32.mrb[0].mxu0
    %v2513 = vadd.f32 0.0, %v2512
    %v2514 = vpop.f32.mrb[0].mxu0
    %v2515 = vadd.f32 0.0, %v2514
    %v2516 = vpop.f32.mrb[0].mxu0
    %v2517 = vpop.f32.mrb[0].mxu0
    %2518 = vdwg.mxu0
    %2519 = vmatprep.subr.bf16.mxu0 %v606
    %2520 = vmatpush1.bf16.msra.mxu0 %v605
    %2521 = vmatprep.subr.bf16.mxu0 %v614
    %2522 = vmatpush1.bf16.msra.mxu0 %v613
    %2523 = vmatprep.subr.bf16.mxu0 %v622
    %2524 = vmatpush1.bf16.msra.mxu0 %v621
    %2525 = vmatprep.subr.bf16.mxu0 %v630
    %2526 = vmatpush1.bf16.msra.mxu0 %v629
    %2527 = vmatprep.subr.bf16.mxu0 %v638
    %2528 = vmatpush1.bf16.msra.mxu0 %v637
    %2529 = vmatprep.subr.bf16.mxu0 %v646
    %2530 = vmatpush1.bf16.msra.mxu0 %v645
    %2531 = vmatprep.subr.bf16.mxu0 %v654
    %2532 = vmatpush1.bf16.msra.mxu0 %v653
    %2533 = vmatprep.subr.bf16.mxu0 %v662
    %2534 = vmatpush1.bf16.msra.mxu0 %v661
    %2535 = vmatprep.subr.bf16.mxu0 %v670
    %2536 = vmatpush1.bf16.msra.mxu0 %v669
    %2537 = vmatprep.subr.bf16.mxu0 %v678
    %2538 = vmatpush1.bf16.msra.mxu0 %v677
    %2539 = vmatprep.subr.bf16.mxu0 %v686
    %2540 = vmatpush1.bf16.msra.mxu0 %v685
    %2541 = vmatprep.subr.bf16.mxu0 %v694
    %2542 = vmatpush1.bf16.msra.mxu0 %v693
    %2543 = vmatprep.subr.bf16.mxu0 %v702
    %2544 = vmatpush1.bf16.msra.mxu0 %v701
    %2545 = vmatprep.subr.bf16.mxu0 %v710
    %2546 = vmatpush1.bf16.msra.mxu0 %v709
    %2547 = vmatprep.subr.bf16.mxu0 %v718
    %2548 = vmatpush1.bf16.msra.mxu0 %v717
    %2549 = vmatprep.subr.bf16.mxu0 %v726
    %2550 = vmatpush1.bf16.msra.mxu0 %v725
    %2551 = vmatprep.mubr.bf16.mxu0 %v2477
    %2552 = vmatmul.mubr.bf16.gmra.mrb[0].mxu0 %v2476
    %v2553 = vpop.f32.mrb[0].mxu0
    %v2554 = vadd.f32 0.0, %v2553
    %v2555 = vpop.f32.mrb[0].mxu0
    %v2556 = vadd.f32 0.0, %v2555
    %v2557 = vpop.f32.mrb[0].mxu0
    %v2558 = vpop.f32.mrb[0].mxu0
    %2559 = vdwg.mxu0
    %v2560 = vadd.f32 %v2513, %v177
    %v2561 = vadd.f32 %v2515, %v181
    %v2562 = vadd.f32 %v2554, %v185
    %v2563 = vadd.f32 %v2556, %v189
    %v2564 = vmul.f32 %v2560, 0.5
    %v2565 = vmul.f32 %v2561, 0.5
    %v2566 = vmul.f32 %v2562, 0.5
    %v2567 = vtanh.pop %v2564
    %v2568 = vtanh.pop %v2565
    %v2569 = vtanh.pop %v2566
    %v2570 = vmul.f32 %v2567, 0.5
    %v2571 = vmul.f32 %v2568, 0.5
    %v2572 = vmul.f32 %v2569, 0.5
    %v2573 = vadd.f32 %v2570, 0.5
    %v2574 = vadd.f32 %v2571, 0.5
    %v2575 = vadd.f32 %v2572, 0.5
    %v2576 = vtanh.pop %v2563
    %v2577 = vmul.f32 %v2574, %v2429
    %v2578 = vmul.f32 %v2573, %v2576
    %v2579 = vadd.f32 %v2577, %v2578
    %v2580 = vtanh.pop %v2579
    %v2581 = vmul.f32 %v2575, %v2580
    %v2582 = vmax.f32 %v2432, %v2581
    %2583 = vst [vmem:[#allocation7] sm:$0x3] %v2582
    // Predicated region
    $region22: #{tpu_custom_call.1} parent=1 // pred_check
      _
    $region23: #{tpu_custom_call.1} parent=1 // pred_check_branch
      %2585 = sbr.rel (0) target = $region25
    $region24: #{tpu_custom_call.1} parent=1 // pred_region
      %s2587 = ssub.s32 32, 32
      %2588 = vsyncadd [#allocation4], %s2587
      %s2590 = sshll.u32 [#allocation7], 4
      %s2591 = int_to_ptr.vmem [resolvable:$true] %s2590
      %2593 = dma.vmem_to_hbm [thread:$0]  %s2591, 32, %s3, [#allocation4]
    $region25: #{tpu_custom_call.1} parent=1 // pred_fallthru
      _
    // Predicated region
    $region26: #{tpu_custom_call.1} parent=1 // pred_check
      _
    $region27: #{tpu_custom_call.1} parent=1 // pred_check_branch
      %2595 = sbr.rel (0) target = $region29
    $region28: #{tpu_custom_call.1} parent=1 // pred_region
      %2596 = dma.done [#allocation4], 32
    $region29: #{tpu_custom_call.1} parent=1 // pred_fallthru
      _
    %2597 = vsyncpa [#allocation3], 1
    %2598 = vsyncpa [#allocation6], 1
    %2599 = vsyncpa [#allocation4], 1

</llo_original>
